<compile_context>
chip_gen: v6e
topology: v6e:2x2x1
jax: 0.10.0
libtpu: 0.0.40
codegen_flags: <defaults>
</compile_context>

<pallas_src>
import functools

import numpy as np
import jax
import jax.numpy as jnp
from jax import lax
from jax.experimental import pallas as pl
from jax.experimental.pallas import tpu as pltpu

BN_EPS = 1e-5


# ---------------------------------------------------------------------------
# Helpers
# ---------------------------------------------------------------------------
def _round_up(x, m):
    return (x + m - 1) // m * m


def _pick_tile(dim, target, quantum):
    """Largest tile <= target that is a multiple of `quantum` and divides `dim`
    exactly.  Falls back to the full dim only when that is <= 2*target,
    otherwise raises instead of silently blowing the scoped-VMEM budget."""
    if dim <= target:
        return dim
    t = (target // quantum) * quantum
    while t >= quantum:
        if dim % t == 0:
            return t
        t -= quantum
    if dim <= 2 * target:
        return dim
    raise ValueError(
        f"no legal tile <= {target} (quantum {quantum}) divides dim {dim}; "
        "pad the array or pick a different tile target")


# ---------------------------------------------------------------------------
# 1x1 conv (+BN folded) as a tiled matmul
# ---------------------------------------------------------------------------
def _mm_bias_kernel_1k(x_ref, w_ref, b_ref, o_ref, *, relu):
    """Single K-step: out = [relu](X @ W + bias); no accumulator scratch."""
    y = jnp.dot(x_ref[...], w_ref[...],
                preferred_element_type=jnp.float32) + b_ref[...]
    if relu:
        y = jnp.maximum(y, 0.0)
    o_ref[...] = y.astype(o_ref.dtype)


def _mm_bias_res_kernel_1k(x_ref, w_ref, b_ref, r_ref, o_ref):
    """Single K-step: out = relu(X @ W + bias + residual)."""
    y = (jnp.dot(x_ref[...], w_ref[...], preferred_element_type=jnp.float32)
         + b_ref[...] + r_ref[...].astype(jnp.float32))
    o_ref[...] = jnp.maximum(y, 0.0).astype(o_ref.dtype)


def _mm_bias_kernel_acc(x_ref, w_ref, b_ref, o_ref, acc_ref, *, relu):
    """K-tiled: f32 VMEM accumulator, init/finalize gated on the K grid axis."""
    @pl.when(pl.program_id(2) == 0)
    def _init():
        acc_ref[...] = jnp.zeros_like(acc_ref)

    acc_ref[...] += jnp.dot(x_ref[...], w_ref[...],
                            preferred_element_type=jnp.float32)

    @pl.when(pl.program_id(2) == pl.num_programs(2) - 1)
    def _finalize():
        y = acc_ref[...] + b_ref[...]
        if relu:
            y = jnp.maximum(y, 0.0)
        o_ref[...] = y.astype(o_ref.dtype)


def _mm_bias_res_kernel_acc(x_ref, w_ref, b_ref, r_ref, o_ref, acc_ref):
    @pl.when(pl.program_id(2) == 0)
    def _init():
        acc_ref[...] = jnp.zeros_like(acc_ref)

    acc_ref[...] += jnp.dot(x_ref[...], w_ref[...],
                            preferred_element_type=jnp.float32)

    @pl.when(pl.program_id(2) == pl.num_programs(2) - 1)
    def _finalize():
        y = acc_ref[...] + b_ref[...] + r_ref[...].astype(jnp.float32)
        o_ref[...] = jnp.maximum(y, 0.0).astype(o_ref.dtype)


def fused_matmul_bias(x, w, bias, *, residual=None, relu=True,
                      out_dtype=jnp.bfloat16,
                      tm_target=1024, tn_target=512, tk_target=512):
    """x: (M, K), w: (K, N) (BN scale folded in), bias: (N,).
    Computes [relu](x @ w + bias [+ residual]) with bf16 operands and f32
    accumulation.  Large M tiles amortize pipeline overhead; when K fits in a
    single tile the accumulator scratch / K grid axis is skipped entirely."""
    M, K = x.shape
    N = w.shape[1]
    tm = _pick_tile(M, tm_target, 8)
    tn = _pick_tile(N, tn_target, 128)
    tk = _pick_tile(K, tk_target, 128)

    xb = x.astype(jnp.bfloat16)
    wb = w.astype(jnp.bfloat16)
    bias2 = bias.reshape(1, N).astype(jnp.float32)

    if K == tk:                                   # ---- single K step ----
        in_specs = [
            pl.BlockSpec((tm, K), lambda i, j: (i, 0)),
            pl.BlockSpec((K, tn), lambda i, j: (0, j)),
            pl.BlockSpec((1, tn), lambda i, j: (0, j)),
        ]
        args = [xb, wb, bias2]
        if residual is None:
            kernel = functools.partial(_mm_bias_kernel_1k, relu=relu)
        else:
            kernel = _mm_bias_res_kernel_1k
            in_specs.append(pl.BlockSpec((tm, tn), lambda i, j: (i, j)))
            args.append(residual.astype(jnp.bfloat16))   # bf16 residual stream
        return pl.pallas_call(
            kernel,
            out_shape=jax.ShapeDtypeStruct((M, N), out_dtype),
            grid=(M // tm, N // tn),
            in_specs=in_specs,
            out_specs=pl.BlockSpec((tm, tn), lambda i, j: (i, j)),
            compiler_params=pltpu.CompilerParams(
                dimension_semantics=("parallel", "parallel")),
        )(*args)

    # ---- K-tiled path (deep-channel stages) ----
    in_specs = [
        pl.BlockSpec((tm, tk), lambda i, j, k: (i, k)),
        pl.BlockSpec((tk, tn), lambda i, j, k: (k, j)),
        pl.BlockSpec((1, tn), lambda i, j, k: (0, j)),
    ]
    args = [xb, wb, bias2]
    if residual is None:
        kernel = functools.partial(_mm_bias_kernel_acc, relu=relu)
    else:
        kernel = _mm_bias_res_kernel_acc
        in_specs.append(pl.BlockSpec((tm, tn), lambda i, j, k: (i, j)))
        args.append(residual.astype(jnp.bfloat16))
    return pl.pallas_call(
        kernel,
        out_shape=jax.ShapeDtypeStruct((M, N), out_dtype),
        grid=(M // tm, N // tn, K // tk),
        in_specs=in_specs,
        out_specs=pl.BlockSpec((tm, tn), lambda i, j, k: (i, j)),
        scratch_shapes=[pltpu.VMEM((tm, tn), jnp.float32)],
        compiler_params=pltpu.CompilerParams(
            dimension_semantics=("parallel", "parallel", "arbitrary")),
    )(*args)


# ---------------------------------------------------------------------------
# 3x3 conv (+BN folded) fused kernel
# ---------------------------------------------------------------------------
def _conv3x3_bias_relu_kernel(x_ref, w_ref, b_ref, o_ref, xp_ref, acc_ref,
                              *, H, W, TH, WS):
    """One (batch, row-tile, cout-tile) grid step.

    The unpadded NHWC image (resident per batch) is zero-padded once per batch
    into the persistent VMEM scratch `xp_ref` ((H+2, WS+2, cin)).  Per step we
    read 3 dx-shifted views of a (TH+2)-row slab, concatenate them on the lane
    axis and run one K = 3*cin MXU dot per dy into a (TH*WS, tn) f32 scratch
    accumulator.  Columns >= W of each padded row are garbage and are dropped
    before the store."""
    cin = x_ref.shape[-1]
    tn = w_ref.shape[-1]
    dt = xp_ref.dtype
    wbuf = xp_ref.shape[1]

    # --- refill the zero-padded image scratch once per batch ----------------
    # (row / cout grid axes are "arbitrary", so (i, j) == (0, 0) is the first
    #  step executed for every batch on whichever core owns it)
    @pl.when((pl.program_id(1) == 0) & (pl.program_id(2) == 0))
    def _fill():
        img = x_ref[0]                                           # (H, W, cin)
        left = jnp.zeros((H, 1, cin), dt)
        right = jnp.zeros((H, wbuf - W - 1, cin), dt)
        rows = jnp.concatenate([left, img, right], axis=1)       # (H, wbuf, cin)
        zrow = jnp.zeros((1, wbuf, cin), dt)
        xp_ref[...] = jnp.concatenate([zrow, rows, zrow], axis=0)

    # --- one output row-tile: rows [r0, r0+TH) ------------------------------
    r0 = pl.multiple_of(pl.program_id(1) * TH, TH)
    rows = pl.ds(r0, TH + 2)
    s0 = xp_ref[rows, 0:WS, :]          # (TH+2, WS, cin)   dx = 0
    s1 = xp_ref[rows, 1:WS + 1, :]      #                    dx = 1
    s2 = xp_ref[rows, 2:WS + 2, :]      #                    dx = 2
    xw = jnp.concatenate([s0, s1, s2], axis=-1)        # (TH+2, WS, 3*cin)
    xw = xw.reshape((TH + 2) * WS, 3 * cin)            # WS is 16-aligned

    acc_ref[...] = jnp.dot(xw[0:TH * WS], w_ref[0],
                           preferred_element_type=jnp.float32)
    for dy in (1, 2):
        acc_ref[...] += jnp.dot(xw[dy * WS:dy * WS + TH * WS], w_ref[dy],
                                preferred_element_type=jnp.float32)

    y = acc_ref[...].reshape(TH, WS, tn)[:, :W, :]     # drop pad/garbage cols
    y = jnp.maximum(y + b_ref[...], 0.0)
    o_ref[0] = y.astype(o_ref.dtype)


def fused_conv3x3_bias_relu(x_nhwc, w_hwio, bias, *, out_dtype=jnp.bfloat16,
                            th_target=8, tn_target=256):
    """x_nhwc: (N, H, W, Cin); w_hwio: (3, 3, Cin, Cout) with BN scale folded;
    bias: (Cout,).  Returns relu(conv3x3(x, pad=1) + bias) as (N, H, W, Cout).
    No HBM-level jnp.pad: padding lives in a per-batch VMEM scratch."""
    n, h, w, cin = x_nhwc.shape
    cout = w_hwio.shape[-1]
    tn = _pick_tile(cout, tn_target, 128)
    th = _pick_tile(h, th_target, 1)
    ws = _round_up(w + 2, 16)      # padded row stride (16-aligned for bf16)
    wbuf = ws + 2                  # scratch width: room for the dx=1,2 views

    wstack = w_hwio.reshape(3, 3 * cin, cout).astype(jnp.bfloat16)
    bias2 = bias.reshape(1, cout).astype(jnp.float32)
    kernel = functools.partial(_conv3x3_bias_relu_kernel, H=h, W=w, TH=th, WS=ws)

    return pl.pallas_call(
        kernel,
        out_shape=jax.ShapeDtypeStruct((n, h, w, cout), out_dtype),
        grid=(n, h // th, cout // tn),
        in_specs=[
            # whole unpadded image, resident across the inner grid axes
            pl.BlockSpec((1, h, w, cin), lambda b, i, j: (b, 0, 0, 0)),
            pl.BlockSpec((3, 3 * cin, tn), lambda b, i, j: (0, 0, j)),
            pl.BlockSpec((1, tn), lambda b, i, j: (0, j)),
        ],
        out_specs=pl.BlockSpec((1, th, w, tn), lambda b, i, j: (b, i, 0, j)),
        scratch_shapes=[
            pltpu.VMEM((h + 2, wbuf, cin), jnp.bfloat16),  # zero-padded image
            pltpu.VMEM((th * ws, tn), jnp.float32),        # row-tile accumulator
        ],
        compiler_params=pltpu.CompilerParams(
            # batch is the megacore-parallel axis; row/cout stay "arbitrary"
            # because the padded-image scratch is (re)filled at (i, j) == (0, 0).
            dimension_semantics=("parallel", "arbitrary", "arbitrary")),
    )(x_nhwc.astype(jnp.bfloat16), wstack, bias2)


# ---------------------------------------------------------------------------
# Glue: BN folding + bottleneck forward
# ---------------------------------------------------------------------------
def _fold_bn(bn):
    scale = bn["gamma"] * lax.rsqrt(bn["var"] + BN_EPS)
    bias = bn["beta"] - bn["mean"] * scale
    return scale, bias


def bottleneck_forward_nhwc(x_flat, params, n, h, w):
    """Core Bottleneck on flattened NHWC bf16 activations (the layout a full
    ResNet would keep end-to-end).  x_flat: (N*H*W, inplanes) bf16."""
    cin = x_flat.shape[-1]

    # conv1 (1x1) + bn1 + relu
    w1 = params["conv1_w"]                               # (planes, cin, 1, 1)
    planes = w1.shape[0]
    s1, b1 = _fold_bn(params["bn1"])
    w1m = w1.reshape(planes, cin).T * s1[None, :]
    out = fused_matmul_bias(x_flat, w1m, b1, relu=True)

    # conv2 (3x3, pad=1) + bn2 + relu  (fused dy-slab kernel, no HBM pad)
    w2 = params["conv2_w"]                               # (planes, planes, 3, 3)
    s2, b2 = _fold_bn(params["bn2"])
    w2m = jnp.transpose(w2, (2, 3, 1, 0)) * s2[None, None, None, :]
    out = fused_conv3x3_bias_relu(out.reshape(n, h, w, planes), w2m, b2)
    out = out.reshape(n * h * w, planes)

    # conv3 (1x1) + bn3 + residual add + relu (residual stays bf16)
    w3 = params["conv3_w"]                               # (4*planes, planes, 1, 1)
    outp = w3.shape[0]
    s3, b3 = _fold_bn(params["bn3"])
    w3m = w3.reshape(outp, planes).T * s3[None, :]
    return fused_matmul_bias(out, w3m, b3, residual=x_flat, relu=True)


def bottleneck_forward(x_nchw, params):
    """NCHW f32 interface used for the test; in a full network the transpose /
    cast below happens once at the network boundary, not per block."""
    n, cin, h, w = x_nchw.shape
    x_flat = jnp.transpose(x_nchw, (0, 2, 3, 1)).astype(jnp.bfloat16)
    x_flat = x_flat.reshape(n * h * w, cin)
    out = bottleneck_forward_nhwc(x_flat, params, n, h, w)     # (M, 4*planes) bf16
    out = out.reshape(n, h, w, -1)
    return jnp.transpose(out, (0, 3, 1, 2)).astype(jnp.float32)


# ---------------------------------------------------------------------------
# Pure-JAX f32 reference (correctness check)
# ---------------------------------------------------------------------------
def bottleneck_reference(x, params):
    def conv(x, w, pad=0):
        return lax.conv_general_dilated(
            x, w, (1, 1), [(pad, pad), (pad, pad)],
            dimension_numbers=("NCHW", "OIHW", "NCHW"))

    def bn(x, p):
        s = p["gamma"] / jnp.sqrt(p["var"] + BN_EPS)
        b = p["beta"] - p["mean"] * s
        return x * s[None, :, None, None] + b[None, :, None, None]

    out = jnp.maximum(bn(conv(x, params["conv1_w"]), params["bn1"]), 0.0)
    out = jnp.maximum(bn(conv(out, params["conv2_w"], pad=1), params["bn2"]), 0.0)
    out = bn(conv(out, params["conv3_w"]), params["bn3"])
    return jnp.maximum(out + x, 0.0)


# ---------------------------------------------------------------------------
# Deterministic parameter init + run
# ---------------------------------------------------------------------------
def make_params(key, inplanes, planes):
    ks = jax.random.split(key, 6)
    expansion = 4

    def bn_params(k, c):
        k1, k2, k3, k4 = jax.random.split(k, 4)
        return dict(
            gamma=jax.random.uniform(k1, (c,), jnp.float32, 0.8, 1.2),
            beta=jax.random.normal(k2, (c,), jnp.float32) * 0.1,
            mean=jax.random.normal(k3, (c,), jnp.float32) * 0.1,
            var=jax.random.uniform(k4, (c,), jnp.float32, 0.8, 1.2),
        )

    return dict(
        conv1_w=jax.random.normal(ks[0], (planes, inplanes, 1, 1), jnp.float32) * 0.1,
        conv2_w=jax.random.normal(ks[1], (planes, planes, 3, 3), jnp.float32) * 0.1,
        conv3_w=jax.random.normal(ks[2], (planes * expansion, planes, 1, 1), jnp.float32) * 0.1,
        bn1=bn_params(ks[3], planes),
        bn2=bn_params(ks[4], planes),
        bn3=bn_params(ks[5], planes * expansion),
    )


if __name__ == "__main__":
    key = jax.random.PRNGKey(0)
    planes = 8
    inplanes = planes * 4          # identity residual (downsample=None)
    N, H, W = 2, 16, 16

    k_x, k_p = jax.random.split(key)
    x = jax.random.normal(k_x, (N, inplanes, H, W), jnp.float32)
    params = make_params(k_p, inplanes, planes)

    fwd = jax.jit(bottleneck_forward)
    out = jax.block_until_ready(fwd(x, params))
    ref = jax.block_until_ready(bottleneck_reference(x, params))

    assert out.shape == (N, inplanes, H, W), out.shape
    # bf16 operands / residual with f32 accumulation => loosened tolerance.
    np.testing.assert_allclose(np.asarray(out, np.float32), np.asarray(ref),
                               rtol=5e-2, atol=5e-2)
    print("KERNEL_OK")
</pallas_src>

<mosaic_0001>
module attributes {stable_mosaic.version = 11 : i64} {
  func.func @_mm_bias_kernel_1k(%arg0: i32, %arg1: i32, %arg2: memref<512x32xbf16, #tpu.memory_space<vmem>>, %arg3: memref<32x8xbf16, #tpu.memory_space<vmem>>, %arg4: memref<1x8xf32, #tpu.memory_space<vmem>>, %arg5: memref<512x8xbf16, #tpu.memory_space<vmem>>) attributes {dimension_semantics = [#tpu.dimension_semantics<parallel>, #tpu.dimension_semantics<parallel>], iteration_bounds = array<i64: 1, 1>, scalar_prefetch = 0 : i64, scratch_operands = 0 : i64, tpu.core_type = #tpu.core_type<tc>, window_params = [{transform_indices = @transform_0, window_bounds = array<i64: 512, 32>}, {transform_indices = @transform_1, window_bounds = array<i64: 32, 8>}, {transform_indices = @transform_2, window_bounds = array<i64: 1, 8>}, {transform_indices = @transform_3, window_bounds = array<i64: 512, 8>}]} {
    %c0 = arith.constant 0 : index
    %c0_0 = arith.constant 0 : index
    %0 = vector.load %arg2[%c0, %c0_0] : memref<512x32xbf16, #tpu.memory_space<vmem>>, vector<512x32xbf16>
    %c0_1 = arith.constant 0 : index
    %c0_2 = arith.constant 0 : index
    %1 = vector.load %arg3[%c0_1, %c0_2] : memref<32x8xbf16, #tpu.memory_space<vmem>>, vector<32x8xbf16>
    %cst = arith.constant dense<0.000000e+00> : vector<512x8xf32>
    %2 = tpu.matmul %0, %1, %cst {dimension_numbers = #tpu.dot_dimension_numbers<[1], [0], [0], [1], [0, 0, 1, 1], [], []>} : vector<512x32xbf16>, vector<32x8xbf16>, vector<512x8xf32> -> vector<512x8xf32>
    %c0_3 = arith.constant 0 : index
    %c0_4 = arith.constant 0 : index
    %3 = vector.load %arg4[%c0_3, %c0_4] : memref<1x8xf32, #tpu.memory_space<vmem>>, vector<1x8xf32>
    %4 = vector.broadcast %3 : vector<1x8xf32> to vector<512x8xf32>
    %5 = arith.addf %2, %4 : vector<512x8xf32>
    %cst_5 = arith.constant 0.000000e+00 : f32
    %6 = vector.broadcast %cst_5 : f32 to vector<512x8xf32>
    %7 = arith.maximumf %5, %6 : vector<512x8xf32>
    %8 = arith.truncf %7 : vector<512x8xf32> to vector<512x8xbf16>
    %c0_6 = arith.constant 0 : index
    %c0_7 = arith.constant 0 : index
    %9 = vector.load %arg5[%c0_6, %c0_7] : memref<512x8xbf16, #tpu.memory_space<vmem>>, vector<512x8xbf16>
    tpu.vector_store %arg5[%c0_6, %c0_7], %8 {strides = array<i32>} : memref<512x8xbf16, #tpu.memory_space<vmem>>, vector<512x8xbf16>,
    return
  }
  func.func @transform_0(%arg0: i32, %arg1: i32) -> (i32, i32) {
    %c0_i32 = arith.constant 0 : i32
    %c0_i32_0 = arith.constant 0 : i32
    return %arg0, %c0_i32 : i32, i32
  }
  func.func @transform_1(%arg0: i32, %arg1: i32) -> (i32, i32) {
    %c0_i32 = arith.constant 0 : i32
    %c0_i32_0 = arith.constant 0 : i32
    return %c0_i32, %arg1 : i32, i32
  }
  func.func @transform_2(%arg0: i32, %arg1: i32) -> (i32, i32) {
    %c0_i32 = arith.constant 0 : i32
    %c0_i32_0 = arith.constant 0 : i32
    return %c0_i32, %arg1 : i32, i32
  }
  func.func @transform_3(%arg0: i32, %arg1: i32) -> (i32, i32) {
    %c0_i32 = arith.constant 0 : i32
    return %arg0, %arg1 : i32, i32
  }
}

module attributes {stable_mosaic.version = 11 : i64} {
  func.func @_conv3x3_bias_relu_kernel(%arg0: i32, %arg1: i32, %arg2: i32, %arg3: memref<1x16x16x8xbf16, #tpu.memory_space<vmem>>, %arg4: memref<3x24x8xbf16, #tpu.memory_space<vmem>>, %arg5: memref<1x8xf32, #tpu.memory_space<vmem>>, %arg6: memref<1x8x16x8xbf16, #tpu.memory_space<vmem>>, %arg7: memref<18x34x8xbf16, #tpu.memory_space<vmem>>, %arg8: memref<256x8xf32, #tpu.memory_space<vmem>>) attributes {dimension_semantics = [#tpu.dimension_semantics<parallel>, #tpu.dimension_semantics<arbitrary>, #tpu.dimension_semantics<arbitrary>], iteration_bounds = array<i64: 2, 2, 1>, scalar_prefetch = 0 : i64, scratch_operands = 2 : i64, tpu.core_type = #tpu.core_type<tc>, window_params = [{transform_indices = @transform_0, window_bounds = array<i64: 1, 16, 16, 8>}, {transform_indices = @transform_1, window_bounds = array<i64: 3, 24, 8>}, {transform_indices = @transform_2, window_bounds = array<i64: 1, 8>}, {transform_indices = @transform_3, window_bounds = array<i64: 1, 8, 16, 8>}]} {
    %c0_i32 = arith.constant 0 : i32
    %0 = arith.cmpi eq, %arg1, %c0_i32 : i32
    %c0_i32_0 = arith.constant 0 : i32
    %1 = arith.cmpi eq, %arg2, %c0_i32_0 : i32
    %2 = arith.andi %0, %1 : i1
    %3 = arith.extui %2 : i1 to i32
    %c0_i32_1 = arith.constant 0 : i32
    %4 = arith.cmpi ne, %3, %c0_i32_1 : i32
    scf.if %4 {
      %c0_35 = arith.constant 0 : index
      %c0_36 = arith.constant 0 : index
      %c0_37 = arith.constant 0 : index
      %c0_38 = arith.constant 0 : index
      %47 = vector.load %arg3[%c0_35, %c0_36, %c0_37, %c0_38] : memref<1x16x16x8xbf16, #tpu.memory_space<vmem>>, vector<1x16x16x8xbf16>
      %48 = vector.shape_cast %47 : vector<1x16x16x8xbf16> to vector<16x16x8xbf16>
      %cst_39 = arith.constant 0.000000e+00 : bf16
      %49 = vector.broadcast %cst_39 : bf16 to vector<16x1x8xbf16>
      %cst_40 = arith.constant 0.000000e+00 : bf16
      %50 = vector.broadcast %cst_40 : bf16 to vector<16x17x8xbf16>
      %51 = tpu.concatenate %49, %48, %50 in 1 : vector<16x1x8xbf16>, vector<16x16x8xbf16>, vector<16x17x8xbf16> -> vector<16x34x8xbf16>
      %cst_41 = arith.constant 0.000000e+00 : bf16
      %52 = vector.broadcast %cst_41 : bf16 to vector<1x34x8xbf16>
      %53 = tpu.concatenate %52, %51, %52 in 0 : vector<1x34x8xbf16>, vector<16x34x8xbf16>, vector<1x34x8xbf16> -> vector<18x34x8xbf16>
      %c0_42 = arith.constant 0 : index
      %c0_43 = arith.constant 0 : index
      %c0_44 = arith.constant 0 : index
      %54 = vector.load %arg7[%c0_42, %c0_43, %c0_44] : memref<18x34x8xbf16, #tpu.memory_space<vmem>>, vector<18x34x8xbf16>
      tpu.vector_store %arg7[%c0_42, %c0_43, %c0_44], %53 {strides = array<i32>} : memref<18x34x8xbf16, #tpu.memory_space<vmem>>, vector<18x34x8xbf16>,
    } else {
    }
    %c8_i32 = arith.constant 8 : i32
    %5 = arith.muli %arg1, %c8_i32 : i32
    %6 = tpu.assume_multiple %5, 8 : i32
    %7 = arith.index_cast %6 : i32 to index
    %c0 = arith.constant 0 : index
    %c0_2 = arith.constant 0 : index
    %8 = vector.load %arg7[%7, %c0, %c0_2] : memref<18x34x8xbf16, #tpu.memory_space<vmem>>, vector<10x32x8xbf16>
    %9 = arith.index_cast %6 : i32 to index
    %c1 = arith.constant 1 : index
    %c0_3 = arith.constant 0 : index
    %10 = vector.load %arg7[%9, %c1, %c0_3] : memref<18x34x8xbf16, #tpu.memory_space<vmem>>, vector<10x32x8xbf16>
    %11 = arith.index_cast %6 : i32 to index
    %c2 = arith.constant 2 : index
    %c0_4 = arith.constant 0 : index
    %12 = vector.load %arg7[%11, %c2, %c0_4] : memref<18x34x8xbf16, #tpu.memory_space<vmem>>, vector<10x32x8xbf16>
    %13 = tpu.concatenate %8, %10, %12 in 2 : vector<10x32x8xbf16>, vector<10x32x8xbf16>, vector<10x32x8xbf16> -> vector<10x32x24xbf16>
    %14 = vector.shape_cast %13 : vector<10x32x24xbf16> to vector<320x24xbf16>
    %15 = vector.extract_strided_slice %14 {offsets = [0, 0], sizes = [256, 24], strides = [1, 1]} : vector<320x24xbf16> to vector<256x24xbf16>
    %c0_5 = arith.constant 0 : index
    %c0_6 = arith.constant 0 : index
    %c0_7 = arith.constant 0 : index
    %16 = vector.load %arg4[%c0_5, %c0_6, %c0_7] : memref<3x24x8xbf16, #tpu.memory_space<vmem>>, vector<1x24x8xbf16>
    %17 = vector.shape_cast %16 : vector<1x24x8xbf16> to vector<24x8xbf16>
    %cst = arith.constant dense<0.000000e+00> : vector<256x8xf32>
    %18 = tpu.matmul %15, %17, %cst {dimension_numbers = #tpu.dot_dimension_numbers<[1], [0], [0], [1], [0, 0, 1, 1], [], []>} : vector<256x24xbf16>, vector<24x8xbf16>, vector<256x8xf32> -> vector<256x8xf32>
    %c0_8 = arith.constant 0 : index
    %c0_9 = arith.constant 0 : index
    %19 = vector.load %arg8[%c0_8, %c0_9] : memref<256x8xf32, #tpu.memory_space<vmem>>, vector<256x8xf32>
    tpu.vector_store %arg8[%c0_8, %c0_9], %18 {strides = array<i32>} : memref<256x8xf32, #tpu.memory_space<vmem>>, vector<256x8xf32>,
    %c0_10 = arith.constant 0 : index
    %c0_11 = arith.constant 0 : index
    %20 = vector.load %arg8[%c0_10, %c0_11] : memref<256x8xf32, #tpu.memory_space<vmem>>, vector<256x8xf32>
    %21 = vector.extract_strided_slice %14 {offsets = [32, 0], sizes = [256, 24], strides = [1, 1]} : vector<320x24xbf16> to vector<256x24xbf16>
    %c1_12 = arith.constant 1 : index
    %c0_13 = arith.constant 0 : index
    %c0_14 = arith.constant 0 : index
    %22 = vector.load %arg4[%c1_12, %c0_13, %c0_14] : memref<3x24x8xbf16, #tpu.memory_space<vmem>>, vector<1x24x8xbf16>
    %23 = vector.shape_cast %22 : vector<1x24x8xbf16> to vector<24x8xbf16>
    %cst_15 = arith.constant dense<0.000000e+00> : vector<256x8xf32>
    %24 = tpu.matmul %21, %23, %cst_15 {dimension_numbers = #tpu.dot_dimension_numbers<[1], [0], [0], [1], [0, 0, 1, 1], [], []>} : vector<256x24xbf16>, vector<24x8xbf16>, vector<256x8xf32> -> vector<256x8xf32>
    %25 = arith.addf %20, %24 : vector<256x8xf32>
    %c0_16 = arith.constant 0 : index
    %c0_17 = arith.constant 0 : index
    %26 = vector.load %arg8[%c0_16, %c0_17] : memref<256x8xf32, #tpu.memory_space<vmem>>, vector<256x8xf32>
    tpu.vector_store %arg8[%c0_16, %c0_17], %25 {strides = array<i32>} : memref<256x8xf32, #tpu.memory_space<vmem>>, vector<256x8xf32>,
    %c0_18 = arith.constant 0 : index
    %c0_19 = arith.constant 0 : index
    %27 = vector.load %arg8[%c0_18, %c0_19] : memref<256x8xf32, #tpu.memory_space<vmem>>, vector<256x8xf32>
    %28 = vector.extract_strided_slice %14 {offsets = [64, 0], sizes = [256, 24], strides = [1, 1]} : vector<320x24xbf16> to vector<256x24xbf16>
    %c2_20 = arith.constant 2 : index
    %c0_21 = arith.constant 0 : index
    %c0_22 = arith.constant 0 : index
    %29 = vector.load %arg4[%c2_20, %c0_21, %c0_22] : memref<3x24x8xbf16, #tpu.memory_space<vmem>>, vector<1x24x8xbf16>
    %30 = vector.shape_cast %29 : vector<1x24x8xbf16> to vector<24x8xbf16>
    %cst_23 = arith.constant dense<0.000000e+00> : vector<256x8xf32>
    %31 = tpu.matmul %28, %30, %cst_23 {dimension_numbers = #tpu.dot_dimension_numbers<[1], [0], [0], [1], [0, 0, 1, 1], [], []>} : vector<256x24xbf16>, vector<24x8xbf16>, vector<256x8xf32> -> vector<256x8xf32>
    %32 = arith.addf %27, %31 : vector<256x8xf32>
    %c0_24 = arith.constant 0 : index
    %c0_25 = arith.constant 0 : index
    %33 = vector.load %arg8[%c0_24, %c0_25] : memref<256x8xf32, #tpu.memory_space<vmem>>, vector<256x8xf32>
    tpu.vector_store %arg8[%c0_24, %c0_25], %32 {strides = array<i32>} : memref<256x8xf32, #tpu.memory_space<vmem>>, vector<256x8xf32>,
    %c0_26 = arith.constant 0 : index
    %c0_27 = arith.constant 0 : index
    %34 = vector.load %arg8[%c0_26, %c0_27] : memref<256x8xf32, #tpu.memory_space<vmem>>, vector<256x8xf32>
    %35 = vector.shape_cast %34 : vector<256x8xf32> to vector<8x32x8xf32>
    %36 = vector.extract_strided_slice %35 {offsets = [0, 0, 0], sizes = [8, 16, 8], strides = [1, 1, 1]} : vector<8x32x8xf32> to vector<8x16x8xf32>
    %c0_28 = arith.constant 0 : index
    %c0_29 = arith.constant 0 : index
    %37 = vector.load %arg5[%c0_28, %c0_29] : memref<1x8xf32, #tpu.memory_space<vmem>>, vector<1x8xf32>
    %38 = vector.shape_cast %37 : vector<1x8xf32> to vector<1x1x8xf32>
    %39 = vector.broadcast %38 : vector<1x1x8xf32> to vector<8x16x8xf32>
    %40 = arith.addf %36, %39 : vector<8x16x8xf32>
    %cst_30 = arith.constant 0.000000e+00 : f32
    %41 = vector.broadcast %cst_30 : f32 to vector<8x16x8xf32>
    %42 = arith.maximumf %40, %41 : vector<8x16x8xf32>
    %43 = arith.truncf %42 : vector<8x16x8xf32> to vector<8x16x8xbf16>
    %c0_31 = arith.constant 0 : index
    %c0_32 = arith.constant 0 : index
    %c0_33 = arith.constant 0 : index
    %c0_34 = arith.constant 0 : index
    %44 = vector.load %arg6[%c0_31, %c0_32, %c0_33, %c0_34] : memref<1x8x16x8xbf16, #tpu.memory_space<vmem>>, vector<1x8x16x8xbf16>
    %45 = vector.shape_cast %44 : vector<1x8x16x8xbf16> to vector<8x16x8xbf16>
    %46 = vector.shape_cast %43 : vector<8x16x8xbf16> to vector<1x8x16x8xbf16>
    tpu.vector_store %arg6[%c0_31, %c0_32, %c0_33, %c0_34], %46 {strides = array<i32>} : memref<1x8x16x8xbf16, #tpu.memory_space<vmem>>, vector<1x8x16x8xbf16>,
    return
  }
  func.func @transform_0(%arg0: i32, %arg1: i32, %arg2: i32) -> (i32, i32, i32, i32) {
    %c0_i32 = arith.constant 0 : i32
    %c0_i32_0 = arith.constant 0 : i32
    %c0_i32_1 = arith.constant 0 : i32
    %c0_i32_2 = arith.constant 0 : i32
    return %arg0, %c0_i32, %c0_i32_0, %c0_i32_1 : i32, i32, i32, i32
  }
  func.func @transform_1(%arg0: i32, %arg1: i32, %arg2: i32) -> (i32, i32, i32) {
    %c0_i32 = arith.constant 0 : i32
    %c0_i32_0 = arith.constant 0 : i32
    %c0_i32_1 = arith.constant 0 : i32
    return %c0_i32, %c0_i32_0, %arg2 : i32, i32, i32
  }
  func.func @transform_2(%arg0: i32, %arg1: i32, %arg2: i32) -> (i32, i32) {
    %c0_i32 = arith.constant 0 : i32
    %c0_i32_0 = arith.constant 0 : i32
    return %c0_i32, %arg2 : i32, i32
  }
  func.func @transform_3(%arg0: i32, %arg1: i32, %arg2: i32) -> (i32, i32, i32, i32) {
    %c0_i32 = arith.constant 0 : i32
    %c0_i32_0 = arith.constant 0 : i32
    return %arg0, %arg1, %c0_i32, %arg2 : i32, i32, i32, i32
  }
}

module attributes {stable_mosaic.version = 11 : i64} {
  func.func @_mm_bias_res_kernel_1k(%arg0: i32, %arg1: i32, %arg2: memref<512x8xbf16, #tpu.memory_space<vmem>>, %arg3: memref<8x32xbf16, #tpu.memory_space<vmem>>, %arg4: memref<1x32xf32, #tpu.memory_space<vmem>>, %arg5: memref<512x32xbf16, #tpu.memory_space<vmem>>, %arg6: memref<512x32xbf16, #tpu.memory_space<vmem>>) attributes {dimension_semantics = [#tpu.dimension_semantics<parallel>, #tpu.dimension_semantics<parallel>], iteration_bounds = array<i64: 1, 1>, scalar_prefetch = 0 : i64, scratch_operands = 0 : i64, tpu.core_type = #tpu.core_type<tc>, window_params = [{transform_indices = @transform_0, window_bounds = array<i64: 512, 8>}, {transform_indices = @transform_1, window_bounds = array<i64: 8, 32>}, {transform_indices = @transform_2, window_bounds = array<i64: 1, 32>}, {transform_indices = @transform_3, window_bounds = array<i64: 512, 32>}, {transform_indices = @transform_4, window_bounds = array<i64: 512, 32>}]} {
    %c0 = arith.constant 0 : index
    %c0_0 = arith.constant 0 : index
    %0 = vector.load %arg2[%c0, %c0_0] : memref<512x8xbf16, #tpu.memory_space<vmem>>, vector<512x8xbf16>
    %c0_1 = arith.constant 0 : index
    %c0_2 = arith.constant 0 : index
    %1 = vector.load %arg3[%c0_1, %c0_2] : memref<8x32xbf16, #tpu.memory_space<vmem>>, vector<8x32xbf16>
    %cst = arith.constant dense<0.000000e+00> : vector<512x32xf32>
    %2 = tpu.matmul %0, %1, %cst {dimension_numbers = #tpu.dot_dimension_numbers<[1], [0], [0], [1], [0, 0, 1, 1], [], []>} : vector<512x8xbf16>, vector<8x32xbf16>, vector<512x32xf32> -> vector<512x32xf32>
    %c0_3 = arith.constant 0 : index
    %c0_4 = arith.constant 0 : index
    %3 = vector.load %arg4[%c0_3, %c0_4] : memref<1x32xf32, #tpu.memory_space<vmem>>, vector<1x32xf32>
    %4 = vector.broadcast %3 : vector<1x32xf32> to vector<512x32xf32>
    %5 = arith.addf %2, %4 : vector<512x32xf32>
    %c0_5 = arith.constant 0 : index
    %c0_6 = arith.constant 0 : index
    %6 = vector.load %arg5[%c0_5, %c0_6] : memref<512x32xbf16, #tpu.memory_space<vmem>>, vector<512x32xbf16>
    %7 = arith.extf %6 : vector<512x32xbf16> to vector<512x32xf32>
    %8 = arith.addf %5, %7 : vector<512x32xf32>
    %cst_7 = arith.constant 0.000000e+00 : f32
    %9 = vector.broadcast %cst_7 : f32 to vector<512x32xf32>
    %10 = arith.maximumf %8, %9 : vector<512x32xf32>
    %11 = arith.truncf %10 : vector<512x32xf32> to vector<512x32xbf16>
    %c0_8 = arith.constant 0 : index
    %c0_9 = arith.constant 0 : index
    %12 = vector.load %arg6[%c0_8, %c0_9] : memref<512x32xbf16, #tpu.memory_space<vmem>>, vector<512x32xbf16>
    tpu.vector_store %arg6[%c0_8, %c0_9], %11 {strides = array<i32>} : memref<512x32xbf16, #tpu.memory_space<vmem>>, vector<512x32xbf16>,
    return
  }
  func.func @transform_0(%arg0: i32, %arg1: i32) -> (i32, i32) {
    %c0_i32 = arith.constant 0 : i32
    %c0_i32_0 = arith.constant 0 : i32
    return %arg0, %c0_i32 : i32, i32
  }
  func.func @transform_1(%arg0: i32, %arg1: i32) -> (i32, i32) {
    %c0_i32 = arith.constant 0 : i32
    %c0_i32_0 = arith.constant 0 : i32
    return %c0_i32, %arg1 : i32, i32
  }
  func.func @transform_2(%arg0: i32, %arg1: i32) -> (i32, i32) {
    %c0_i32 = arith.constant 0 : i32
    %c0_i32_0 = arith.constant 0 : i32
    return %c0_i32, %arg1 : i32, i32
  }
  func.func @transform_3(%arg0: i32, %arg1: i32) -> (i32, i32) {
    %c0_i32 = arith.constant 0 : i32
    return %arg0, %arg1 : i32, i32
  }
  func.func @transform_4(%arg0: i32, %arg1: i32) -> (i32, i32) {
    %c0_i32 = arith.constant 0 : i32
    return %arg0, %arg1 : i32, i32
  }
}

</mosaic_0001>

<llo_original>
// kernel: bottleneck_forward.5
$region0: #{bottleneck_forward.5}
  #allocation0 [shape = 'u32[]', space=smem, size = 0x4, offset = 0x4, fixed_abs, tag = 'smem constant byte address 0x4 - core index']
  #allocation1 [shape = 'u32[144,128]{1,0:T(1,128)}', space=vmem, size = 0x12000, scoped, tag = 'internal scratch']
  %s0 = inlined_call_operand.vmem [shape: bf16[512,8], index: 0, kind: input, shape index: {}]
  %s1 = inlined_call_operand.vmem [shape: bf16[8,32], index: 1, kind: input, shape index: {}]
  %s2 = inlined_call_operand.vmem [shape: f32[1,32], index: 2, kind: input, shape index: {}]
  %s3 = inlined_call_operand.vmem [shape: bf16[512,32], index: 3, kind: input, shape index: {}]
  %s4 = inlined_call_operand.vmem [shape: bf16[512,32], index: 4, kind: output, shape index: {}]
  %s5 = sld [smem:[#allocation0]]
  $region26: #{bottleneck_forward.5} parent=0
    _
  %s7 = ssub.s32 1, %s5
  %s8 = scalar_select 0, %s7, %s5
  // Predicated region
  $region2: #{bottleneck_forward.5} parent=0 // pred_check
    _
  $region3: #{bottleneck_forward.5} parent=0 // pred_check_branch
    %10 = sbr.rel (0) target = $region5
  $region4: #{bottleneck_forward.5} parent=0 // pred_region
    _
  $region5: #{bottleneck_forward.5} parent=0 // pred_fallthru
    _
  // Predicated region
  $region6: #{bottleneck_forward.5} parent=0 // pred_check
    _
  $region7: #{bottleneck_forward.5} parent=0 // pred_check_branch
    %12 = sbr.rel (0) target = $region9
  $region8: #{bottleneck_forward.5} parent=0 // pred_region
    _
  $region9: #{bottleneck_forward.5} parent=0 // pred_fallthru
    _
  // Predicated region
  $region10: #{bottleneck_forward.5} parent=0 // pred_check
    _
  $region11: #{bottleneck_forward.5} parent=0 // pred_check_branch
    %14 = sbr.rel (0) target = $region13
  $region12: #{bottleneck_forward.5} parent=0 // pred_region
    _
  $region13: #{bottleneck_forward.5} parent=0 // pred_fallthru
    _
  // Predicated region
  $region14: #{bottleneck_forward.5} parent=0 // pred_check
    _
  $region15: #{bottleneck_forward.5} parent=0 // pred_check_branch
    %16 = sbr.rel (0) target = $region17
  $region16: #{bottleneck_forward.5} parent=0 // pred_region
    _
  $region17: #{bottleneck_forward.5} parent=0 // pred_fallthru
    _
  %v18 = vld [vmem:[%s0] sm:$0xf]
  %v19 = vld [vmem:[%s0 + $0x4] sm:$0xf]
  %v20 = vld [vmem:[%s0 + $0x8] sm:$0xf]
  %v21 = vld [vmem:[%s0 + $0xc] sm:$0xf]
  %v22 = vld [vmem:[%s0 + $0x10] sm:$0xf]
  %v23 = vld [vmem:[%s0 + $0x14] sm:$0xf]
  %v24 = vld [vmem:[%s0 + $0x18] sm:$0xf]
  %v25 = vld [vmem:[%s0 + $0x1c] sm:$0xf]
  %v26 = vld [vmem:[%s0 + $0x20] sm:$0xf]
  %v27 = vld [vmem:[%s0 + $0x24] sm:$0xf]
  %v28 = vld [vmem:[%s0 + $0x28] sm:$0xf]
  %v29 = vld [vmem:[%s0 + $0x2c] sm:$0xf]
  %v30 = vld [vmem:[%s0 + $0x30] sm:$0xf]
  %v31 = vld [vmem:[%s0 + $0x34] sm:$0xf]
  %v32 = vld [vmem:[%s0 + $0x38] sm:$0xf]
  %v33 = vld [vmem:[%s0 + $0x3c] sm:$0xf]
  %v34 = vld [vmem:[%s0 + $0x40] sm:$0xf]
  %v35 = vld [vmem:[%s0 + $0x44] sm:$0xf]
  %v36 = vld [vmem:[%s0 + $0x48] sm:$0xf]
  %v37 = vld [vmem:[%s0 + $0x4c] sm:$0xf]
  %v38 = vld [vmem:[%s0 + $0x50] sm:$0xf]
  %v39 = vld [vmem:[%s0 + $0x54] sm:$0xf]
  %v40 = vld [vmem:[%s0 + $0x58] sm:$0xf]
  %v41 = vld [vmem:[%s0 + $0x5c] sm:$0xf]
  %v42 = vld [vmem:[%s0 + $0x60] sm:$0xf]
  %v43 = vld [vmem:[%s0 + $0x64] sm:$0xf]
  %v44 = vld [vmem:[%s0 + $0x68] sm:$0xf]
  %v45 = vld [vmem:[%s0 + $0x6c] sm:$0xf]
  %v46 = vld [vmem:[%s0 + $0x70] sm:$0xf]
  %v47 = vld [vmem:[%s0 + $0x74] sm:$0xf]
  %v48 = vld [vmem:[%s0 + $0x78] sm:$0xf]
  %v49 = vld [vmem:[%s0 + $0x7c] sm:$0xf]
  %v50 = vld [vmem:[%s0 + $0x80] sm:$0xf]
  %v51 = vld [vmem:[%s0 + $0x84] sm:$0xf]
  %v52 = vld [vmem:[%s0 + $0x88] sm:$0xf]
  %v53 = vld [vmem:[%s0 + $0x8c] sm:$0xf]
  %v54 = vld [vmem:[%s0 + $0x90] sm:$0xf]
  %v55 = vld [vmem:[%s0 + $0x94] sm:$0xf]
  %v56 = vld [vmem:[%s0 + $0x98] sm:$0xf]
  %v57 = vld [vmem:[%s0 + $0x9c] sm:$0xf]
  %v58 = vld [vmem:[%s0 + $0xa0] sm:$0xf]
  %v59 = vld [vmem:[%s0 + $0xa4] sm:$0xf]
  %v60 = vld [vmem:[%s0 + $0xa8] sm:$0xf]
  %v61 = vld [vmem:[%s0 + $0xac] sm:$0xf]
  %v62 = vld [vmem:[%s0 + $0xb0] sm:$0xf]
  %v63 = vld [vmem:[%s0 + $0xb4] sm:$0xf]
  %v64 = vld [vmem:[%s0 + $0xb8] sm:$0xf]
  %v65 = vld [vmem:[%s0 + $0xbc] sm:$0xf]
  %v66 = vld [vmem:[%s0 + $0xc0] sm:$0xf]
  %v67 = vld [vmem:[%s0 + $0xc4] sm:$0xf]
  %v68 = vld [vmem:[%s0 + $0xc8] sm:$0xf]
  %v69 = vld [vmem:[%s0 + $0xcc] sm:$0xf]
  %v70 = vld [vmem:[%s0 + $0xd0] sm:$0xf]
  %v71 = vld [vmem:[%s0 + $0xd4] sm:$0xf]
  %v72 = vld [vmem:[%s0 + $0xd8] sm:$0xf]
  %v73 = vld [vmem:[%s0 + $0xdc] sm:$0xf]
  %v74 = vld [vmem:[%s0 + $0xe0] sm:$0xf]
  %v75 = vld [vmem:[%s0 + $0xe4] sm:$0xf]
  %v76 = vld [vmem:[%s0 + $0xe8] sm:$0xf]
  %v77 = vld [vmem:[%s0 + $0xec] sm:$0xf]
  %v78 = vld [vmem:[%s0 + $0xf0] sm:$0xf]
  %v79 = vld [vmem:[%s0 + $0xf4] sm:$0xf]
  %v80 = vld [vmem:[%s0 + $0xf8] sm:$0xf]
  %v81 = vld [vmem:[%s0 + $0xfc] sm:$0xf]
  %v82 = vld [vmem:[%s1] sm:$0xf]
  %v83 = vld [vmem:[%s2] sm:$0x1]
  %v85 = vlaneseq
  %v86 = vshrl.u32 %v85, 7
  %v87 = vsub.s32 0, %v86
  %v88 = vrot.slane %v83, %v87
  %v154 = vunpack.c.l.b16 %v18
  %v155 = vunpack.c.l.b16 %v19
  %v156 = vunpack.c.l.b16 %v20
  %v157 = vunpack.c.l.b16 %v21
  %v158 = vunpack.c.l.b16 %v22
  %v159 = vunpack.c.l.b16 %v23
  %v160 = vunpack.c.l.b16 %v24
  %v161 = vunpack.c.l.b16 %v25
  %v162 = vunpack.c.l.b16 %v26
  %v163 = vunpack.c.l.b16 %v27
  %v164 = vunpack.c.l.b16 %v28
  %v165 = vunpack.c.l.b16 %v29
  %v166 = vunpack.c.l.b16 %v30
  %v167 = vunpack.c.l.b16 %v31
  %v168 = vunpack.c.l.b16 %v32
  %v169 = vunpack.c.l.b16 %v33
  %v170 = vunpack.c.l.b16 %v34
  %v171 = vunpack.c.l.b16 %v35
  %v172 = vunpack.c.l.b16 %v36
  %v173 = vunpack.c.l.b16 %v37
  %v174 = vunpack.c.l.b16 %v38
  %v175 = vunpack.c.l.b16 %v39
  %v176 = vunpack.c.l.b16 %v40
  %v177 = vunpack.c.l.b16 %v41
  %v178 = vunpack.c.l.b16 %v42
  %v179 = vunpack.c.l.b16 %v43
  %v180 = vunpack.c.l.b16 %v44
  %v181 = vunpack.c.l.b16 %v45
  %v182 = vunpack.c.l.b16 %v46
  %v183 = vunpack.c.l.b16 %v47
  %v184 = vunpack.c.l.b16 %v48
  %v185 = vunpack.c.l.b16 %v49
  %v186 = vunpack.c.l.b16 %v50
  %v187 = vunpack.c.l.b16 %v51
  %v188 = vunpack.c.l.b16 %v52
  %v189 = vunpack.c.l.b16 %v53
  %v190 = vunpack.c.l.b16 %v54
  %v191 = vunpack.c.l.b16 %v55
  %v192 = vunpack.c.l.b16 %v56
  %v193 = vunpack.c.l.b16 %v57
  %v194 = vunpack.c.l.b16 %v58
  %v195 = vunpack.c.l.b16 %v59
  %v196 = vunpack.c.l.b16 %v60
  %v197 = vunpack.c.l.b16 %v61
  %v198 = vunpack.c.l.b16 %v62
  %v199 = vunpack.c.l.b16 %v63
  %v200 = vunpack.c.l.b16 %v64
  %v201 = vunpack.c.l.b16 %v65
  %v202 = vunpack.c.l.b16 %v66
  %v203 = vunpack.c.l.b16 %v67
  %v204 = vunpack.c.l.b16 %v68
  %v205 = vunpack.c.l.b16 %v69
  %v206 = vunpack.c.l.b16 %v70
  %v207 = vunpack.c.l.b16 %v71
  %v208 = vunpack.c.l.b16 %v72
  %v209 = vunpack.c.l.b16 %v73
  %v210 = vunpack.c.l.b16 %v74
  %v211 = vunpack.c.l.b16 %v75
  %v212 = vunpack.c.l.b16 %v76
  %v213 = vunpack.c.l.b16 %v77
  %v214 = vunpack.c.l.b16 %v78
  %v215 = vunpack.c.l.b16 %v79
  %v216 = vunpack.c.l.b16 %v80
  %v217 = vunpack.c.l.b16 %v81
  %v218 = vpack.c.b16 %v155, %v154
  %v219 = vpack.c.b16 %v157, %v156
  %v220 = vpack.c.b16 %v159, %v158
  %v221 = vpack.c.b16 %v161, %v160
  %v222 = vpack.c.b16 %v163, %v162
  %v223 = vpack.c.b16 %v165, %v164
  %v224 = vpack.c.b16 %v167, %v166
  %v225 = vpack.c.b16 %v169, %v168
  %v226 = vpack.c.b16 %v171, %v170
  %v227 = vpack.c.b16 %v173, %v172
  %v228 = vpack.c.b16 %v175, %v174
  %v229 = vpack.c.b16 %v177, %v176
  %v230 = vpack.c.b16 %v179, %v178
  %v231 = vpack.c.b16 %v181, %v180
  %v232 = vpack.c.b16 %v183, %v182
  %v233 = vpack.c.b16 %v185, %v184
  %v234 = vpack.c.b16 %v187, %v186
  %v235 = vpack.c.b16 %v189, %v188
  %v236 = vpack.c.b16 %v191, %v190
  %v237 = vpack.c.b16 %v193, %v192
  %v238 = vpack.c.b16 %v195, %v194
  %v239 = vpack.c.b16 %v197, %v196
  %v240 = vpack.c.b16 %v199, %v198
  %v241 = vpack.c.b16 %v201, %v200
  %v242 = vpack.c.b16 %v203, %v202
  %v243 = vpack.c.b16 %v205, %v204
  %v244 = vpack.c.b16 %v207, %v206
  %v245 = vpack.c.b16 %v209, %v208
  %v246 = vpack.c.b16 %v211, %v210
  %v247 = vpack.c.b16 %v213, %v212
  %v248 = vpack.c.b16 %v215, %v214
  %v249 = vpack.c.b16 %v217, %v216
  %vm250 = vcmask 64512
  %v252 = vsel %vm250, %v218, 0
  %v255 = vsel %vm250, %v219, 0
  %v258 = vsel %vm250, %v220, 0
  %v261 = vsel %vm250, %v221, 0
  %v264 = vsel %vm250, %v222, 0
  %v267 = vsel %vm250, %v223, 0
  %v270 = vsel %vm250, %v224, 0
  %v273 = vsel %vm250, %v225, 0
  %v276 = vsel %vm250, %v226, 0
  %v279 = vsel %vm250, %v227, 0
  %v282 = vsel %vm250, %v228, 0
  %v285 = vsel %vm250, %v229, 0
  %v288 = vsel %vm250, %v230, 0
  %v291 = vsel %vm250, %v231, 0
  %v294 = vsel %vm250, %v232, 0
  %v297 = vsel %vm250, %v233, 0
  %v300 = vsel %vm250, %v234, 0
  %v303 = vsel %vm250, %v235, 0
  %v306 = vsel %vm250, %v236, 0
  %v309 = vsel %vm250, %v237, 0
  %v312 = vsel %vm250, %v238, 0
  %v315 = vsel %vm250, %v239, 0
  %v318 = vsel %vm250, %v240, 0
  %v321 = vsel %vm250, %v241, 0
  %v324 = vsel %vm250, %v242, 0
  %v327 = vsel %vm250, %v243, 0
  %v330 = vsel %vm250, %v244, 0
  %v333 = vsel %vm250, %v245, 0
  %v336 = vsel %vm250, %v246, 0
  %v339 = vsel %vm250, %v247, 0
  %v342 = vsel %vm250, %v248, 0
  %v345 = vsel %vm250, %v249, 0
  %vm347 = vcmask 1043456
  %v349 = vsel %vm347, %v82, 0
  %351 = vmatprep.subr.bf16.mxu0 0
  %352 = vmatpush1.bf16.msra.mxu0 0
  %353 = vmatprep.subr.bf16.mxu0 0
  %354 = vmatpush1.bf16.msra.mxu0 0
  %355 = vmatprep.subr.bf16.mxu0 0
  %356 = vmatpush1.bf16.msra.mxu0 0
  %357 = vmatprep.subr.bf16.mxu0 0
  %358 = vmatpush1.bf16.msra.mxu0 0
  %359 = vmatprep.subr.bf16.mxu0 0
  %360 = vmatpush1.bf16.msra.mxu0 0
  %361 = vmatprep.subr.bf16.mxu0 0
  %362 = vmatpush1.bf16.msra.mxu0 0
  %363 = vmatprep.subr.bf16.mxu0 0
  %364 = vmatpush1.bf16.msra.mxu0 0
  %365 = vmatprep.subr.bf16.mxu0 0
  %366 = vmatpush1.bf16.msra.mxu0 %v349
  %367 = vmatprep.subr.bf16.mxu0 0
  %368 = vmatpush2.bf16.msra.mxu0 0
  %369 = vmatprep.subr.bf16.mxu0 0
  %370 = vmatpush2.bf16.msra.mxu0 0
  %371 = vmatprep.subr.bf16.mxu0 0
  %372 = vmatpush2.bf16.msra.mxu0 0
  %373 = vmatprep.subr.bf16.mxu0 0
  %374 = vmatpush2.bf16.msra.mxu0 0
  %375 = vmatprep.subr.bf16.mxu0 0
  %376 = vmatpush2.bf16.msra.mxu0 0
  %377 = vmatprep.subr.bf16.mxu0 0
  %378 = vmatpush2.bf16.msra.mxu0 0
  %379 = vmatprep.subr.bf16.mxu0 0
  %380 = vmatpush2.bf16.msra.mxu0 0
  %381 = vmatprep.subr.bf16.mxu0 0
  %382 = vmatpush2.bf16.msra.mxu0 0
  %383 = vmatprep.mubr.bf16.mxu0 0
  %384 = vmatmul.mubr.bf16.gmra.mxu0 %v252
  %v385 = vpop.f32.mrf.mxu0
  %v386 = vadd.f32 %v88, %v385
  %v387 = vpop.f32.mrf.mxu0
  %v388 = vpop.f32.mrf.mxu0
  %v389 = vadd.f32 %v88, %v388
  %v390 = vpop.f32.mrf.mxu0
  %391 = vmatprep.mubr.bf16.mxu0 0
  %392 = vmatmul.mubr.bf16.gmra.mxu0 %v255
  %v393 = vpop.f32.mrf.mxu0
  %v394 = vadd.f32 %v88, %v393
  %v395 = vpop.f32.mrf.mxu0
  %v396 = vpop.f32.mrf.mxu0
  %v397 = vadd.f32 %v88, %v396
  %v398 = vpop.f32.mrf.mxu0
  %399 = vmatprep.mubr.bf16.mxu0 0
  %400 = vmatmul.mubr.bf16.gmra.mxu0 %v258
  %v401 = vpop.f32.mrf.mxu0
  %v402 = vadd.f32 %v88, %v401
  %v403 = vpop.f32.mrf.mxu0
  %v404 = vpop.f32.mrf.mxu0
  %v405 = vadd.f32 %v88, %v404
  %v406 = vpop.f32.mrf.mxu0
  %407 = vmatprep.mubr.bf16.mxu0 0
  %408 = vmatmul.mubr.bf16.gmra.mxu0 %v261
  %v409 = vpop.f32.mrf.mxu0
  %v410 = vadd.f32 %v88, %v409
  %v411 = vpop.f32.mrf.mxu0
  %v412 = vpop.f32.mrf.mxu0
  %v413 = vadd.f32 %v88, %v412
  %v414 = vpop.f32.mrf.mxu0
  %415 = vmatprep.mubr.bf16.mxu0 0
  %416 = vmatmul.mubr.bf16.gmra.mxu0 %v264
  %v417 = vpop.f32.mrf.mxu0
  %v418 = vadd.f32 %v88, %v417
  %v419 = vpop.f32.mrf.mxu0
  %v420 = vpop.f32.mrf.mxu0
  %v421 = vadd.f32 %v88, %v420
  %v422 = vpop.f32.mrf.mxu0
  %423 = vmatprep.mubr.bf16.mxu0 0
  %424 = vmatmul.mubr.bf16.gmra.mxu0 %v267
  %v425 = vpop.f32.mrf.mxu0
  %v426 = vadd.f32 %v88, %v425
  %v427 = vpop.f32.mrf.mxu0
  %v428 = vpop.f32.mrf.mxu0
  %v429 = vadd.f32 %v88, %v428
  %v430 = vpop.f32.mrf.mxu0
  %431 = vmatprep.mubr.bf16.mxu0 0
  %432 = vmatmul.mubr.bf16.gmra.mxu0 %v270
  %v433 = vpop.f32.mrf.mxu0
  %v434 = vadd.f32 %v88, %v433
  %v435 = vpop.f32.mrf.mxu0
  %v436 = vpop.f32.mrf.mxu0
  %v437 = vadd.f32 %v88, %v436
  %v438 = vpop.f32.mrf.mxu0
  %439 = vmatprep.mubr.bf16.mxu0 0
  %440 = vmatmul.mubr.bf16.gmra.mxu0 %v273
  %v441 = vpop.f32.mrf.mxu0
  %v442 = vadd.f32 %v88, %v441
  %v443 = vpop.f32.mrf.mxu0
  %v444 = vpop.f32.mrf.mxu0
  %v445 = vadd.f32 %v88, %v444
  %v446 = vpop.f32.mrf.mxu0
  %447 = vmatprep.mubr.bf16.mxu0 0
  %448 = vmatmul.mubr.bf16.gmra.mxu0 %v276
  %v449 = vpop.f32.mrf.mxu0
  %v450 = vadd.f32 %v88, %v449
  %v451 = vpop.f32.mrf.mxu0
  %v452 = vpop.f32.mrf.mxu0
  %v453 = vadd.f32 %v88, %v452
  %v454 = vpop.f32.mrf.mxu0
  %455 = vmatprep.mubr.bf16.mxu0 0
  %456 = vmatmul.mubr.bf16.gmra.mxu0 %v279
  %v457 = vpop.f32.mrf.mxu0
  %v458 = vadd.f32 %v88, %v457
  %v459 = vpop.f32.mrf.mxu0
  %v460 = vpop.f32.mrf.mxu0
  %v461 = vadd.f32 %v88, %v460
  %v462 = vpop.f32.mrf.mxu0
  %463 = vmatprep.mubr.bf16.mxu0 0
  %464 = vmatmul.mubr.bf16.gmra.mxu0 %v282
  %v465 = vpop.f32.mrf.mxu0
  %v466 = vadd.f32 %v88, %v465
  %v467 = vpop.f32.mrf.mxu0
  %v468 = vpop.f32.mrf.mxu0
  %v469 = vadd.f32 %v88, %v468
  %v470 = vpop.f32.mrf.mxu0
  %471 = vmatprep.mubr.bf16.mxu0 0
  %472 = vmatmul.mubr.bf16.gmra.mxu0 %v285
  %v473 = vpop.f32.mrf.mxu0
  %v474 = vadd.f32 %v88, %v473
  %v475 = vpop.f32.mrf.mxu0
  %v476 = vpop.f32.mrf.mxu0
  %v477 = vadd.f32 %v88, %v476
  %v478 = vpop.f32.mrf.mxu0
  %479 = vmatprep.mubr.bf16.mxu0 0
  %480 = vmatmul.mubr.bf16.gmra.mxu0 %v288
  %v481 = vpop.f32.mrf.mxu0
  %v482 = vadd.f32 %v88, %v481
  %v483 = vpop.f32.mrf.mxu0
  %v484 = vpop.f32.mrf.mxu0
  %v485 = vadd.f32 %v88, %v484
  %v486 = vpop.f32.mrf.mxu0
  %487 = vmatprep.mubr.bf16.mxu0 0
  %488 = vmatmul.mubr.bf16.gmra.mxu0 %v291
  %v489 = vpop.f32.mrf.mxu0
  %v490 = vadd.f32 %v88, %v489
  %v491 = vpop.f32.mrf.mxu0
  %v492 = vpop.f32.mrf.mxu0
  %v493 = vadd.f32 %v88, %v492
  %v494 = vpop.f32.mrf.mxu0
  %495 = vmatprep.mubr.bf16.mxu0 0
  %496 = vmatmul.mubr.bf16.gmra.mxu0 %v294
  %v497 = vpop.f32.mrf.mxu0
  %v498 = vadd.f32 %v88, %v497
  %v499 = vpop.f32.mrf.mxu0
  %v500 = vpop.f32.mrf.mxu0
  %v501 = vadd.f32 %v88, %v500
  %v502 = vpop.f32.mrf.mxu0
  %503 = vmatprep.mubr.bf16.mxu0 0
  %504 = vmatmul.mubr.bf16.gmra.mxu0 %v297
  %v505 = vpop.f32.mrf.mxu0
  %v506 = vadd.f32 %v88, %v505
  %v507 = vpop.f32.mrf.mxu0
  %v508 = vpop.f32.mrf.mxu0
  %v509 = vadd.f32 %v88, %v508
  %v510 = vpop.f32.mrf.mxu0
  %511 = vmatprep.mubr.bf16.mxu0 0
  %512 = vmatmul.mubr.bf16.gmra.mxu0 %v300
  %v513 = vpop.f32.mrf.mxu0
  %v514 = vadd.f32 %v88, %v513
  %v515 = vpop.f32.mrf.mxu0
  %v516 = vpop.f32.mrf.mxu0
  %v517 = vadd.f32 %v88, %v516
  %v518 = vpop.f32.mrf.mxu0
  %519 = vmatprep.mubr.bf16.mxu0 0
  %520 = vmatmul.mubr.bf16.gmra.mxu0 %v303
  %v521 = vpop.f32.mrf.mxu0
  %v522 = vadd.f32 %v88, %v521
  %v523 = vpop.f32.mrf.mxu0
  %v524 = vpop.f32.mrf.mxu0
  %v525 = vadd.f32 %v88, %v524
  %v526 = vpop.f32.mrf.mxu0
  %527 = vmatprep.mubr.bf16.mxu0 0
  %528 = vmatmul.mubr.bf16.gmra.mxu0 %v306
  %v529 = vpop.f32.mrf.mxu0
  %v530 = vadd.f32 %v88, %v529
  %v531 = vpop.f32.mrf.mxu0
  %v532 = vpop.f32.mrf.mxu0
  %v533 = vadd.f32 %v88, %v532
  %v534 = vpop.f32.mrf.mxu0
  %535 = vmatprep.mubr.bf16.mxu0 0
  %536 = vmatmul.mubr.bf16.gmra.mxu0 %v309
  %v537 = vpop.f32.mrf.mxu0
  %v538 = vadd.f32 %v88, %v537
  %v539 = vpop.f32.mrf.mxu0
  %v540 = vpop.f32.mrf.mxu0
  %v541 = vadd.f32 %v88, %v540
  %v542 = vpop.f32.mrf.mxu0
  %543 = vmatprep.mubr.bf16.mxu0 0
  %544 = vmatmul.mubr.bf16.gmra.mxu0 %v312
  %v545 = vpop.f32.mrf.mxu0
  %v546 = vadd.f32 %v88, %v545
  %v547 = vpop.f32.mrf.mxu0
  %v548 = vpop.f32.mrf.mxu0
  %v549 = vadd.f32 %v88, %v548
  %v550 = vpop.f32.mrf.mxu0
  %551 = vmatprep.mubr.bf16.mxu0 0
  %552 = vmatmul.mubr.bf16.gmra.mxu0 %v315
  %v553 = vpop.f32.mrf.mxu0
  %v554 = vadd.f32 %v88, %v553
  %v555 = vpop.f32.mrf.mxu0
  %v556 = vpop.f32.mrf.mxu0
  %v557 = vadd.f32 %v88, %v556
  %v558 = vpop.f32.mrf.mxu0
  %559 = vmatprep.mubr.bf16.mxu0 0
  %560 = vmatmul.mubr.bf16.gmra.mxu0 %v318
  %v561 = vpop.f32.mrf.mxu0
  %v562 = vadd.f32 %v88, %v561
  %v563 = vpop.f32.mrf.mxu0
  %v564 = vpop.f32.mrf.mxu0
  %v565 = vadd.f32 %v88, %v564
  %v566 = vpop.f32.mrf.mxu0
  %567 = vmatprep.mubr.bf16.mxu0 0
  %568 = vmatmul.mubr.bf16.gmra.mxu0 %v321
  %v569 = vpop.f32.mrf.mxu0
  %v570 = vadd.f32 %v88, %v569
  %v571 = vpop.f32.mrf.mxu0
  %v572 = vpop.f32.mrf.mxu0
  %v573 = vadd.f32 %v88, %v572
  %v574 = vpop.f32.mrf.mxu0
  %575 = vmatprep.mubr.bf16.mxu0 0
  %576 = vmatmul.mubr.bf16.gmra.mxu0 %v324
  %v577 = vpop.f32.mrf.mxu0
  %v578 = vadd.f32 %v88, %v577
  %v579 = vpop.f32.mrf.mxu0
  %v580 = vpop.f32.mrf.mxu0
  %v581 = vadd.f32 %v88, %v580
  %v582 = vpop.f32.mrf.mxu0
  %583 = vmatprep.mubr.bf16.mxu0 0
  %584 = vmatmul.mubr.bf16.gmra.mxu0 %v327
  %v585 = vpop.f32.mrf.mxu0
  %v586 = vadd.f32 %v88, %v585
  %v587 = vpop.f32.mrf.mxu0
  %v588 = vpop.f32.mrf.mxu0
  %v589 = vadd.f32 %v88, %v588
  %v590 = vpop.f32.mrf.mxu0
  %591 = vmatprep.mubr.bf16.mxu0 0
  %592 = vmatmul.mubr.bf16.gmra.mxu0 %v330
  %v593 = vpop.f32.mrf.mxu0
  %v594 = vadd.f32 %v88, %v593
  %v595 = vpop.f32.mrf.mxu0
  %v596 = vpop.f32.mrf.mxu0
  %v597 = vadd.f32 %v88, %v596
  %v598 = vpop.f32.mrf.mxu0
  %599 = vmatprep.mubr.bf16.mxu0 0
  %600 = vmatmul.mubr.bf16.gmra.mxu0 %v333
  %v601 = vpop.f32.mrf.mxu0
  %v602 = vadd.f32 %v88, %v601
  %v603 = vpop.f32.mrf.mxu0
  %v604 = vpop.f32.mrf.mxu0
  %v605 = vadd.f32 %v88, %v604
  %v606 = vpop.f32.mrf.mxu0
  %607 = vmatprep.mubr.bf16.mxu0 0
  %608 = vmatmul.mubr.bf16.gmra.mxu0 %v336
  %v609 = vpop.f32.mrf.mxu0
  %v610 = vadd.f32 %v88, %v609
  %v611 = vpop.f32.mrf.mxu0
  %v612 = vpop.f32.mrf.mxu0
  %v613 = vadd.f32 %v88, %v612
  %v614 = vpop.f32.mrf.mxu0
  %615 = vmatprep.mubr.bf16.mxu0 0
  %616 = vmatmul.mubr.bf16.gmra.mxu0 %v339
  %v617 = vpop.f32.mrf.mxu0
  %v618 = vadd.f32 %v88, %v617
  %v619 = vpop.f32.mrf.mxu0
  %v620 = vpop.f32.mrf.mxu0
  %v621 = vadd.f32 %v88, %v620
  %v622 = vpop.f32.mrf.mxu0
  %623 = vmatprep.mubr.bf16.mxu0 0
  %624 = vmatmul.mubr.bf16.gmra.mxu0 %v342
  %v625 = vpop.f32.mrf.mxu0
  %v626 = vadd.f32 %v88, %v625
  %v627 = vpop.f32.mrf.mxu0
  %v628 = vpop.f32.mrf.mxu0
  %v629 = vadd.f32 %v88, %v628
  %v630 = vpop.f32.mrf.mxu0
  %631 = vmatprep.mubr.bf16.mxu0 0
  %632 = vmatmul.mubr.bf16.gmra.mxu0 %v345
  %v633 = vpop.f32.mrf.mxu0
  %v634 = vadd.f32 %v88, %v633
  %v635 = vpop.f32.mrf.mxu0
  %v636 = vpop.f32.mrf.mxu0
  %v637 = vadd.f32 %v88, %v636
  %v638 = vpop.f32.mrf.mxu0
  %639 = vdwg.mxu0
  %v640 = vld [vmem:[%s3] sm:$0xf]
  %v641 = vld [vmem:[%s3 + $0x4] sm:$0xf]
  %v642 = vld [vmem:[%s3 + $0x8] sm:$0xf]
  %v643 = vld [vmem:[%s3 + $0xc] sm:$0xf]
  %v644 = vld [vmem:[%s3 + $0x10] sm:$0xf]
  %v645 = vld [vmem:[%s3 + $0x14] sm:$0xf]
  %v646 = vld [vmem:[%s3 + $0x18] sm:$0xf]
  %v647 = vld [vmem:[%s3 + $0x1c] sm:$0xf]
  %v648 = vld [vmem:[%s3 + $0x20] sm:$0xf]
  %v649 = vld [vmem:[%s3 + $0x24] sm:$0xf]
  %v650 = vld [vmem:[%s3 + $0x28] sm:$0xf]
  %v651 = vld [vmem:[%s3 + $0x2c] sm:$0xf]
  %v652 = vld [vmem:[%s3 + $0x30] sm:$0xf]
  %v653 = vld [vmem:[%s3 + $0x34] sm:$0xf]
  %v654 = vld [vmem:[%s3 + $0x38] sm:$0xf]
  %v655 = vld [vmem:[%s3 + $0x3c] sm:$0xf]
  %v656 = vld [vmem:[%s3 + $0x40] sm:$0xf]
  %v657 = vld [vmem:[%s3 + $0x44] sm:$0xf]
  %v658 = vld [vmem:[%s3 + $0x48] sm:$0xf]
  %v659 = vld [vmem:[%s3 + $0x4c] sm:$0xf]
  %v660 = vld [vmem:[%s3 + $0x50] sm:$0xf]
  %v661 = vld [vmem:[%s3 + $0x54] sm:$0xf]
  %v662 = vld [vmem:[%s3 + $0x58] sm:$0xf]
  %v663 = vld [vmem:[%s3 + $0x5c] sm:$0xf]
  %v664 = vld [vmem:[%s3 + $0x60] sm:$0xf]
  %v665 = vld [vmem:[%s3 + $0x64] sm:$0xf]
  %v666 = vld [vmem:[%s3 + $0x68] sm:$0xf]
  %v667 = vld [vmem:[%s3 + $0x6c] sm:$0xf]
  %v668 = vld [vmem:[%s3 + $0x70] sm:$0xf]
  %v669 = vld [vmem:[%s3 + $0x74] sm:$0xf]
  %v670 = vld [vmem:[%s3 + $0x78] sm:$0xf]
  %v671 = vld [vmem:[%s3 + $0x7c] sm:$0xf]
  %v672 = vld [vmem:[%s3 + $0x80] sm:$0xf]
  %v673 = vld [vmem:[%s3 + $0x84] sm:$0xf]
  %v674 = vld [vmem:[%s3 + $0x88] sm:$0xf]
  %v675 = vld [vmem:[%s3 + $0x8c] sm:$0xf]
  %v676 = vld [vmem:[%s3 + $0x90] sm:$0xf]
  %v677 = vld [vmem:[%s3 + $0x94] sm:$0xf]
  %v678 = vld [vmem:[%s3 + $0x98] sm:$0xf]
  %v679 = vld [vmem:[%s3 + $0x9c] sm:$0xf]
  %v680 = vld [vmem:[%s3 + $0xa0] sm:$0xf]
  %v681 = vld [vmem:[%s3 + $0xa4] sm:$0xf]
  %v682 = vld [vmem:[%s3 + $0xa8] sm:$0xf]
  %v683 = vld [vmem:[%s3 + $0xac] sm:$0xf]
  %v684 = vld [vmem:[%s3 + $0xb0] sm:$0xf]
  %v685 = vld [vmem:[%s3 + $0xb4] sm:$0xf]
  %v686 = vld [vmem:[%s3 + $0xb8] sm:$0xf]
  %v687 = vld [vmem:[%s3 + $0xbc] sm:$0xf]
  %v688 = vld [vmem:[%s3 + $0xc0] sm:$0xf]
  %v689 = vld [vmem:[%s3 + $0xc4] sm:$0xf]
  %v690 = vld [vmem:[%s3 + $0xc8] sm:$0xf]
  %v691 = vld [vmem:[%s3 + $0xcc] sm:$0xf]
  %v692 = vld [vmem:[%s3 + $0xd0] sm:$0xf]
  %v693 = vld [vmem:[%s3 + $0xd4] sm:$0xf]
  %v694 = vld [vmem:[%s3 + $0xd8] sm:$0xf]
  %v695 = vld [vmem:[%s3 + $0xdc] sm:$0xf]
  %v696 = vld [vmem:[%s3 + $0xe0] sm:$0xf]
  %v697 = vld [vmem:[%s3 + $0xe4] sm:$0xf]
  %v698 = vld [vmem:[%s3 + $0xe8] sm:$0xf]
  %v699 = vld [vmem:[%s3 + $0xec] sm:$0xf]
  %v700 = vld [vmem:[%s3 + $0xf0] sm:$0xf]
  %v701 = vld [vmem:[%s3 + $0xf4] sm:$0xf]
  %v702 = vld [vmem:[%s3 + $0xf8] sm:$0xf]
  %v703 = vld [vmem:[%s3 + $0xfc] sm:$0xf]
  %v704 = vunpack.c.l.bf16 %v640
  %v705 = vunpack.c.l.bf16 %v641
  %v706 = vunpack.c.l.bf16 %v642
  %v707 = vunpack.c.l.bf16 %v643
  %v708 = vunpack.c.l.bf16 %v644
  %v709 = vunpack.c.l.bf16 %v645
  %v710 = vunpack.c.l.bf16 %v646
  %v711 = vunpack.c.l.bf16 %v647
  %v712 = vunpack.c.l.bf16 %v648
  %v713 = vunpack.c.l.bf16 %v649
  %v714 = vunpack.c.l.bf16 %v650
  %v715 = vunpack.c.l.bf16 %v651
  %v716 = vunpack.c.l.bf16 %v652
  %v717 = vunpack.c.l.bf16 %v653
  %v718 = vunpack.c.l.bf16 %v654
  %v719 = vunpack.c.l.bf16 %v655
  %v720 = vunpack.c.l.bf16 %v656
  %v721 = vunpack.c.l.bf16 %v657
  %v722 = vunpack.c.l.bf16 %v658
  %v723 = vunpack.c.l.bf16 %v659
  %v724 = vunpack.c.l.bf16 %v660
  %v725 = vunpack.c.l.bf16 %v661
  %v726 = vunpack.c.l.bf16 %v662
  %v727 = vunpack.c.l.bf16 %v663
  %v728 = vunpack.c.l.bf16 %v664
  %v729 = vunpack.c.l.bf16 %v665
  %v730 = vunpack.c.l.bf16 %v666
  %v731 = vunpack.c.l.bf16 %v667
  %v732 = vunpack.c.l.bf16 %v668
  %v733 = vunpack.c.l.bf16 %v669
  %v734 = vunpack.c.l.bf16 %v670
  %v735 = vunpack.c.l.bf16 %v671
  %v736 = vunpack.c.l.bf16 %v672
  %v737 = vunpack.c.l.bf16 %v673
  %v738 = vunpack.c.l.bf16 %v674
  %v739 = vunpack.c.l.bf16 %v675
  %v740 = vunpack.c.l.bf16 %v676
  %v741 = vunpack.c.l.bf16 %v677
  %v742 = vunpack.c.l.bf16 %v678
  %v743 = vunpack.c.l.bf16 %v679
  %v744 = vunpack.c.l.bf16 %v680
  %v745 = vunpack.c.l.bf16 %v681
  %v746 = vunpack.c.l.bf16 %v682
  %v747 = vunpack.c.l.bf16 %v683
  %v748 = vunpack.c.l.bf16 %v684
  %v749 = vunpack.c.l.bf16 %v685
  %v750 = vunpack.c.l.bf16 %v686
  %v751 = vunpack.c.l.bf16 %v687
  %v752 = vunpack.c.l.bf16 %v688
  %v753 = vunpack.c.l.bf16 %v689
  %v754 = vunpack.c.l.bf16 %v690
  %v755 = vunpack.c.l.bf16 %v691
  %v756 = vunpack.c.l.bf16 %v692
  %v757 = vunpack.c.l.bf16 %v693
  %v758 = vunpack.c.l.bf16 %v694
  %v759 = vunpack.c.l.bf16 %v695
  %v760 = vunpack.c.l.bf16 %v696
  %v761 = vunpack.c.l.bf16 %v697
  %v762 = vunpack.c.l.bf16 %v698
  %v763 = vunpack.c.l.bf16 %v699
  %v764 = vunpack.c.l.bf16 %v700
  %v765 = vunpack.c.l.bf16 %v701
  %v766 = vunpack.c.l.bf16 %v702
  %v767 = vunpack.c.l.bf16 %v703
  %v768 = vadd.f32 %v386, %v704
  %v769 = vadd.f32 %v389, %v705
  %v770 = vadd.f32 %v394, %v706
  %v771 = vadd.f32 %v397, %v707
  %v772 = vadd.f32 %v402, %v708
  %v773 = vadd.f32 %v405, %v709
  %v774 = vadd.f32 %v410, %v710
  %v775 = vadd.f32 %v413, %v711
  %v776 = vadd.f32 %v418, %v712
  %v777 = vadd.f32 %v421, %v713
  %v778 = vadd.f32 %v426, %v714
  %v779 = vadd.f32 %v429, %v715
  %v780 = vadd.f32 %v434, %v716
  %v781 = vadd.f32 %v437, %v717
  %v782 = vadd.f32 %v442, %v718
  %v783 = vadd.f32 %v445, %v719
  %v784 = vadd.f32 %v450, %v720
  %v785 = vadd.f32 %v453, %v721
  %v786 = vadd.f32 %v458, %v722
  %v787 = vadd.f32 %v461, %v723
  %v788 = vadd.f32 %v466, %v724
  %v789 = vadd.f32 %v469, %v725
  %v790 = vadd.f32 %v474, %v726
  %v791 = vadd.f32 %v477, %v727
  %v792 = vadd.f32 %v482, %v728
  %v793 = vadd.f32 %v485, %v729
  %v794 = vadd.f32 %v490, %v730
  %v795 = vadd.f32 %v493, %v731
  %v796 = vadd.f32 %v498, %v732
  %v797 = vadd.f32 %v501, %v733
  %v798 = vadd.f32 %v506, %v734
  %v799 = vadd.f32 %v509, %v735
  %v800 = vadd.f32 %v514, %v736
  %v801 = vadd.f32 %v517, %v737
  %v802 = vadd.f32 %v522, %v738
  %v803 = vadd.f32 %v525, %v739
  %v804 = vadd.f32 %v530, %v740
  %v805 = vadd.f32 %v533, %v741
  %v806 = vadd.f32 %v538, %v742
  %v807 = vadd.f32 %v541, %v743
  %v808 = vadd.f32 %v546, %v744
  %v809 = vadd.f32 %v549, %v745
  %v810 = vadd.f32 %v554, %v746
  %v811 = vadd.f32 %v557, %v747
  %v812 = vadd.f32 %v562, %v748
  %v813 = vadd.f32 %v565, %v749
  %v814 = vadd.f32 %v570, %v750
  %v815 = vadd.f32 %v573, %v751
  %v816 = vadd.f32 %v578, %v752
  %v817 = vadd.f32 %v581, %v753
  %v818 = vadd.f32 %v586, %v754
  %v819 = vadd.f32 %v589, %v755
  %v820 = vadd.f32 %v594, %v756
  %v821 = vadd.f32 %v597, %v757
  %v822 = vadd.f32 %v602, %v758
  %v823 = vadd.f32 %v605, %v759
  %v824 = vadd.f32 %v610, %v760
  %v825 = vadd.f32 %v613, %v761
  %v826 = vadd.f32 %v618, %v762
  %v827 = vadd.f32 %v621, %v763
  %v828 = vadd.f32 %v626, %v764
  %v829 = vadd.f32 %v629, %v765
  %v830 = vadd.f32 %v634, %v766
  %v831 = vadd.f32 %v637, %v767
  %v832 = vmax.f32 %v768, 0.0
  %v833 = vmax.f32 %v769, 0.0
  %v834 = vmax.f32 %v770, 0.0
  %v835 = vmax.f32 %v771, 0.0
  %v836 = vmax.f32 %v772, 0.0
  %v837 = vmax.f32 %v773, 0.0
  %v838 = vmax.f32 %v774, 0.0
  %v839 = vmax.f32 %v775, 0.0
  %v840 = vmax.f32 %v776, 0.0
  %v841 = vmax.f32 %v777, 0.0
  %v842 = vmax.f32 %v778, 0.0
  %v843 = vmax.f32 %v779, 0.0
  %v844 = vmax.f32 %v780, 0.0
  %v845 = vmax.f32 %v781, 0.0
  %v846 = vmax.f32 %v782, 0.0
  %v847 = vmax.f32 %v783, 0.0
  %v848 = vmax.f32 %v784, 0.0
  %v849 = vmax.f32 %v785, 0.0
  %v850 = vmax.f32 %v786, 0.0
  %v851 = vmax.f32 %v787, 0.0
  %v852 = vmax.f32 %v788, 0.0
  %v853 = vmax.f32 %v789, 0.0
  %v854 = vmax.f32 %v790, 0.0
  %v855 = vmax.f32 %v791, 0.0
  %v856 = vmax.f32 %v792, 0.0
  %v857 = vmax.f32 %v793, 0.0
  %v858 = vmax.f32 %v794, 0.0
  %v859 = vmax.f32 %v795, 0.0
  %v860 = vmax.f32 %v796, 0.0
  %v861 = vmax.f32 %v797, 0.0
  %v862 = vmax.f32 %v798, 0.0
  %v863 = vmax.f32 %v799, 0.0
  %v864 = vmax.f32 %v800, 0.0
  %v865 = vmax.f32 %v801, 0.0
  %v866 = vmax.f32 %v802, 0.0
  %v867 = vmax.f32 %v803, 0.0
  %v868 = vmax.f32 %v804, 0.0
  %v869 = vmax.f32 %v805, 0.0
  %v870 = vmax.f32 %v806, 0.0
  %v871 = vmax.f32 %v807, 0.0
  %v872 = vmax.f32 %v808, 0.0
  %v873 = vmax.f32 %v809, 0.0
  %v874 = vmax.f32 %v810, 0.0
  %v875 = vmax.f32 %v811, 0.0
  %v876 = vmax.f32 %v812, 0.0
  %v877 = vmax.f32 %v813, 0.0
  %v878 = vmax.f32 %v814, 0.0
  %v879 = vmax.f32 %v815, 0.0
  %v880 = vmax.f32 %v816, 0.0
  %v881 = vmax.f32 %v817, 0.0
  %v882 = vmax.f32 %v818, 0.0
  %v883 = vmax.f32 %v819, 0.0
  %v884 = vmax.f32 %v820, 0.0
  %v885 = vmax.f32 %v821, 0.0
  %v886 = vmax.f32 %v822, 0.0
  %v887 = vmax.f32 %v823, 0.0
  %v888 = vmax.f32 %v824, 0.0
  %v889 = vmax.f32 %v825, 0.0
  %v890 = vmax.f32 %v826, 0.0
  %v891 = vmax.f32 %v827, 0.0
  %v892 = vmax.f32 %v828, 0.0
  %v893 = vmax.f32 %v829, 0.0
  %v894 = vmax.f32 %v830, 0.0
  %v895 = vmax.f32 %v831, 0.0
  %v896 = vpack.c.bf16 %v833, %v832
  %v897 = vpack.c.bf16 %v835, %v834
  %v898 = vpack.c.bf16 %v837, %v836
  %v899 = vpack.c.bf16 %v839, %v838
  %v900 = vpack.c.bf16 %v841, %v840
  %v901 = vpack.c.bf16 %v843, %v842
  %v902 = vpack.c.bf16 %v845, %v844
  %v903 = vpack.c.bf16 %v847, %v846
  %v904 = vpack.c.bf16 %v849, %v848
  %v905 = vpack.c.bf16 %v851, %v850
  %v906 = vpack.c.bf16 %v853, %v852
  %v907 = vpack.c.bf16 %v855, %v854
  %v908 = vpack.c.bf16 %v857, %v856
  %v909 = vpack.c.bf16 %v859, %v858
  %v910 = vpack.c.bf16 %v861, %v860
  %v911 = vpack.c.bf16 %v863, %v862
  %v912 = vpack.c.bf16 %v865, %v864
  %v913 = vpack.c.bf16 %v867, %v866
  %v914 = vpack.c.bf16 %v869, %v868
  %v915 = vpack.c.bf16 %v871, %v870
  %v916 = vpack.c.bf16 %v873, %v872
  %v917 = vpack.c.bf16 %v875, %v874
  %v918 = vpack.c.bf16 %v877, %v876
  %v919 = vpack.c.bf16 %v879, %v878
  %v920 = vpack.c.bf16 %v881, %v880
  %v921 = vpack.c.bf16 %v883, %v882
  %v922 = vpack.c.bf16 %v885, %v884
  %v923 = vpack.c.bf16 %v887, %v886
  %v924 = vpack.c.bf16 %v889, %v888
  %v925 = vpack.c.bf16 %v891, %v890
  %v926 = vpack.c.bf16 %v893, %v892
  %v927 = vpack.c.bf16 %v895, %v894
  %v960 = vunpack.c.l.b16 %v896
  %v961 = vunpack.c.h.b16 %v896
  %v962 = vunpack.c.l.b16 %v897
  %v963 = vunpack.c.h.b16 %v897
  %v964 = vunpack.c.l.b16 %v898
  %v965 = vunpack.c.h.b16 %v898
  %v966 = vunpack.c.l.b16 %v899
  %v967 = vunpack.c.h.b16 %v899
  %v968 = vunpack.c.l.b16 %v900
  %v969 = vunpack.c.h.b16 %v900
  %v970 = vunpack.c.l.b16 %v901
  %v971 = vunpack.c.h.b16 %v901
  %v972 = vunpack.c.l.b16 %v902
  %v973 = vunpack.c.h.b16 %v902
  %v974 = vunpack.c.l.b16 %v903
  %v975 = vunpack.c.h.b16 %v903
  %v976 = vunpack.c.l.b16 %v904
  %v977 = vunpack.c.h.b16 %v904
  %v978 = vunpack.c.l.b16 %v905
  %v979 = vunpack.c.h.b16 %v905
  %v980 = vunpack.c.l.b16 %v906
  %v981 = vunpack.c.h.b16 %v906
  %v982 = vunpack.c.l.b16 %v907
  %v983 = vunpack.c.h.b16 %v907
  %v984 = vunpack.c.l.b16 %v908
  %v985 = vunpack.c.h.b16 %v908
  %v986 = vunpack.c.l.b16 %v909
  %v987 = vunpack.c.h.b16 %v909
  %v988 = vunpack.c.l.b16 %v910
  %v989 = vunpack.c.h.b16 %v910
  %v990 = vunpack.c.l.b16 %v911
  %v991 = vunpack.c.h.b16 %v911
  %v992 = vunpack.c.l.b16 %v912
  %v993 = vunpack.c.h.b16 %v912
  %v994 = vunpack.c.l.b16 %v913
  %v995 = vunpack.c.h.b16 %v913
  %v996 = vunpack.c.l.b16 %v914
  %v997 = vunpack.c.h.b16 %v914
  %v998 = vunpack.c.l.b16 %v915
  %v999 = vunpack.c.h.b16 %v915
  %v1000 = vunpack.c.l.b16 %v916
  %v1001 = vunpack.c.h.b16 %v916
  %v1002 = vunpack.c.l.b16 %v917
  %v1003 = vunpack.c.h.b16 %v917
  %v1004 = vunpack.c.l.b16 %v918
  %v1005 = vunpack.c.h.b16 %v918
  %v1006 = vunpack.c.l.b16 %v919
  %v1007 = vunpack.c.h.b16 %v919
  %v1008 = vunpack.c.l.b16 %v920
  %v1009 = vunpack.c.h.b16 %v920
  %v1010 = vunpack.c.l.b16 %v921
  %v1011 = vunpack.c.h.b16 %v921
  %v1012 = vunpack.c.l.b16 %v922
  %v1013 = vunpack.c.h.b16 %v922
  %v1014 = vunpack.c.l.b16 %v923
  %v1015 = vunpack.c.h.b16 %v923
  %v1016 = vunpack.c.l.b16 %v924
  %v1017 = vunpack.c.h.b16 %v924
  %v1018 = vunpack.c.l.b16 %v925
  %v1019 = vunpack.c.h.b16 %v925
  %v1020 = vunpack.c.l.b16 %v926
  %v1021 = vunpack.c.h.b16 %v926
  %v1022 = vunpack.c.l.b16 %v927
  %v1023 = vunpack.c.h.b16 %v927
  %v1024 = vpack.c.b16 %v960, %v960
  %v1025 = vpack.c.b16 %v961, %v961
  %v1026 = vpack.c.b16 %v962, %v962
  %v1027 = vpack.c.b16 %v963, %v963
  %v1028 = vpack.c.b16 %v964, %v964
  %v1029 = vpack.c.b16 %v965, %v965
  %v1030 = vpack.c.b16 %v966, %v966
  %v1031 = vpack.c.b16 %v967, %v967
  %v1032 = vpack.c.b16 %v968, %v968
  %v1033 = vpack.c.b16 %v969, %v969
  %v1034 = vpack.c.b16 %v970, %v970
  %v1035 = vpack.c.b16 %v971, %v971
  %v1036 = vpack.c.b16 %v972, %v972
  %v1037 = vpack.c.b16 %v973, %v973
  %v1038 = vpack.c.b16 %v974, %v974
  %v1039 = vpack.c.b16 %v975, %v975
  %v1040 = vpack.c.b16 %v976, %v976
  %v1041 = vpack.c.b16 %v977, %v977
  %v1042 = vpack.c.b16 %v978, %v978
  %v1043 = vpack.c.b16 %v979, %v979
  %v1044 = vpack.c.b16 %v980, %v980
  %v1045 = vpack.c.b16 %v981, %v981
  %v1046 = vpack.c.b16 %v982, %v982
  %v1047 = vpack.c.b16 %v983, %v983
  %v1048 = vpack.c.b16 %v984, %v984
  %v1049 = vpack.c.b16 %v985, %v985
  %v1050 = vpack.c.b16 %v986, %v986
  %v1051 = vpack.c.b16 %v987, %v987
  %v1052 = vpack.c.b16 %v988, %v988
  %v1053 = vpack.c.b16 %v989, %v989
  %v1054 = vpack.c.b16 %v990, %v990
  %v1055 = vpack.c.b16 %v991, %v991
  %v1056 = vpack.c.b16 %v992, %v992
  %v1057 = vpack.c.b16 %v993, %v993
  %v1058 = vpack.c.b16 %v994, %v994
  %v1059 = vpack.c.b16 %v995, %v995
  %v1060 = vpack.c.b16 %v996, %v996
  %v1061 = vpack.c.b16 %v997, %v997
  %v1062 = vpack.c.b16 %v998, %v998
  %v1063 = vpack.c.b16 %v999, %v999
  %v1064 = vpack.c.b16 %v1000, %v1000
  %v1065 = vpack.c.b16 %v1001, %v1001
  %v1066 = vpack.c.b16 %v1002, %v1002
  %v1067 = vpack.c.b16 %v1003, %v1003
  %v1068 = vpack.c.b16 %v1004, %v1004
  %v1069 = vpack.c.b16 %v1005, %v1005
  %v1070 = vpack.c.b16 %v1006, %v1006
  %v1071 = vpack.c.b16 %v1007, %v1007
  %v1072 = vpack.c.b16 %v1008, %v1008
  %v1073 = vpack.c.b16 %v1009, %v1009
  %v1074 = vpack.c.b16 %v1010, %v1010
  %v1075 = vpack.c.b16 %v1011, %v1011
  %v1076 = vpack.c.b16 %v1012, %v1012
  %v1077 = vpack.c.b16 %v1013, %v1013
  %v1078 = vpack.c.b16 %v1014, %v1014
  %v1079 = vpack.c.b16 %v1015, %v1015
  %v1080 = vpack.c.b16 %v1016, %v1016
  %v1081 = vpack.c.b16 %v1017, %v1017
  %v1082 = vpack.c.b16 %v1018, %v1018
  %v1083 = vpack.c.b16 %v1019, %v1019
  %v1084 = vpack.c.b16 %v1020, %v1020
  %v1085 = vpack.c.b16 %v1021, %v1021
  %v1086 = vpack.c.b16 %v1022, %v1022
  %v1087 = vpack.c.b16 %v1023, %v1023
  %vm1152 = vcmask 257024
  %1153 = vst.msk [vmem:[%s4] sm:$0xf] %vm1152, %v1024
  %1154 = vst.msk [vmem:[%s4 + $0x4] sm:$0xf] %vm1152, %v1025
  %1155 = vst.msk [vmem:[%s4 + $0x8] sm:$0xf] %vm1152, %v1026
  %1156 = vst.msk [vmem:[%s4 + $0xc] sm:$0xf] %vm1152, %v1027
  %1157 = vst.msk [vmem:[%s4 + $0x10] sm:$0xf] %vm1152, %v1028
  %1158 = vst.msk [vmem:[%s4 + $0x14] sm:$0xf] %vm1152, %v1029
  %1159 = vst.msk [vmem:[%s4 + $0x18] sm:$0xf] %vm1152, %v1030
  %1160 = vst.msk [vmem:[%s4 + $0x1c] sm:$0xf] %vm1152, %v1031
  %1161 = vst.msk [vmem:[%s4 + $0x20] sm:$0xf] %vm1152, %v1032
  %1162 = vst.msk [vmem:[%s4 + $0x24] sm:$0xf] %vm1152, %v1033
  %1163 = vst.msk [vmem:[%s4 + $0x28] sm:$0xf] %vm1152, %v1034
  %1164 = vst.msk [vmem:[%s4 + $0x2c] sm:$0xf] %vm1152, %v1035
  %1165 = vst.msk [vmem:[%s4 + $0x30] sm:$0xf] %vm1152, %v1036
  %1166 = vst.msk [vmem:[%s4 + $0x34] sm:$0xf] %vm1152, %v1037
  %1167 = vst.msk [vmem:[%s4 + $0x38] sm:$0xf] %vm1152, %v1038
  %1168 = vst.msk [vmem:[%s4 + $0x3c] sm:$0xf] %vm1152, %v1039
  %1169 = vst.msk [vmem:[%s4 + $0x40] sm:$0xf] %vm1152, %v1040
  %1170 = vst.msk [vmem:[%s4 + $0x44] sm:$0xf] %vm1152, %v1041
  %1171 = vst.msk [vmem:[%s4 + $0x48] sm:$0xf] %vm1152, %v1042
  %1172 = vst.msk [vmem:[%s4 + $0x4c] sm:$0xf] %vm1152, %v1043
  %1173 = vst.msk [vmem:[%s4 + $0x50] sm:$0xf] %vm1152, %v1044
  %1174 = vst.msk [vmem:[%s4 + $0x54] sm:$0xf] %vm1152, %v1045
  %1175 = vst.msk [vmem:[%s4 + $0x58] sm:$0xf] %vm1152, %v1046
  %1176 = vst.msk [vmem:[%s4 + $0x5c] sm:$0xf] %vm1152, %v1047
  %1177 = vst.msk [vmem:[%s4 + $0x60] sm:$0xf] %vm1152, %v1048
  %1178 = vst.msk [vmem:[%s4 + $0x64] sm:$0xf] %vm1152, %v1049
  %1179 = vst.msk [vmem:[%s4 + $0x68] sm:$0xf] %vm1152, %v1050
  %1180 = vst.msk [vmem:[%s4 + $0x6c] sm:$0xf] %vm1152, %v1051
  %1181 = vst.msk [vmem:[%s4 + $0x70] sm:$0xf] %vm1152, %v1052
  %1182 = vst.msk [vmem:[%s4 + $0x74] sm:$0xf] %vm1152, %v1053
  %1183 = vst.msk [vmem:[%s4 + $0x78] sm:$0xf] %vm1152, %v1054
  %1184 = vst.msk [vmem:[%s4 + $0x7c] sm:$0xf] %vm1152, %v1055
  %1185 = vst.msk [vmem:[%s4 + $0x80] sm:$0xf] %vm1152, %v1056
  %1186 = vst.msk [vmem:[%s4 + $0x84] sm:$0xf] %vm1152, %v1057
  %1187 = vst.msk [vmem:[%s4 + $0x88] sm:$0xf] %vm1152, %v1058
  %1188 = vst.msk [vmem:[%s4 + $0x8c] sm:$0xf] %vm1152, %v1059
  %1189 = vst.msk [vmem:[%s4 + $0x90] sm:$0xf] %vm1152, %v1060
  %1190 = vst.msk [vmem:[%s4 + $0x94] sm:$0xf] %vm1152, %v1061
  %1191 = vst.msk [vmem:[%s4 + $0x98] sm:$0xf] %vm1152, %v1062
  %1192 = vst.msk [vmem:[%s4 + $0x9c] sm:$0xf] %vm1152, %v1063
  %1193 = vst.msk [vmem:[%s4 + $0xa0] sm:$0xf] %vm1152, %v1064
  %1194 = vst.msk [vmem:[%s4 + $0xa4] sm:$0xf] %vm1152, %v1065
  %1195 = vst.msk [vmem:[%s4 + $0xa8] sm:$0xf] %vm1152, %v1066
  %1196 = vst.msk [vmem:[%s4 + $0xac] sm:$0xf] %vm1152, %v1067
  %1197 = vst.msk [vmem:[%s4 + $0xb0] sm:$0xf] %vm1152, %v1068
  %1198 = vst.msk [vmem:[%s4 + $0xb4] sm:$0xf] %vm1152, %v1069
  %1199 = vst.msk [vmem:[%s4 + $0xb8] sm:$0xf] %vm1152, %v1070
  %1200 = vst.msk [vmem:[%s4 + $0xbc] sm:$0xf] %vm1152, %v1071
  %1201 = vst.msk [vmem:[%s4 + $0xc0] sm:$0xf] %vm1152, %v1072
  %1202 = vst.msk [vmem:[%s4 + $0xc4] sm:$0xf] %vm1152, %v1073
  %1203 = vst.msk [vmem:[%s4 + $0xc8] sm:$0xf] %vm1152, %v1074
  %1204 = vst.msk [vmem:[%s4 + $0xcc] sm:$0xf] %vm1152, %v1075
  %1205 = vst.msk [vmem:[%s4 + $0xd0] sm:$0xf] %vm1152, %v1076
  %1206 = vst.msk [vmem:[%s4 + $0xd4] sm:$0xf] %vm1152, %v1077
  %1207 = vst.msk [vmem:[%s4 + $0xd8] sm:$0xf] %vm1152, %v1078
  %1208 = vst.msk [vmem:[%s4 + $0xdc] sm:$0xf] %vm1152, %v1079
  %1209 = vst.msk [vmem:[%s4 + $0xe0] sm:$0xf] %vm1152, %v1080
  %1210 = vst.msk [vmem:[%s4 + $0xe4] sm:$0xf] %vm1152, %v1081
  %1211 = vst.msk [vmem:[%s4 + $0xe8] sm:$0xf] %vm1152, %v1082
  %1212 = vst.msk [vmem:[%s4 + $0xec] sm:$0xf] %vm1152, %v1083
  %1213 = vst.msk [vmem:[%s4 + $0xf0] sm:$0xf] %vm1152, %v1084
  %1214 = vst.msk [vmem:[%s4 + $0xf4] sm:$0xf] %vm1152, %v1085
  %1215 = vst.msk [vmem:[%s4 + $0xf8] sm:$0xf] %vm1152, %v1086
  %1216 = vst.msk [vmem:[%s4 + $0xfc] sm:$0xf] %vm1152, %v1087
  // Predicated region
  $region18: #{bottleneck_forward.5} parent=0 // pred_check
    _
  $region19: #{bottleneck_forward.5} parent=0 // pred_check_branch
    %1218 = sbr.rel (0) target = $region21
  $region20: #{bottleneck_forward.5} parent=0 // pred_region
    _
  $region21: #{bottleneck_forward.5} parent=0 // pred_fallthru
    _
  // Predicated region
  $region22: #{bottleneck_forward.5} parent=0 // pred_check
    _
  $region23: #{bottleneck_forward.5} parent=0 // pred_check_branch
    %1220 = sbr.rel (0) target = $region25
  $region24: #{bottleneck_forward.5} parent=0 // pred_region
    _
  $region25: #{bottleneck_forward.5} parent=0 // pred_fallthru
    _

// kernel: bottleneck_forward.3
$region0: #{bottleneck_forward.3}
  #allocation0 [shape = 'u32[]', space=smem, size = 0x4, offset = 0x4, fixed_abs, tag = 'smem constant byte address 0x4 - core index']
  #allocation1 [shape = 'u32[144,128]{1,0:T(1,128)}', space=vmem, size = 0x12000, scoped, tag = 'internal scratch']
  %s0 = inlined_call_operand.vmem [shape: bf16[512,32], index: 0, kind: input, shape index: {}]
  %s1 = inlined_call_operand.vmem [shape: bf16[32,8], index: 1, kind: input, shape index: {}]
  %s2 = inlined_call_operand.vmem [shape: f32[1,8], index: 2, kind: input, shape index: {}]
  %s3 = inlined_call_operand.vmem [shape: bf16[512,8], index: 3, kind: output, shape index: {}]
  %s4 = sld [smem:[#allocation0]]
  $region22: #{bottleneck_forward.3} parent=0
    _
  %s6 = ssub.s32 1, %s4
  %s7 = scalar_select 0, %s6, %s4
  // Predicated region
  $region2: #{bottleneck_forward.3} parent=0 // pred_check
    _
  $region3: #{bottleneck_forward.3} parent=0 // pred_check_branch
    %9 = sbr.rel (0) target = $region5
  $region4: #{bottleneck_forward.3} parent=0 // pred_region
    _
  $region5: #{bottleneck_forward.3} parent=0 // pred_fallthru
    _
  // Predicated region
  $region6: #{bottleneck_forward.3} parent=0 // pred_check
    _
  $region7: #{bottleneck_forward.3} parent=0 // pred_check_branch
    %11 = sbr.rel (0) target = $region9
  $region8: #{bottleneck_forward.3} parent=0 // pred_region
    _
  $region9: #{bottleneck_forward.3} parent=0 // pred_fallthru
    _
  // Predicated region
  $region10: #{bottleneck_forward.3} parent=0 // pred_check
    _
  $region11: #{bottleneck_forward.3} parent=0 // pred_check_branch
    %13 = sbr.rel (0) target = $region13
  $region12: #{bottleneck_forward.3} parent=0 // pred_region
    _
  $region13: #{bottleneck_forward.3} parent=0 // pred_fallthru
    _
  %v15 = vld [vmem:[%s0] sm:$0xf]
  %v16 = vld [vmem:[%s0 + $0x4] sm:$0xf]
  %v17 = vld [vmem:[%s0 + $0x8] sm:$0xf]
  %v18 = vld [vmem:[%s0 + $0xc] sm:$0xf]
  %v19 = vld [vmem:[%s0 + $0x10] sm:$0xf]
  %v20 = vld [vmem:[%s0 + $0x14] sm:$0xf]
  %v21 = vld [vmem:[%s0 + $0x18] sm:$0xf]
  %v22 = vld [vmem:[%s0 + $0x1c] sm:$0xf]
  %v23 = vld [vmem:[%s0 + $0x20] sm:$0xf]
  %v24 = vld [vmem:[%s0 + $0x24] sm:$0xf]
  %v25 = vld [vmem:[%s0 + $0x28] sm:$0xf]
  %v26 = vld [vmem:[%s0 + $0x2c] sm:$0xf]
  %v27 = vld [vmem:[%s0 + $0x30] sm:$0xf]
  %v28 = vld [vmem:[%s0 + $0x34] sm:$0xf]
  %v29 = vld [vmem:[%s0 + $0x38] sm:$0xf]
  %v30 = vld [vmem:[%s0 + $0x3c] sm:$0xf]
  %v31 = vld [vmem:[%s0 + $0x40] sm:$0xf]
  %v32 = vld [vmem:[%s0 + $0x44] sm:$0xf]
  %v33 = vld [vmem:[%s0 + $0x48] sm:$0xf]
  %v34 = vld [vmem:[%s0 + $0x4c] sm:$0xf]
  %v35 = vld [vmem:[%s0 + $0x50] sm:$0xf]
  %v36 = vld [vmem:[%s0 + $0x54] sm:$0xf]
  %v37 = vld [vmem:[%s0 + $0x58] sm:$0xf]
  %v38 = vld [vmem:[%s0 + $0x5c] sm:$0xf]
  %v39 = vld [vmem:[%s0 + $0x60] sm:$0xf]
  %v40 = vld [vmem:[%s0 + $0x64] sm:$0xf]
  %v41 = vld [vmem:[%s0 + $0x68] sm:$0xf]
  %v42 = vld [vmem:[%s0 + $0x6c] sm:$0xf]
  %v43 = vld [vmem:[%s0 + $0x70] sm:$0xf]
  %v44 = vld [vmem:[%s0 + $0x74] sm:$0xf]
  %v45 = vld [vmem:[%s0 + $0x78] sm:$0xf]
  %v46 = vld [vmem:[%s0 + $0x7c] sm:$0xf]
  %v47 = vld [vmem:[%s0 + $0x80] sm:$0xf]
  %v48 = vld [vmem:[%s0 + $0x84] sm:$0xf]
  %v49 = vld [vmem:[%s0 + $0x88] sm:$0xf]
  %v50 = vld [vmem:[%s0 + $0x8c] sm:$0xf]
  %v51 = vld [vmem:[%s0 + $0x90] sm:$0xf]
  %v52 = vld [vmem:[%s0 + $0x94] sm:$0xf]
  %v53 = vld [vmem:[%s0 + $0x98] sm:$0xf]
  %v54 = vld [vmem:[%s0 + $0x9c] sm:$0xf]
  %v55 = vld [vmem:[%s0 + $0xa0] sm:$0xf]
  %v56 = vld [vmem:[%s0 + $0xa4] sm:$0xf]
  %v57 = vld [vmem:[%s0 + $0xa8] sm:$0xf]
  %v58 = vld [vmem:[%s0 + $0xac] sm:$0xf]
  %v59 = vld [vmem:[%s0 + $0xb0] sm:$0xf]
  %v60 = vld [vmem:[%s0 + $0xb4] sm:$0xf]
  %v61 = vld [vmem:[%s0 + $0xb8] sm:$0xf]
  %v62 = vld [vmem:[%s0 + $0xbc] sm:$0xf]
  %v63 = vld [vmem:[%s0 + $0xc0] sm:$0xf]
  %v64 = vld [vmem:[%s0 + $0xc4] sm:$0xf]
  %v65 = vld [vmem:[%s0 + $0xc8] sm:$0xf]
  %v66 = vld [vmem:[%s0 + $0xcc] sm:$0xf]
  %v67 = vld [vmem:[%s0 + $0xd0] sm:$0xf]
  %v68 = vld [vmem:[%s0 + $0xd4] sm:$0xf]
  %v69 = vld [vmem:[%s0 + $0xd8] sm:$0xf]
  %v70 = vld [vmem:[%s0 + $0xdc] sm:$0xf]
  %v71 = vld [vmem:[%s0 + $0xe0] sm:$0xf]
  %v72 = vld [vmem:[%s0 + $0xe4] sm:$0xf]
  %v73 = vld [vmem:[%s0 + $0xe8] sm:$0xf]
  %v74 = vld [vmem:[%s0 + $0xec] sm:$0xf]
  %v75 = vld [vmem:[%s0 + $0xf0] sm:$0xf]
  %v76 = vld [vmem:[%s0 + $0xf4] sm:$0xf]
  %v77 = vld [vmem:[%s0 + $0xf8] sm:$0xf]
  %v78 = vld [vmem:[%s0 + $0xfc] sm:$0xf]
  %v79 = vld [vmem:[%s1] sm:$0xf]
  %v80 = vld [vmem:[%s1 + $0x4] sm:$0xf]
  %v81 = vld [vmem:[%s1 + $0x8] sm:$0xf]
  %v82 = vld [vmem:[%s1 + $0xc] sm:$0xf]
  %v83 = vld [vmem:[%s2] sm:$0x1]
  %v85 = vlaneseq
  %v86 = vshrl.u32 %v85, 7
  %v87 = vsub.s32 0, %v86
  %v88 = vrot.slane %v83, %v87
  %v154 = vunpack.c.l.b16 %v15
  %v155 = vunpack.c.l.b16 %v16
  %v156 = vunpack.c.l.b16 %v17
  %v157 = vunpack.c.l.b16 %v18
  %v158 = vunpack.c.l.b16 %v19
  %v159 = vunpack.c.l.b16 %v20
  %v160 = vunpack.c.l.b16 %v21
  %v161 = vunpack.c.l.b16 %v22
  %v162 = vunpack.c.l.b16 %v23
  %v163 = vunpack.c.l.b16 %v24
  %v164 = vunpack.c.l.b16 %v25
  %v165 = vunpack.c.l.b16 %v26
  %v166 = vunpack.c.l.b16 %v27
  %v167 = vunpack.c.l.b16 %v28
  %v168 = vunpack.c.l.b16 %v29
  %v169 = vunpack.c.l.b16 %v30
  %v170 = vunpack.c.l.b16 %v31
  %v171 = vunpack.c.l.b16 %v32
  %v172 = vunpack.c.l.b16 %v33
  %v173 = vunpack.c.l.b16 %v34
  %v174 = vunpack.c.l.b16 %v35
  %v175 = vunpack.c.l.b16 %v36
  %v176 = vunpack.c.l.b16 %v37
  %v177 = vunpack.c.l.b16 %v38
  %v178 = vunpack.c.l.b16 %v39
  %v179 = vunpack.c.l.b16 %v40
  %v180 = vunpack.c.l.b16 %v41
  %v181 = vunpack.c.l.b16 %v42
  %v182 = vunpack.c.l.b16 %v43
  %v183 = vunpack.c.l.b16 %v44
  %v184 = vunpack.c.l.b16 %v45
  %v185 = vunpack.c.l.b16 %v46
  %v186 = vunpack.c.l.b16 %v47
  %v187 = vunpack.c.l.b16 %v48
  %v188 = vunpack.c.l.b16 %v49
  %v189 = vunpack.c.l.b16 %v50
  %v190 = vunpack.c.l.b16 %v51
  %v191 = vunpack.c.l.b16 %v52
  %v192 = vunpack.c.l.b16 %v53
  %v193 = vunpack.c.l.b16 %v54
  %v194 = vunpack.c.l.b16 %v55
  %v195 = vunpack.c.l.b16 %v56
  %v196 = vunpack.c.l.b16 %v57
  %v197 = vunpack.c.l.b16 %v58
  %v198 = vunpack.c.l.b16 %v59
  %v199 = vunpack.c.l.b16 %v60
  %v200 = vunpack.c.l.b16 %v61
  %v201 = vunpack.c.l.b16 %v62
  %v202 = vunpack.c.l.b16 %v63
  %v203 = vunpack.c.l.b16 %v64
  %v204 = vunpack.c.l.b16 %v65
  %v205 = vunpack.c.l.b16 %v66
  %v206 = vunpack.c.l.b16 %v67
  %v207 = vunpack.c.l.b16 %v68
  %v208 = vunpack.c.l.b16 %v69
  %v209 = vunpack.c.l.b16 %v70
  %v210 = vunpack.c.l.b16 %v71
  %v211 = vunpack.c.l.b16 %v72
  %v212 = vunpack.c.l.b16 %v73
  %v213 = vunpack.c.l.b16 %v74
  %v214 = vunpack.c.l.b16 %v75
  %v215 = vunpack.c.l.b16 %v76
  %v216 = vunpack.c.l.b16 %v77
  %v217 = vunpack.c.l.b16 %v78
  %v218 = vpack.c.b16 %v155, %v154
  %v219 = vpack.c.b16 %v157, %v156
  %v220 = vpack.c.b16 %v159, %v158
  %v221 = vpack.c.b16 %v161, %v160
  %v222 = vpack.c.b16 %v163, %v162
  %v223 = vpack.c.b16 %v165, %v164
  %v224 = vpack.c.b16 %v167, %v166
  %v225 = vpack.c.b16 %v169, %v168
  %v226 = vpack.c.b16 %v171, %v170
  %v227 = vpack.c.b16 %v173, %v172
  %v228 = vpack.c.b16 %v175, %v174
  %v229 = vpack.c.b16 %v177, %v176
  %v230 = vpack.c.b16 %v179, %v178
  %v231 = vpack.c.b16 %v181, %v180
  %v232 = vpack.c.b16 %v183, %v182
  %v233 = vpack.c.b16 %v185, %v184
  %v234 = vpack.c.b16 %v187, %v186
  %v235 = vpack.c.b16 %v189, %v188
  %v236 = vpack.c.b16 %v191, %v190
  %v237 = vpack.c.b16 %v193, %v192
  %v238 = vpack.c.b16 %v195, %v194
  %v239 = vpack.c.b16 %v197, %v196
  %v240 = vpack.c.b16 %v199, %v198
  %v241 = vpack.c.b16 %v201, %v200
  %v242 = vpack.c.b16 %v203, %v202
  %v243 = vpack.c.b16 %v205, %v204
  %v244 = vpack.c.b16 %v207, %v206
  %v245 = vpack.c.b16 %v209, %v208
  %v246 = vpack.c.b16 %v211, %v210
  %v247 = vpack.c.b16 %v213, %v212
  %v248 = vpack.c.b16 %v215, %v214
  %v249 = vpack.c.b16 %v217, %v216
  %v254 = vunpack.c.l.b16 %v79
  %v255 = vunpack.c.l.b16 %v80
  %v256 = vunpack.c.l.b16 %v81
  %v257 = vunpack.c.l.b16 %v82
  %v258 = vpack.c.b16 %v255, %v254
  %v259 = vpack.c.b16 %v257, %v256
  %vm262 = vcmask 261120
  %v264 = vsel %vm262, %v218, 0
  %v267 = vsel %vm262, %v219, 0
  %v270 = vsel %vm262, %v220, 0
  %v273 = vsel %vm262, %v221, 0
  %v276 = vsel %vm262, %v222, 0
  %v279 = vsel %vm262, %v223, 0
  %v282 = vsel %vm262, %v224, 0
  %v285 = vsel %vm262, %v225, 0
  %v288 = vsel %vm262, %v226, 0
  %v291 = vsel %vm262, %v227, 0
  %v294 = vsel %vm262, %v228, 0
  %v297 = vsel %vm262, %v229, 0
  %v300 = vsel %vm262, %v230, 0
  %v303 = vsel %vm262, %v231, 0
  %v306 = vsel %vm262, %v232, 0
  %v309 = vsel %vm262, %v233, 0
  %v312 = vsel %vm262, %v234, 0
  %v315 = vsel %vm262, %v235, 0
  %v318 = vsel %vm262, %v236, 0
  %v321 = vsel %vm262, %v237, 0
  %v324 = vsel %vm262, %v238, 0
  %v327 = vsel %vm262, %v239, 0
  %v330 = vsel %vm262, %v240, 0
  %v333 = vsel %vm262, %v241, 0
  %v336 = vsel %vm262, %v242, 0
  %v339 = vsel %vm262, %v243, 0
  %v342 = vsel %vm262, %v244, 0
  %v345 = vsel %vm262, %v245, 0
  %v348 = vsel %vm262, %v246, 0
  %v351 = vsel %vm262, %v247, 0
  %v354 = vsel %vm262, %v248, 0
  %v357 = vsel %vm262, %v249, 0
  %359 = vmatprep.subr.bf16.mxu0 0
  %360 = vmatpush1.bf16.msra.mxu0 0
  %361 = vmatprep.subr.bf16.mxu0 0
  %362 = vmatpush1.bf16.msra.mxu0 0
  %363 = vmatprep.subr.bf16.mxu0 0
  %364 = vmatpush1.bf16.msra.mxu0 0
  %365 = vmatprep.subr.bf16.mxu0 0
  %366 = vmatpush1.bf16.msra.mxu0 0
  %367 = vmatprep.subr.bf16.mxu0 0
  %368 = vmatpush1.bf16.msra.mxu0 0
  %369 = vmatprep.subr.bf16.mxu0 0
  %370 = vmatpush1.bf16.msra.mxu0 0
  %371 = vmatprep.subr.bf16.mxu0 0
  %372 = vmatpush1.bf16.msra.mxu0 %v259
  %373 = vmatprep.subr.bf16.mxu0 0
  %374 = vmatpush1.bf16.msra.mxu0 %v258
  %375 = vmatprep.subr.bf16.mxu0 0
  %376 = vmatpush2.bf16.msra.mxu0 0
  %377 = vmatprep.subr.bf16.mxu0 0
  %378 = vmatpush2.bf16.msra.mxu0 0
  %379 = vmatprep.subr.bf16.mxu0 0
  %380 = vmatpush2.bf16.msra.mxu0 0
  %381 = vmatprep.subr.bf16.mxu0 0
  %382 = vmatpush2.bf16.msra.mxu0 0
  %383 = vmatprep.subr.bf16.mxu0 0
  %384 = vmatpush2.bf16.msra.mxu0 0
  %385 = vmatprep.subr.bf16.mxu0 0
  %386 = vmatpush2.bf16.msra.mxu0 0
  %387 = vmatprep.subr.bf16.mxu0 0
  %388 = vmatpush2.bf16.msra.mxu0 0
  %389 = vmatprep.subr.bf16.mxu0 0
  %390 = vmatpush2.bf16.msra.mxu0 0
  %391 = vmatprep.mubr.bf16.mxu0 0
  %392 = vmatmul.mubr.bf16.gmra.mxu0 %v264
  %v393 = vpop.f32.mrf.mxu0
  %v394 = vadd.f32 %v88, %v393
  %v395 = vpop.f32.mrf.mxu0
  %v396 = vpop.f32.mrf.mxu0
  %v397 = vadd.f32 %v88, %v396
  %v398 = vpop.f32.mrf.mxu0
  %399 = vmatprep.mubr.bf16.mxu0 0
  %400 = vmatmul.mubr.bf16.gmra.mxu0 %v267
  %v401 = vpop.f32.mrf.mxu0
  %v402 = vadd.f32 %v88, %v401
  %v403 = vpop.f32.mrf.mxu0
  %v404 = vpop.f32.mrf.mxu0
  %v405 = vadd.f32 %v88, %v404
  %v406 = vpop.f32.mrf.mxu0
  %407 = vmatprep.mubr.bf16.mxu0 0
  %408 = vmatmul.mubr.bf16.gmra.mxu0 %v270
  %v409 = vpop.f32.mrf.mxu0
  %v410 = vadd.f32 %v88, %v409
  %v411 = vpop.f32.mrf.mxu0
  %v412 = vpop.f32.mrf.mxu0
  %v413 = vadd.f32 %v88, %v412
  %v414 = vpop.f32.mrf.mxu0
  %415 = vmatprep.mubr.bf16.mxu0 0
  %416 = vmatmul.mubr.bf16.gmra.mxu0 %v273
  %v417 = vpop.f32.mrf.mxu0
  %v418 = vadd.f32 %v88, %v417
  %v419 = vpop.f32.mrf.mxu0
  %v420 = vpop.f32.mrf.mxu0
  %v421 = vadd.f32 %v88, %v420
  %v422 = vpop.f32.mrf.mxu0
  %423 = vmatprep.mubr.bf16.mxu0 0
  %424 = vmatmul.mubr.bf16.gmra.mxu0 %v276
  %v425 = vpop.f32.mrf.mxu0
  %v426 = vadd.f32 %v88, %v425
  %v427 = vpop.f32.mrf.mxu0
  %v428 = vpop.f32.mrf.mxu0
  %v429 = vadd.f32 %v88, %v428
  %v430 = vpop.f32.mrf.mxu0
  %431 = vmatprep.mubr.bf16.mxu0 0
  %432 = vmatmul.mubr.bf16.gmra.mxu0 %v279
  %v433 = vpop.f32.mrf.mxu0
  %v434 = vadd.f32 %v88, %v433
  %v435 = vpop.f32.mrf.mxu0
  %v436 = vpop.f32.mrf.mxu0
  %v437 = vadd.f32 %v88, %v436
  %v438 = vpop.f32.mrf.mxu0
  %439 = vmatprep.mubr.bf16.mxu0 0
  %440 = vmatmul.mubr.bf16.gmra.mxu0 %v282
  %v441 = vpop.f32.mrf.mxu0
  %v442 = vadd.f32 %v88, %v441
  %v443 = vpop.f32.mrf.mxu0
  %v444 = vpop.f32.mrf.mxu0
  %v445 = vadd.f32 %v88, %v444
  %v446 = vpop.f32.mrf.mxu0
  %447 = vmatprep.mubr.bf16.mxu0 0
  %448 = vmatmul.mubr.bf16.gmra.mxu0 %v285
  %v449 = vpop.f32.mrf.mxu0
  %v450 = vadd.f32 %v88, %v449
  %v451 = vpop.f32.mrf.mxu0
  %v452 = vpop.f32.mrf.mxu0
  %v453 = vadd.f32 %v88, %v452
  %v454 = vpop.f32.mrf.mxu0
  %455 = vmatprep.mubr.bf16.mxu0 0
  %456 = vmatmul.mubr.bf16.gmra.mxu0 %v288
  %v457 = vpop.f32.mrf.mxu0
  %v458 = vadd.f32 %v88, %v457
  %v459 = vpop.f32.mrf.mxu0
  %v460 = vpop.f32.mrf.mxu0
  %v461 = vadd.f32 %v88, %v460
  %v462 = vpop.f32.mrf.mxu0
  %463 = vmatprep.mubr.bf16.mxu0 0
  %464 = vmatmul.mubr.bf16.gmra.mxu0 %v291
  %v465 = vpop.f32.mrf.mxu0
  %v466 = vadd.f32 %v88, %v465
  %v467 = vpop.f32.mrf.mxu0
  %v468 = vpop.f32.mrf.mxu0
  %v469 = vadd.f32 %v88, %v468
  %v470 = vpop.f32.mrf.mxu0
  %471 = vmatprep.mubr.bf16.mxu0 0
  %472 = vmatmul.mubr.bf16.gmra.mxu0 %v294
  %v473 = vpop.f32.mrf.mxu0
  %v474 = vadd.f32 %v88, %v473
  %v475 = vpop.f32.mrf.mxu0
  %v476 = vpop.f32.mrf.mxu0
  %v477 = vadd.f32 %v88, %v476
  %v478 = vpop.f32.mrf.mxu0
  %479 = vmatprep.mubr.bf16.mxu0 0
  %480 = vmatmul.mubr.bf16.gmra.mxu0 %v297
  %v481 = vpop.f32.mrf.mxu0
  %v482 = vadd.f32 %v88, %v481
  %v483 = vpop.f32.mrf.mxu0
  %v484 = vpop.f32.mrf.mxu0
  %v485 = vadd.f32 %v88, %v484
  %v486 = vpop.f32.mrf.mxu0
  %487 = vmatprep.mubr.bf16.mxu0 0
  %488 = vmatmul.mubr.bf16.gmra.mxu0 %v300
  %v489 = vpop.f32.mrf.mxu0
  %v490 = vadd.f32 %v88, %v489
  %v491 = vpop.f32.mrf.mxu0
  %v492 = vpop.f32.mrf.mxu0
  %v493 = vadd.f32 %v88, %v492
  %v494 = vpop.f32.mrf.mxu0
  %495 = vmatprep.mubr.bf16.mxu0 0
  %496 = vmatmul.mubr.bf16.gmra.mxu0 %v303
  %v497 = vpop.f32.mrf.mxu0
  %v498 = vadd.f32 %v88, %v497
  %v499 = vpop.f32.mrf.mxu0
  %v500 = vpop.f32.mrf.mxu0
  %v501 = vadd.f32 %v88, %v500
  %v502 = vpop.f32.mrf.mxu0
  %503 = vmatprep.mubr.bf16.mxu0 0
  %504 = vmatmul.mubr.bf16.gmra.mxu0 %v306
  %v505 = vpop.f32.mrf.mxu0
  %v506 = vadd.f32 %v88, %v505
  %v507 = vpop.f32.mrf.mxu0
  %v508 = vpop.f32.mrf.mxu0
  %v509 = vadd.f32 %v88, %v508
  %v510 = vpop.f32.mrf.mxu0
  %511 = vmatprep.mubr.bf16.mxu0 0
  %512 = vmatmul.mubr.bf16.gmra.mxu0 %v309
  %v513 = vpop.f32.mrf.mxu0
  %v514 = vadd.f32 %v88, %v513
  %v515 = vpop.f32.mrf.mxu0
  %v516 = vpop.f32.mrf.mxu0
  %v517 = vadd.f32 %v88, %v516
  %v518 = vpop.f32.mrf.mxu0
  %519 = vmatprep.mubr.bf16.mxu0 0
  %520 = vmatmul.mubr.bf16.gmra.mxu0 %v312
  %v521 = vpop.f32.mrf.mxu0
  %v522 = vadd.f32 %v88, %v521
  %v523 = vpop.f32.mrf.mxu0
  %v524 = vpop.f32.mrf.mxu0
  %v525 = vadd.f32 %v88, %v524
  %v526 = vpop.f32.mrf.mxu0
  %527 = vmatprep.mubr.bf16.mxu0 0
  %528 = vmatmul.mubr.bf16.gmra.mxu0 %v315
  %v529 = vpop.f32.mrf.mxu0
  %v530 = vadd.f32 %v88, %v529
  %v531 = vpop.f32.mrf.mxu0
  %v532 = vpop.f32.mrf.mxu0
  %v533 = vadd.f32 %v88, %v532
  %v534 = vpop.f32.mrf.mxu0
  %535 = vmatprep.mubr.bf16.mxu0 0
  %536 = vmatmul.mubr.bf16.gmra.mxu0 %v318
  %v537 = vpop.f32.mrf.mxu0
  %v538 = vadd.f32 %v88, %v537
  %v539 = vpop.f32.mrf.mxu0
  %v540 = vpop.f32.mrf.mxu0
  %v541 = vadd.f32 %v88, %v540
  %v542 = vpop.f32.mrf.mxu0
  %543 = vmatprep.mubr.bf16.mxu0 0
  %544 = vmatmul.mubr.bf16.gmra.mxu0 %v321
  %v545 = vpop.f32.mrf.mxu0
  %v546 = vadd.f32 %v88, %v545
  %v547 = vpop.f32.mrf.mxu0
  %v548 = vpop.f32.mrf.mxu0
  %v549 = vadd.f32 %v88, %v548
  %v550 = vpop.f32.mrf.mxu0
  %551 = vmatprep.mubr.bf16.mxu0 0
  %552 = vmatmul.mubr.bf16.gmra.mxu0 %v324
  %v553 = vpop.f32.mrf.mxu0
  %v554 = vadd.f32 %v88, %v553
  %v555 = vpop.f32.mrf.mxu0
  %v556 = vpop.f32.mrf.mxu0
  %v557 = vadd.f32 %v88, %v556
  %v558 = vpop.f32.mrf.mxu0
  %559 = vmatprep.mubr.bf16.mxu0 0
  %560 = vmatmul.mubr.bf16.gmra.mxu0 %v327
  %v561 = vpop.f32.mrf.mxu0
  %v562 = vadd.f32 %v88, %v561
  %v563 = vpop.f32.mrf.mxu0
  %v564 = vpop.f32.mrf.mxu0
  %v565 = vadd.f32 %v88, %v564
  %v566 = vpop.f32.mrf.mxu0
  %567 = vmatprep.mubr.bf16.mxu0 0
  %568 = vmatmul.mubr.bf16.gmra.mxu0 %v330
  %v569 = vpop.f32.mrf.mxu0
  %v570 = vadd.f32 %v88, %v569
  %v571 = vpop.f32.mrf.mxu0
  %v572 = vpop.f32.mrf.mxu0
  %v573 = vadd.f32 %v88, %v572
  %v574 = vpop.f32.mrf.mxu0
  %575 = vmatprep.mubr.bf16.mxu0 0
  %576 = vmatmul.mubr.bf16.gmra.mxu0 %v333
  %v577 = vpop.f32.mrf.mxu0
  %v578 = vadd.f32 %v88, %v577
  %v579 = vpop.f32.mrf.mxu0
  %v580 = vpop.f32.mrf.mxu0
  %v581 = vadd.f32 %v88, %v580
  %v582 = vpop.f32.mrf.mxu0
  %583 = vmatprep.mubr.bf16.mxu0 0
  %584 = vmatmul.mubr.bf16.gmra.mxu0 %v336
  %v585 = vpop.f32.mrf.mxu0
  %v586 = vadd.f32 %v88, %v585
  %v587 = vpop.f32.mrf.mxu0
  %v588 = vpop.f32.mrf.mxu0
  %v589 = vadd.f32 %v88, %v588
  %v590 = vpop.f32.mrf.mxu0
  %591 = vmatprep.mubr.bf16.mxu0 0
  %592 = vmatmul.mubr.bf16.gmra.mxu0 %v339
  %v593 = vpop.f32.mrf.mxu0
  %v594 = vadd.f32 %v88, %v593
  %v595 = vpop.f32.mrf.mxu0
  %v596 = vpop.f32.mrf.mxu0
  %v597 = vadd.f32 %v88, %v596
  %v598 = vpop.f32.mrf.mxu0
  %599 = vmatprep.mubr.bf16.mxu0 0
  %600 = vmatmul.mubr.bf16.gmra.mxu0 %v342
  %v601 = vpop.f32.mrf.mxu0
  %v602 = vadd.f32 %v88, %v601
  %v603 = vpop.f32.mrf.mxu0
  %v604 = vpop.f32.mrf.mxu0
  %v605 = vadd.f32 %v88, %v604
  %v606 = vpop.f32.mrf.mxu0
  %607 = vmatprep.mubr.bf16.mxu0 0
  %608 = vmatmul.mubr.bf16.gmra.mxu0 %v345
  %v609 = vpop.f32.mrf.mxu0
  %v610 = vadd.f32 %v88, %v609
  %v611 = vpop.f32.mrf.mxu0
  %v612 = vpop.f32.mrf.mxu0
  %v613 = vadd.f32 %v88, %v612
  %v614 = vpop.f32.mrf.mxu0
  %615 = vmatprep.mubr.bf16.mxu0 0
  %616 = vmatmul.mubr.bf16.gmra.mxu0 %v348
  %v617 = vpop.f32.mrf.mxu0
  %v618 = vadd.f32 %v88, %v617
  %v619 = vpop.f32.mrf.mxu0
  %v620 = vpop.f32.mrf.mxu0
  %v621 = vadd.f32 %v88, %v620
  %v622 = vpop.f32.mrf.mxu0
  %623 = vmatprep.mubr.bf16.mxu0 0
  %624 = vmatmul.mubr.bf16.gmra.mxu0 %v351
  %v625 = vpop.f32.mrf.mxu0
  %v626 = vadd.f32 %v88, %v625
  %v627 = vpop.f32.mrf.mxu0
  %v628 = vpop.f32.mrf.mxu0
  %v629 = vadd.f32 %v88, %v628
  %v630 = vpop.f32.mrf.mxu0
  %631 = vmatprep.mubr.bf16.mxu0 0
  %632 = vmatmul.mubr.bf16.gmra.mxu0 %v354
  %v633 = vpop.f32.mrf.mxu0
  %v634 = vadd.f32 %v88, %v633
  %v635 = vpop.f32.mrf.mxu0
  %v636 = vpop.f32.mrf.mxu0
  %v637 = vadd.f32 %v88, %v636
  %v638 = vpop.f32.mrf.mxu0
  %639 = vmatprep.mubr.bf16.mxu0 0
  %640 = vmatmul.mubr.bf16.gmra.mxu0 %v357
  %v641 = vpop.f32.mrf.mxu0
  %v642 = vadd.f32 %v88, %v641
  %v643 = vpop.f32.mrf.mxu0
  %v644 = vpop.f32.mrf.mxu0
  %v645 = vadd.f32 %v88, %v644
  %v646 = vpop.f32.mrf.mxu0
  %647 = vdwg.mxu0
  %v648 = vmax.f32 %v394, 0.0
  %v649 = vmax.f32 %v397, 0.0
  %v650 = vmax.f32 %v402, 0.0
  %v651 = vmax.f32 %v405, 0.0
  %v652 = vmax.f32 %v410, 0.0
  %v653 = vmax.f32 %v413, 0.0
  %v654 = vmax.f32 %v418, 0.0
  %v655 = vmax.f32 %v421, 0.0
  %v656 = vmax.f32 %v426, 0.0
  %v657 = vmax.f32 %v429, 0.0
  %v658 = vmax.f32 %v434, 0.0
  %v659 = vmax.f32 %v437, 0.0
  %v660 = vmax.f32 %v442, 0.0
  %v661 = vmax.f32 %v445, 0.0
  %v662 = vmax.f32 %v450, 0.0
  %v663 = vmax.f32 %v453, 0.0
  %v664 = vmax.f32 %v458, 0.0
  %v665 = vmax.f32 %v461, 0.0
  %v666 = vmax.f32 %v466, 0.0
  %v667 = vmax.f32 %v469, 0.0
  %v668 = vmax.f32 %v474, 0.0
  %v669 = vmax.f32 %v477, 0.0
  %v670 = vmax.f32 %v482, 0.0
  %v671 = vmax.f32 %v485, 0.0
  %v672 = vmax.f32 %v490, 0.0
  %v673 = vmax.f32 %v493, 0.0
  %v674 = vmax.f32 %v498, 0.0
  %v675 = vmax.f32 %v501, 0.0
  %v676 = vmax.f32 %v506, 0.0
  %v677 = vmax.f32 %v509, 0.0
  %v678 = vmax.f32 %v514, 0.0
  %v679 = vmax.f32 %v517, 0.0
  %v680 = vmax.f32 %v522, 0.0
  %v681 = vmax.f32 %v525, 0.0
  %v682 = vmax.f32 %v530, 0.0
  %v683 = vmax.f32 %v533, 0.0
  %v684 = vmax.f32 %v538, 0.0
  %v685 = vmax.f32 %v541, 0.0
  %v686 = vmax.f32 %v546, 0.0
  %v687 = vmax.f32 %v549, 0.0
  %v688 = vmax.f32 %v554, 0.0
  %v689 = vmax.f32 %v557, 0.0
  %v690 = vmax.f32 %v562, 0.0
  %v691 = vmax.f32 %v565, 0.0
  %v692 = vmax.f32 %v570, 0.0
  %v693 = vmax.f32 %v573, 0.0
  %v694 = vmax.f32 %v578, 0.0
  %v695 = vmax.f32 %v581, 0.0
  %v696 = vmax.f32 %v586, 0.0
  %v697 = vmax.f32 %v589, 0.0
  %v698 = vmax.f32 %v594, 0.0
  %v699 = vmax.f32 %v597, 0.0
  %v700 = vmax.f32 %v602, 0.0
  %v701 = vmax.f32 %v605, 0.0
  %v702 = vmax.f32 %v610, 0.0
  %v703 = vmax.f32 %v613, 0.0
  %v704 = vmax.f32 %v618, 0.0
  %v705 = vmax.f32 %v621, 0.0
  %v706 = vmax.f32 %v626, 0.0
  %v707 = vmax.f32 %v629, 0.0
  %v708 = vmax.f32 %v634, 0.0
  %v709 = vmax.f32 %v637, 0.0
  %v710 = vmax.f32 %v642, 0.0
  %v711 = vmax.f32 %v645, 0.0
  %v712 = vpack.c.bf16 %v649, %v648
  %v713 = vpack.c.bf16 %v651, %v650
  %v714 = vpack.c.bf16 %v653, %v652
  %v715 = vpack.c.bf16 %v655, %v654
  %v716 = vpack.c.bf16 %v657, %v656
  %v717 = vpack.c.bf16 %v659, %v658
  %v718 = vpack.c.bf16 %v661, %v660
  %v719 = vpack.c.bf16 %v663, %v662
  %v720 = vpack.c.bf16 %v665, %v664
  %v721 = vpack.c.bf16 %v667, %v666
  %v722 = vpack.c.bf16 %v669, %v668
  %v723 = vpack.c.bf16 %v671, %v670
  %v724 = vpack.c.bf16 %v673, %v672
  %v725 = vpack.c.bf16 %v675, %v674
  %v726 = vpack.c.bf16 %v677, %v676
  %v727 = vpack.c.bf16 %v679, %v678
  %v728 = vpack.c.bf16 %v681, %v680
  %v729 = vpack.c.bf16 %v683, %v682
  %v730 = vpack.c.bf16 %v685, %v684
  %v731 = vpack.c.bf16 %v687, %v686
  %v732 = vpack.c.bf16 %v689, %v688
  %v733 = vpack.c.bf16 %v691, %v690
  %v734 = vpack.c.bf16 %v693, %v692
  %v735 = vpack.c.bf16 %v695, %v694
  %v736 = vpack.c.bf16 %v697, %v696
  %v737 = vpack.c.bf16 %v699, %v698
  %v738 = vpack.c.bf16 %v701, %v700
  %v739 = vpack.c.bf16 %v703, %v702
  %v740 = vpack.c.bf16 %v705, %v704
  %v741 = vpack.c.bf16 %v707, %v706
  %v742 = vpack.c.bf16 %v709, %v708
  %v743 = vpack.c.bf16 %v711, %v710
  %v776 = vunpack.c.l.b16 %v712
  %v777 = vunpack.c.h.b16 %v712
  %v778 = vunpack.c.l.b16 %v713
  %v779 = vunpack.c.h.b16 %v713
  %v780 = vunpack.c.l.b16 %v714
  %v781 = vunpack.c.h.b16 %v714
  %v782 = vunpack.c.l.b16 %v715
  %v783 = vunpack.c.h.b16 %v715
  %v784 = vunpack.c.l.b16 %v716
  %v785 = vunpack.c.h.b16 %v716
  %v786 = vunpack.c.l.b16 %v717
  %v787 = vunpack.c.h.b16 %v717
  %v788 = vunpack.c.l.b16 %v718
  %v789 = vunpack.c.h.b16 %v718
  %v790 = vunpack.c.l.b16 %v719
  %v791 = vunpack.c.h.b16 %v719
  %v792 = vunpack.c.l.b16 %v720
  %v793 = vunpack.c.h.b16 %v720
  %v794 = vunpack.c.l.b16 %v721
  %v795 = vunpack.c.h.b16 %v721
  %v796 = vunpack.c.l.b16 %v722
  %v797 = vunpack.c.h.b16 %v722
  %v798 = vunpack.c.l.b16 %v723
  %v799 = vunpack.c.h.b16 %v723
  %v800 = vunpack.c.l.b16 %v724
  %v801 = vunpack.c.h.b16 %v724
  %v802 = vunpack.c.l.b16 %v725
  %v803 = vunpack.c.h.b16 %v725
  %v804 = vunpack.c.l.b16 %v726
  %v805 = vunpack.c.h.b16 %v726
  %v806 = vunpack.c.l.b16 %v727
  %v807 = vunpack.c.h.b16 %v727
  %v808 = vunpack.c.l.b16 %v728
  %v809 = vunpack.c.h.b16 %v728
  %v810 = vunpack.c.l.b16 %v729
  %v811 = vunpack.c.h.b16 %v729
  %v812 = vunpack.c.l.b16 %v730
  %v813 = vunpack.c.h.b16 %v730
  %v814 = vunpack.c.l.b16 %v731
  %v815 = vunpack.c.h.b16 %v731
  %v816 = vunpack.c.l.b16 %v732
  %v817 = vunpack.c.h.b16 %v732
  %v818 = vunpack.c.l.b16 %v733
  %v819 = vunpack.c.h.b16 %v733
  %v820 = vunpack.c.l.b16 %v734
  %v821 = vunpack.c.h.b16 %v734
  %v822 = vunpack.c.l.b16 %v735
  %v823 = vunpack.c.h.b16 %v735
  %v824 = vunpack.c.l.b16 %v736
  %v825 = vunpack.c.h.b16 %v736
  %v826 = vunpack.c.l.b16 %v737
  %v827 = vunpack.c.h.b16 %v737
  %v828 = vunpack.c.l.b16 %v738
  %v829 = vunpack.c.h.b16 %v738
  %v830 = vunpack.c.l.b16 %v739
  %v831 = vunpack.c.h.b16 %v739
  %v832 = vunpack.c.l.b16 %v740
  %v833 = vunpack.c.h.b16 %v740
  %v834 = vunpack.c.l.b16 %v741
  %v835 = vunpack.c.h.b16 %v741
  %v836 = vunpack.c.l.b16 %v742
  %v837 = vunpack.c.h.b16 %v742
  %v838 = vunpack.c.l.b16 %v743
  %v839 = vunpack.c.h.b16 %v743
  %v840 = vpack.c.b16 %v776, %v776
  %v841 = vpack.c.b16 %v777, %v777
  %v842 = vpack.c.b16 %v778, %v778
  %v843 = vpack.c.b16 %v779, %v779
  %v844 = vpack.c.b16 %v780, %v780
  %v845 = vpack.c.b16 %v781, %v781
  %v846 = vpack.c.b16 %v782, %v782
  %v847 = vpack.c.b16 %v783, %v783
  %v848 = vpack.c.b16 %v784, %v784
  %v849 = vpack.c.b16 %v785, %v785
  %v850 = vpack.c.b16 %v786, %v786
  %v851 = vpack.c.b16 %v787, %v787
  %v852 = vpack.c.b16 %v788, %v788
  %v853 = vpack.c.b16 %v789, %v789
  %v854 = vpack.c.b16 %v790, %v790
  %v855 = vpack.c.b16 %v791, %v791
  %v856 = vpack.c.b16 %v792, %v792
  %v857 = vpack.c.b16 %v793, %v793
  %v858 = vpack.c.b16 %v794, %v794
  %v859 = vpack.c.b16 %v795, %v795
  %v860 = vpack.c.b16 %v796, %v796
  %v861 = vpack.c.b16 %v797, %v797
  %v862 = vpack.c.b16 %v798, %v798
  %v863 = vpack.c.b16 %v799, %v799
  %v864 = vpack.c.b16 %v800, %v800
  %v865 = vpack.c.b16 %v801, %v801
  %v866 = vpack.c.b16 %v802, %v802
  %v867 = vpack.c.b16 %v803, %v803
  %v868 = vpack.c.b16 %v804, %v804
  %v869 = vpack.c.b16 %v805, %v805
  %v870 = vpack.c.b16 %v806, %v806
  %v871 = vpack.c.b16 %v807, %v807
  %v872 = vpack.c.b16 %v808, %v808
  %v873 = vpack.c.b16 %v809, %v809
  %v874 = vpack.c.b16 %v810, %v810
  %v875 = vpack.c.b16 %v811, %v811
  %v876 = vpack.c.b16 %v812, %v812
  %v877 = vpack.c.b16 %v813, %v813
  %v878 = vpack.c.b16 %v814, %v814
  %v879 = vpack.c.b16 %v815, %v815
  %v880 = vpack.c.b16 %v816, %v816
  %v881 = vpack.c.b16 %v817, %v817
  %v882 = vpack.c.b16 %v818, %v818
  %v883 = vpack.c.b16 %v819, %v819
  %v884 = vpack.c.b16 %v820, %v820
  %v885 = vpack.c.b16 %v821, %v821
  %v886 = vpack.c.b16 %v822, %v822
  %v887 = vpack.c.b16 %v823, %v823
  %v888 = vpack.c.b16 %v824, %v824
  %v889 = vpack.c.b16 %v825, %v825
  %v890 = vpack.c.b16 %v826, %v826
  %v891 = vpack.c.b16 %v827, %v827
  %v892 = vpack.c.b16 %v828, %v828
  %v893 = vpack.c.b16 %v829, %v829
  %v894 = vpack.c.b16 %v830, %v830
  %v895 = vpack.c.b16 %v831, %v831
  %v896 = vpack.c.b16 %v832, %v832
  %v897 = vpack.c.b16 %v833, %v833
  %v898 = vpack.c.b16 %v834, %v834
  %v899 = vpack.c.b16 %v835, %v835
  %v900 = vpack.c.b16 %v836, %v836
  %v901 = vpack.c.b16 %v837, %v837
  %v902 = vpack.c.b16 %v838, %v838
  %v903 = vpack.c.b16 %v839, %v839
  %vm968 = vcmask 60416
  %969 = vst.msk [vmem:[%s3] sm:$0xf] %vm968, %v840
  %970 = vst.msk [vmem:[%s3 + $0x4] sm:$0xf] %vm968, %v841
  %971 = vst.msk [vmem:[%s3 + $0x8] sm:$0xf] %vm968, %v842
  %972 = vst.msk [vmem:[%s3 + $0xc] sm:$0xf] %vm968, %v843
  %973 = vst.msk [vmem:[%s3 + $0x10] sm:$0xf] %vm968, %v844
  %974 = vst.msk [vmem:[%s3 + $0x14] sm:$0xf] %vm968, %v845
  %975 = vst.msk [vmem:[%s3 + $0x18] sm:$0xf] %vm968, %v846
  %976 = vst.msk [vmem:[%s3 + $0x1c] sm:$0xf] %vm968, %v847
  %977 = vst.msk [vmem:[%s3 + $0x20] sm:$0xf] %vm968, %v848
  %978 = vst.msk [vmem:[%s3 + $0x24] sm:$0xf] %vm968, %v849
  %979 = vst.msk [vmem:[%s3 + $0x28] sm:$0xf] %vm968, %v850
  %980 = vst.msk [vmem:[%s3 + $0x2c] sm:$0xf] %vm968, %v851
  %981 = vst.msk [vmem:[%s3 + $0x30] sm:$0xf] %vm968, %v852
  %982 = vst.msk [vmem:[%s3 + $0x34] sm:$0xf] %vm968, %v853
  %983 = vst.msk [vmem:[%s3 + $0x38] sm:$0xf] %vm968, %v854
  %984 = vst.msk [vmem:[%s3 + $0x3c] sm:$0xf] %vm968, %v855
  %985 = vst.msk [vmem:[%s3 + $0x40] sm:$0xf] %vm968, %v856
  %986 = vst.msk [vmem:[%s3 + $0x44] sm:$0xf] %vm968, %v857
  %987 = vst.msk [vmem:[%s3 + $0x48] sm:$0xf] %vm968, %v858
  %988 = vst.msk [vmem:[%s3 + $0x4c] sm:$0xf] %vm968, %v859
  %989 = vst.msk [vmem:[%s3 + $0x50] sm:$0xf] %vm968, %v860
  %990 = vst.msk [vmem:[%s3 + $0x54] sm:$0xf] %vm968, %v861
  %991 = vst.msk [vmem:[%s3 + $0x58] sm:$0xf] %vm968, %v862
  %992 = vst.msk [vmem:[%s3 + $0x5c] sm:$0xf] %vm968, %v863
  %993 = vst.msk [vmem:[%s3 + $0x60] sm:$0xf] %vm968, %v864
  %994 = vst.msk [vmem:[%s3 + $0x64] sm:$0xf] %vm968, %v865
  %995 = vst.msk [vmem:[%s3 + $0x68] sm:$0xf] %vm968, %v866
  %996 = vst.msk [vmem:[%s3 + $0x6c] sm:$0xf] %vm968, %v867
  %997 = vst.msk [vmem:[%s3 + $0x70] sm:$0xf] %vm968, %v868
  %998 = vst.msk [vmem:[%s3 + $0x74] sm:$0xf] %vm968, %v869
  %999 = vst.msk [vmem:[%s3 + $0x78] sm:$0xf] %vm968, %v870
  %1000 = vst.msk [vmem:[%s3 + $0x7c] sm:$0xf] %vm968, %v871
  %1001 = vst.msk [vmem:[%s3 + $0x80] sm:$0xf] %vm968, %v872
  %1002 = vst.msk [vmem:[%s3 + $0x84] sm:$0xf] %vm968, %v873
  %1003 = vst.msk [vmem:[%s3 + $0x88] sm:$0xf] %vm968, %v874
  %1004 = vst.msk [vmem:[%s3 + $0x8c] sm:$0xf] %vm968, %v875
  %1005 = vst.msk [vmem:[%s3 + $0x90] sm:$0xf] %vm968, %v876
  %1006 = vst.msk [vmem:[%s3 + $0x94] sm:$0xf] %vm968, %v877
  %1007 = vst.msk [vmem:[%s3 + $0x98] sm:$0xf] %vm968, %v878
  %1008 = vst.msk [vmem:[%s3 + $0x9c] sm:$0xf] %vm968, %v879
  %1009 = vst.msk [vmem:[%s3 + $0xa0] sm:$0xf] %vm968, %v880
  %1010 = vst.msk [vmem:[%s3 + $0xa4] sm:$0xf] %vm968, %v881
  %1011 = vst.msk [vmem:[%s3 + $0xa8] sm:$0xf] %vm968, %v882
  %1012 = vst.msk [vmem:[%s3 + $0xac] sm:$0xf] %vm968, %v883
  %1013 = vst.msk [vmem:[%s3 + $0xb0] sm:$0xf] %vm968, %v884
  %1014 = vst.msk [vmem:[%s3 + $0xb4] sm:$0xf] %vm968, %v885
  %1015 = vst.msk [vmem:[%s3 + $0xb8] sm:$0xf] %vm968, %v886
  %1016 = vst.msk [vmem:[%s3 + $0xbc] sm:$0xf] %vm968, %v887
  %1017 = vst.msk [vmem:[%s3 + $0xc0] sm:$0xf] %vm968, %v888
  %1018 = vst.msk [vmem:[%s3 + $0xc4] sm:$0xf] %vm968, %v889
  %1019 = vst.msk [vmem:[%s3 + $0xc8] sm:$0xf] %vm968, %v890
  %1020 = vst.msk [vmem:[%s3 + $0xcc] sm:$0xf] %vm968, %v891
  %1021 = vst.msk [vmem:[%s3 + $0xd0] sm:$0xf] %vm968, %v892
  %1022 = vst.msk [vmem:[%s3 + $0xd4] sm:$0xf] %vm968, %v893
  %1023 = vst.msk [vmem:[%s3 + $0xd8] sm:$0xf] %vm968, %v894
  %1024 = vst.msk [vmem:[%s3 + $0xdc] sm:$0xf] %vm968, %v895
  %1025 = vst.msk [vmem:[%s3 + $0xe0] sm:$0xf] %vm968, %v896
  %1026 = vst.msk [vmem:[%s3 + $0xe4] sm:$0xf] %vm968, %v897
  %1027 = vst.msk [vmem:[%s3 + $0xe8] sm:$0xf] %vm968, %v898
  %1028 = vst.msk [vmem:[%s3 + $0xec] sm:$0xf] %vm968, %v899
  %1029 = vst.msk [vmem:[%s3 + $0xf0] sm:$0xf] %vm968, %v900
  %1030 = vst.msk [vmem:[%s3 + $0xf4] sm:$0xf] %vm968, %v901
  %1031 = vst.msk [vmem:[%s3 + $0xf8] sm:$0xf] %vm968, %v902
  %1032 = vst.msk [vmem:[%s3 + $0xfc] sm:$0xf] %vm968, %v903
  // Predicated region
  $region14: #{bottleneck_forward.3} parent=0 // pred_check
    _
  $region15: #{bottleneck_forward.3} parent=0 // pred_check_branch
    %1034 = sbr.rel (0) target = $region17
  $region16: #{bottleneck_forward.3} parent=0 // pred_region
    _
  $region17: #{bottleneck_forward.3} parent=0 // pred_fallthru
    _
  // Predicated region
  $region18: #{bottleneck_forward.3} parent=0 // pred_check
    _
  $region19: #{bottleneck_forward.3} parent=0 // pred_check_branch
    %1036 = sbr.rel (0) target = $region21
  $region20: #{bottleneck_forward.3} parent=0 // pred_region
    _
  $region21: #{bottleneck_forward.3} parent=0 // pred_fallthru
    _

// kernel: bottleneck_forward.4
$region0: #{bottleneck_forward.4}
  #allocation0 [shape = 'u32[]', space=smem, size = 0x4, offset = 0x4, fixed_abs, tag = 'smem constant byte address 0x4 - core index']
  #allocation1 [shape = 'u32[144,128]{1,0:T(1,128)}', space=vmem, size = 0x12000, scoped, tag = 'internal scratch']
  #allocation2 [shape = 'bf16[18,34,8]{2,1,0:T(8,128)(2,1)}', space=vmem, size = 0x2d000, scoped, tag = 'scratch operand']
  #allocation3 [shape = 'f32[256,8]{1,0:T(8,128)}', space=vmem, size = 0x20000, scoped, tag = 'scratch operand']
  %s0 = inlined_call_operand.vmem [shape: bf16[2,16,16,8], index: 0, kind: input, shape index: {}]
  %s1 = inlined_call_operand.vmem [shape: bf16[3,24,8], index: 1, kind: input, shape index: {}]
  %s2 = inlined_call_operand.vmem [shape: f32[1,8], index: 2, kind: input, shape index: {}]
  %s3 = inlined_call_operand.vmem [shape: bf16[2,16,16,8], index: 3, kind: output, shape index: {}]
  %s4 = sld [smem:[#allocation0]]
  $region49: #{bottleneck_forward.4} parent=0
    _
  %s6 = ssub.s32 1, %s4
  %s7 = scalar_select 0, %s6, %s4
  loop: start=0, step=1, limit=6
  $region2: #{bottleneck_forward.4} parent=0 // loop_pre_header
    _
  $region3: #{bottleneck_forward.4} parent=0 // loop_header
    %s9 = sphi 0, %s13
    %p10 = scmp.ge.s32.totalorder %s9, 6
    %s16 = sphi 0, %s35
    %s17 = sphi 0, %s31
    %s18 = sphi 0, %s27
    %s19 = sphi 0, %s16
    %s20 = sphi 0, %s17
    %s21 = sphi 0, %s18
    %s22 = sphi 0, %s19
    %s23 = sphi 0, %s20
    %s24 = sphi 0, %s21
    %s38 = sphi 0, %s40
    %s41 = sphi 0, %s38
    %s42 = sphi 0, %s41
    %s58 = sphi 0, %s42
    %s64 = sphi 0, %s66
    %s67 = sphi 0, %s64
    %s68 = sphi 0, %s67
    %s84 = sphi 0, %s68
    %s90 = sphi 0, %s92
    %s93 = sphi 0, %s90
    %s94 = sphi 0, %s93
    %s110 = sphi 0, %s94
    %s120 = sphi 0, %s122
    %s123 = sphi 0, %s120
    %s124 = sphi 0, %s123
    %s140 = sphi 0, %s124
  $region4: #{bottleneck_forward.4} parent=0 // loop_header_branch
    %12 = sbr.rel (%p10) target = $region8
  $region5: #{bottleneck_forward.4} parent=0 // loop_body
    %s14 = ssub.s32 %s9, 1
    %s15 = ssub.s32 %s9, 2
    %s25 = sadd.s32 1, %s18
    %p26 = scmp.ge.s32.totalorder %s25, 1
    %s27 = scalar_select %p26, 0, %s25
    %s28 = sadd.s32 1, %s17
    %s29 = scalar_select %p26, %s28, %s17
    %p30 = scmp.ge.s32.totalorder %s29, 2
    %s31 = scalar_select %p30, 0, %s29
    %s32 = sadd.s32 1, %s16
    %s33 = scalar_select %p30, %s32, %s16
    %p34 = scmp.ge.s32.totalorder %s33, 2
    %s35 = scalar_select %p34, 0, %s33
    %s36 = ssub.s32 %s16, %s35
    %p37 = scmp.eq.s32.totalorder %s36, 0
    %s39 = sadd.s32 %s38, 1
    %s40 = scalar_select %p37, %s38, %s39
    %p43 = pneg %p37
    %p44 = scmp.eq.s32.totalorder %s9, 3
    %p45 = por %p43, %p44
    %p46 = scmp.ne.s32.totalorder %s38, %s41
    %p47 = scmp.eq.s32.totalorder %s9, 0
    %p48 = por %p46, %p47
    %p49 = scmp.ne.s32.totalorder %s38, %s41
    %p50 = scmp.eq.s32.totalorder %s14, 3
    %p51 = por %p49, %p50
    %p52 = scmp.ne.s32.totalorder %s41, %s42
    %p53 = scmp.eq.s32.totalorder %s14, 0
    %p54 = por %p52, %p53
    %p55 = scmp.ne.s32.totalorder %s41, %s42
    %p56 = scmp.eq.s32.totalorder %s15, 3
    %p57 = por %p55, %p56
    %p59 = scmp.ne.s32.totalorder %s42, %s58
    %p60 = scmp.eq.s32.totalorder %s15, 0
    %p61 = por %p59, %p60
    %s62 = ssub.s32 %s18, %s27
    %p63 = scmp.eq.s32.totalorder %s62, 0
    %s65 = sadd.s32 %s64, 1
    %s66 = scalar_select %p63, %s64, %s65
    %p69 = pneg %p63
    %p70 = scmp.eq.s32.totalorder %s9, 3
    %p71 = por %p69, %p70
    %p72 = scmp.ne.s32.totalorder %s64, %s67
    %p73 = scmp.eq.s32.totalorder %s9, 0
    %p74 = por %p72, %p73
    %p75 = scmp.ne.s32.totalorder %s64, %s67
    %p76 = scmp.eq.s32.totalorder %s14, 3
    %p77 = por %p75, %p76
    %p78 = scmp.ne.s32.totalorder %s67, %s68
    %p79 = scmp.eq.s32.totalorder %s14, 0
    %p80 = por %p78, %p79
    %p81 = scmp.ne.s32.totalorder %s67, %s68
    %p82 = scmp.eq.s32.totalorder %s15, 3
    %p83 = por %p81, %p82
    %p85 = scmp.ne.s32.totalorder %s68, %s84
    %p86 = scmp.eq.s32.totalorder %s15, 0
    %p87 = por %p85, %p86
    %s88 = ssub.s32 %s18, %s27
    %p89 = scmp.eq.s32.totalorder %s88, 0
    %s91 = sadd.s32 %s90, 1
    %s92 = scalar_select %p89, %s90, %s91
    %p95 = pneg %p89
    %p96 = scmp.eq.s32.totalorder %s9, 3
    %p97 = por %p95, %p96
    %p98 = scmp.ne.s32.totalorder %s90, %s93
    %p99 = scmp.eq.s32.totalorder %s9, 0
    %p100 = por %p98, %p99
    %p101 = scmp.ne.s32.totalorder %s90, %s93
    %p102 = scmp.eq.s32.totalorder %s14, 3
    %p103 = por %p101, %p102
    %p104 = scmp.ne.s32.totalorder %s93, %s94
    %p105 = scmp.eq.s32.totalorder %s14, 0
    %p106 = por %p104, %p105
    %p107 = scmp.ne.s32.totalorder %s93, %s94
    %p108 = scmp.eq.s32.totalorder %s15, 3
    %p109 = por %p107, %p108
    %p111 = scmp.ne.s32.totalorder %s94, %s110
    %p112 = scmp.eq.s32.totalorder %s15, 0
    %p113 = por %p111, %p112
    %s114 = ssub.s32 %s16, %s35
    %s115 = ssub.s32 %s17, %s31
    %s116 = sor.u32 %s114, %s115
    %s117 = ssub.s32 %s18, %s27
    %s118 = sor.u32 %s116, %s117
    %p119 = scmp.eq.s32.totalorder %s118, 0
    %s121 = sadd.s32 %s120, 1
    %s122 = scalar_select %p119, %s120, %s121
    %p125 = pneg %p119
    %p126 = scmp.eq.s32.totalorder %s9, 3
    %p127 = por %p125, %p126
    %p128 = scmp.ne.s32.totalorder %s120, %s123
    %p129 = scmp.eq.s32.totalorder %s9, 0
    %p130 = por %p128, %p129
    %p131 = scmp.ne.s32.totalorder %s120, %s123
    %p132 = scmp.eq.s32.totalorder %s14, 3
    %p133 = por %p131, %p132
    %p134 = scmp.ne.s32.totalorder %s123, %s124
    %p135 = scmp.eq.s32.totalorder %s14, 0
    %p136 = por %p134, %p135
    %p137 = scmp.ne.s32.totalorder %s123, %s124
    %p138 = scmp.eq.s32.totalorder %s15, 3
    %p139 = por %p137, %p138
    %p141 = scmp.ne.s32.totalorder %s124, %s140
    %p142 = scmp.eq.s32.totalorder %s15, 0
    %p143 = por %p141, %p142
    %p144 = scmp.le.s32.totalorder 1, %s9
    %p145 = scmp.lt.s32.totalorder %s9, 5
    %p146 = pnand %p144, %p145
    %p147 = pneg %p146
    // Predicated region
    $region9: #{bottleneck_forward.4} parent=5 // pred_check
      _
    $region10: #{bottleneck_forward.4} parent=5 // pred_check_branch
      %149 = sbr.rel (%p146) target = $region12
    $region11: #{bottleneck_forward.4} parent=5 // pred_region
      %s150 = ssub.s32 %s9, 1
      // Predicated region
      $region13: #{bottleneck_forward.4} parent=11 // pred_check
        %p151 = pneg %p80
      $region14: #{bottleneck_forward.4} parent=11 // pred_check_branch
        %153 = sbr.rel (%p151) target = $region16
      $region15: #{bottleneck_forward.4} parent=11 // pred_region
        %p154 = scmp.lt.s32.totalorder %s21, 0
        %s155 = scalar_select %p154, %s21, 0
        %s156 = smul.addr %s155, 4
        %s157 = scalar_lea.vmem %s1, %s156
      $region16: #{bottleneck_forward.4} parent=11 // pred_fallthru
        _
      // Predicated region
      $region17: #{bottleneck_forward.4} parent=11 // pred_check
        %p158 = pneg %p106
      $region18: #{bottleneck_forward.4} parent=11 // pred_check_branch
        %160 = sbr.rel (%p158) target = $region20
      $region19: #{bottleneck_forward.4} parent=11 // pred_region
        %p161 = scmp.lt.s32.totalorder %s21, 0
        %s162 = scalar_select %p161, %s21, 0
        %s163 = scalar_lea.vmem %s2, %s162
      $region20: #{bottleneck_forward.4} parent=11 // pred_fallthru
        _
    $region12: #{bottleneck_forward.4} parent=5 // pred_fallthru
      _
    %p164 = scmp.lt.s32.totalorder %s9, 4
    // Predicated region
    $region21: #{bottleneck_forward.4} parent=5 // pred_check
      %p165 = pneg %p164
    $region22: #{bottleneck_forward.4} parent=5 // pred_check_branch
      %167 = sbr.rel (%p165) target = $region24
    $region23: #{bottleneck_forward.4} parent=5 // pred_region
      // Predicated region
      $region25: #{bottleneck_forward.4} parent=23 // pred_check
        %p168 = pneg %p48
      $region26: #{bottleneck_forward.4} parent=23 // pred_check_branch
        %170 = sbr.rel (%p168) target = $region28
      $region27: #{bottleneck_forward.4} parent=23 // pred_region
        %p171 = scmp.lt.s32.totalorder %s16, 1
        %s172 = scalar_select %p171, %s16, 1
        %s173 = smul.addr %s172, 32
        %s174 = smul.addr %s173, 4
        %s175 = scalar_lea.vmem %s0, %s174
      $region28: #{bottleneck_forward.4} parent=23 // pred_fallthru
        _
    $region24: #{bottleneck_forward.4} parent=5 // pred_fallthru
      _
    %p176 = scmp.le.s32.totalorder 1, %s9
    %p177 = scmp.lt.s32.totalorder %s9, 5
    %p178 = pnand %p176, %p177
    %p179 = pneg %p178
    // Predicated region
    $region29: #{bottleneck_forward.4} parent=5 // pred_check
      _
    $region30: #{bottleneck_forward.4} parent=5 // pred_check_branch
      %181 = sbr.rel (%p178) target = $region32
    $region31: #{bottleneck_forward.4} parent=5 // pred_region
      %s182 = ssub.s32 %s9, 1
      %p183 = scmp.lt.s32.totalorder %s19, 1
      %s184 = scalar_select %p183, %s19, 1
      %s185 = smul.addr %s184, 32
      %s186 = smul.addr %s185, 4
      %s187 = scalar_lea.vmem %s0, %s186
      %p188 = pneg %p54
      %p189 = pneg %p51
      %p190 = scmp.lt.s32.totalorder %s21, 0
      %s191 = scalar_select %p190, %s21, 0
      %s192 = smul.addr %s191, 4
      %s193 = scalar_lea.vmem %s1, %s192
      %p194 = pneg %p80
      %p195 = pneg %p77
      %p196 = scmp.lt.s32.totalorder %s21, 0
      %s197 = scalar_select %p196, %s21, 0
      %s198 = scalar_lea.vmem %s2, %s197
      %p199 = pneg %p106
      %p200 = pneg %p103
      %p201 = pneg %p136
      %p202 = pneg %p133
      %s203 = smul.u32 8, %s20
      %p204 = scmp.lt.s32.totalorder %s19, 1
      %s205 = scalar_select %p204, %s19, 1
      %p206 = scmp.lt.s32.totalorder %s203, 15
      %s207 = scalar_select %p206, %s203, 15
      %p208 = scmp.lt.s32.totalorder %s21, 0
      %s209 = scalar_select %p208, %s21, 0
      %s210 = smul.addr %s207, 2
      %s211 = sadd.s32 %s209, %s210
      %s212 = smul.addr %s205, 32
      %s213 = sadd.s32 %s211, %s212
      %s214 = smul.addr %s213, 4
      %s215 = scalar_lea.vmem %s3, %s214
      %p216 = scmp.lt.s32.totalorder %s19, 1
      %s217 = scalar_select %p216, %s19, 1
      %s218 = smul.addr %s217, 32
      %s219 = smul.addr %s218, 4
      %s220 = scalar_lea.vmem %s0, %s219
      %p221 = scmp.lt.s32.totalorder %s21, 0
      %s222 = scalar_select %p221, %s21, 0
      %s223 = smul.addr %s222, 4
      %s224 = scalar_lea.vmem %s1, %s223
      %p225 = scmp.lt.s32.totalorder %s21, 0
      %s226 = scalar_select %p225, %s21, 0
      %s227 = scalar_lea.vmem %s2, %s226
      %s228 = smul.u32 8, %s20
      %p229 = scmp.lt.s32.totalorder %s19, 1
      %s230 = scalar_select %p229, %s19, 1
      %p231 = scmp.lt.s32.totalorder %s228, 15
      %s232 = scalar_select %p231, %s228, 15
      %p233 = scmp.lt.s32.totalorder %s21, 0
      %s234 = scalar_select %p233, %s21, 0
      %s235 = smul.addr %s232, 2
      %s236 = sadd.s32 %s234, %s235
      %s237 = smul.addr %s230, 32
      %s238 = sadd.s32 %s236, %s237
      %s239 = smul.addr %s238, 4
      %s240 = scalar_lea.vmem %s3, %s239
      %s241 = smul.u32 8, %s20
      %p243 = scmp.eq.s32.totalorder %s20, 0
      %p244 = scmp.eq.s32.totalorder %s21, 0
      %p245 = pnand %p243, %p244
      %p246 = pneg %p245
      // Predicated region
      $region33: #{bottleneck_forward.4} parent=31 // pred_check
        _
      $region34: #{bottleneck_forward.4} parent=31 // pred_check_branch
        %248 = sbr.rel (%p245) target = $region36
      $region35: #{bottleneck_forward.4} parent=31 // pred_region
        %v249 = vld [vmem:[%s220] sm:$0xf]
        %v250 = vld [vmem:[%s220 + $0x4] sm:$0xf]
        %v251 = vld [vmem:[%s220 + $0x8] sm:$0xf]
        %v252 = vld [vmem:[%s220 + $0xc] sm:$0xf]
        %v253 = vld [vmem:[%s220 + $0x10] sm:$0xf]
        %v254 = vld [vmem:[%s220 + $0x14] sm:$0xf]
        %v255 = vld [vmem:[%s220 + $0x18] sm:$0xf]
        %v256 = vld [vmem:[%s220 + $0x1c] sm:$0xf]
        %v257 = vld [vmem:[%s220 + $0x20] sm:$0xf]
        %v258 = vld [vmem:[%s220 + $0x24] sm:$0xf]
        %v259 = vld [vmem:[%s220 + $0x28] sm:$0xf]
        %v260 = vld [vmem:[%s220 + $0x2c] sm:$0xf]
        %v261 = vld [vmem:[%s220 + $0x30] sm:$0xf]
        %v262 = vld [vmem:[%s220 + $0x34] sm:$0xf]
        %v263 = vld [vmem:[%s220 + $0x38] sm:$0xf]
        %v264 = vld [vmem:[%s220 + $0x3c] sm:$0xf]
        %v265 = vld [vmem:[%s220 + $0x40] sm:$0xf]
        %v266 = vld [vmem:[%s220 + $0x44] sm:$0xf]
        %v267 = vld [vmem:[%s220 + $0x48] sm:$0xf]
        %v268 = vld [vmem:[%s220 + $0x4c] sm:$0xf]
        %v269 = vld [vmem:[%s220 + $0x50] sm:$0xf]
        %v270 = vld [vmem:[%s220 + $0x54] sm:$0xf]
        %v271 = vld [vmem:[%s220 + $0x58] sm:$0xf]
        %v272 = vld [vmem:[%s220 + $0x5c] sm:$0xf]
        %v273 = vld [vmem:[%s220 + $0x60] sm:$0xf]
        %v274 = vld [vmem:[%s220 + $0x64] sm:$0xf]
        %v275 = vld [vmem:[%s220 + $0x68] sm:$0xf]
        %v276 = vld [vmem:[%s220 + $0x6c] sm:$0xf]
        %v277 = vld [vmem:[%s220 + $0x70] sm:$0xf]
        %v278 = vld [vmem:[%s220 + $0x74] sm:$0xf]
        %v279 = vld [vmem:[%s220 + $0x78] sm:$0xf]
        %v280 = vld [vmem:[%s220 + $0x7c] sm:$0xf]
        %v313 = vunpack.c.l.b16 %v249
        %v314 = vunpack.c.l.b16 %v250
        %v315 = vunpack.c.l.b16 %v251
        %v316 = vunpack.c.l.b16 %v252
        %v317 = vunpack.c.l.b16 %v253
        %v318 = vunpack.c.l.b16 %v254
        %v319 = vunpack.c.l.b16 %v255
        %v320 = vunpack.c.l.b16 %v256
        %v321 = vunpack.c.l.b16 %v257
        %v322 = vunpack.c.l.b16 %v258
        %v323 = vunpack.c.l.b16 %v259
        %v324 = vunpack.c.l.b16 %v260
        %v325 = vunpack.c.l.b16 %v261
        %v326 = vunpack.c.l.b16 %v262
        %v327 = vunpack.c.l.b16 %v263
        %v328 = vunpack.c.l.b16 %v264
        %v329 = vunpack.c.l.b16 %v265
        %v330 = vunpack.c.l.b16 %v266
        %v331 = vunpack.c.l.b16 %v267
        %v332 = vunpack.c.l.b16 %v268
        %v333 = vunpack.c.l.b16 %v269
        %v334 = vunpack.c.l.b16 %v270
        %v335 = vunpack.c.l.b16 %v271
        %v336 = vunpack.c.l.b16 %v272
        %v337 = vunpack.c.l.b16 %v273
        %v338 = vunpack.c.l.b16 %v274
        %v339 = vunpack.c.l.b16 %v275
        %v340 = vunpack.c.l.b16 %v276
        %v341 = vunpack.c.l.b16 %v277
        %v342 = vunpack.c.l.b16 %v278
        %v343 = vunpack.c.l.b16 %v279
        %v344 = vunpack.c.l.b16 %v280
        %v345 = vpack.c.b16 %v314, %v313
        %v346 = vpack.c.b16 %v316, %v315
        %v347 = vpack.c.b16 %v318, %v317
        %v348 = vpack.c.b16 %v320, %v319
        %v349 = vpack.c.b16 %v322, %v321
        %v350 = vpack.c.b16 %v324, %v323
        %v351 = vpack.c.b16 %v326, %v325
        %v352 = vpack.c.b16 %v328, %v327
        %v353 = vpack.c.b16 %v330, %v329
        %v354 = vpack.c.b16 %v332, %v331
        %v355 = vpack.c.b16 %v334, %v333
        %v356 = vpack.c.b16 %v336, %v335
        %v357 = vpack.c.b16 %v338, %v337
        %v358 = vpack.c.b16 %v340, %v339
        %v359 = vpack.c.b16 %v342, %v341
        %v360 = vpack.c.b16 %v344, %v343
        %v362 = vshrl.u32 %v345, 16
        %v364 = vrot.slane %v362, 7
        %v365 = vshll.u32 %v345, 16
        %v367 = vor.u32 %v364, %v365
        %v369 = vshrl.u32 %v346, 16
        %v371 = vrot.slane %v369, 7
        %v372 = vshll.u32 %v346, 16
        %v374 = vor.u32 %v371, %v372
        %v376 = vshrl.u32 %v347, 16
        %v378 = vrot.slane %v376, 7
        %v379 = vshll.u32 %v347, 16
        %v381 = vor.u32 %v378, %v379
        %v383 = vshrl.u32 %v348, 16
        %v385 = vrot.slane %v383, 7
        %v386 = vshll.u32 %v348, 16
        %v388 = vor.u32 %v385, %v386
        %v390 = vshrl.u32 %v349, 16
        %v392 = vrot.slane %v390, 7
        %v393 = vshll.u32 %v349, 16
        %v395 = vor.u32 %v392, %v393
        %v397 = vshrl.u32 %v350, 16
        %v399 = vrot.slane %v397, 7
        %v400 = vshll.u32 %v350, 16
        %v402 = vor.u32 %v399, %v400
        %v404 = vshrl.u32 %v351, 16
        %v406 = vrot.slane %v404, 7
        %v407 = vshll.u32 %v351, 16
        %v409 = vor.u32 %v406, %v407
        %v411 = vshrl.u32 %v352, 16
        %v413 = vrot.slane %v411, 7
        %v414 = vshll.u32 %v352, 16
        %v416 = vor.u32 %v413, %v414
        %v418 = vshrl.u32 %v353, 16
        %v420 = vrot.slane %v418, 7
        %v421 = vshll.u32 %v353, 16
        %v423 = vor.u32 %v420, %v421
        %v425 = vshrl.u32 %v354, 16
        %v427 = vrot.slane %v425, 7
        %v428 = vshll.u32 %v354, 16
        %v430 = vor.u32 %v427, %v428
        %v432 = vshrl.u32 %v355, 16
        %v434 = vrot.slane %v432, 7
        %v435 = vshll.u32 %v355, 16
        %v437 = vor.u32 %v434, %v435
        %v439 = vshrl.u32 %v356, 16
        %v441 = vrot.slane %v439, 7
        %v442 = vshll.u32 %v356, 16
        %v444 = vor.u32 %v441, %v442
        %v446 = vshrl.u32 %v357, 16
        %v448 = vrot.slane %v446, 7
        %v449 = vshll.u32 %v357, 16
        %v451 = vor.u32 %v448, %v449
        %v453 = vshrl.u32 %v358, 16
        %v455 = vrot.slane %v453, 7
        %v456 = vshll.u32 %v358, 16
        %v458 = vor.u32 %v455, %v456
        %v460 = vshrl.u32 %v359, 16
        %v462 = vrot.slane %v460, 7
        %v463 = vshll.u32 %v359, 16
        %v465 = vor.u32 %v462, %v463
        %v467 = vshrl.u32 %v360, 16
        %v469 = vrot.slane %v467, 7
        %v470 = vshll.u32 %v360, 16
        %v472 = vor.u32 %v469, %v470
        %vm505 = vcmask 1040384
        %vm506 = vsmask.f32 256
        %vm507 = vmand %vm505, %vm506
        %v508 = vsel %vm507, 0, %v367
        %v509 = vsel %vm507, 0, %v374
        %v510 = vsel %vm507, 0, %v381
        %v511 = vsel %vm507, 0, %v388
        %v512 = vsel %vm507, 0, %v395
        %v513 = vsel %vm507, 0, %v402
        %v514 = vsel %vm507, 0, %v409
        %v515 = vsel %vm507, 0, %v416
        %v516 = vsel %vm507, 0, %v423
        %v517 = vsel %vm507, 0, %v430
        %v518 = vsel %vm507, 0, %v437
        %v519 = vsel %vm507, 0, %v444
        %v520 = vsel %vm507, 0, %v451
        %v521 = vsel %vm507, 0, %v458
        %v522 = vsel %vm507, 0, %v465
        %v523 = vsel %vm507, 0, %v472
        %v524 = vsel %vm507, %v364, 0
        %v525 = vsel %vm507, %v371, 0
        %v526 = vsel %vm507, %v378, 0
        %v527 = vsel %vm507, %v385, 0
        %v528 = vsel %vm507, %v392, 0
        %v529 = vsel %vm507, %v399, 0
        %v530 = vsel %vm507, %v406, 0
        %v531 = vsel %vm507, %v413, 0
        %v532 = vsel %vm507, %v420, 0
        %v533 = vsel %vm507, %v427, 0
        %v534 = vsel %vm507, %v434, 0
        %v535 = vsel %vm507, %v441, 0
        %v536 = vsel %vm507, %v448, 0
        %v537 = vsel %vm507, %v455, 0
        %v538 = vsel %vm507, %v462, 0
        %v539 = vsel %vm507, %v469, 0
        %v573 = vunpack.c.l.b16 0
        %v574 = vunpack.c.h.b16 0
        %v575 = vunpack.c.l.b16 %v508
        %v576 = vunpack.c.h.b16 %v508
        %v577 = vunpack.c.l.b16 %v524
        %v578 = vunpack.c.h.b16 %v524
        %v579 = vunpack.c.l.b16 %v509
        %v580 = vunpack.c.h.b16 %v509
        %v581 = vunpack.c.l.b16 %v525
        %v582 = vunpack.c.h.b16 %v525
        %v583 = vunpack.c.l.b16 %v510
        %v584 = vunpack.c.h.b16 %v510
        %v585 = vunpack.c.l.b16 %v526
        %v586 = vunpack.c.h.b16 %v526
        %v587 = vunpack.c.l.b16 %v511
        %v588 = vunpack.c.h.b16 %v511
        %v589 = vunpack.c.l.b16 %v527
        %v590 = vunpack.c.h.b16 %v527
        %v591 = vunpack.c.l.b16 %v512
        %v592 = vunpack.c.h.b16 %v512
        %v593 = vunpack.c.l.b16 %v528
        %v594 = vunpack.c.h.b16 %v528
        %v595 = vunpack.c.l.b16 %v513
        %v596 = vunpack.c.h.b16 %v513
        %v597 = vunpack.c.l.b16 %v529
        %v598 = vunpack.c.h.b16 %v529
        %v599 = vunpack.c.l.b16 %v514
        %v600 = vunpack.c.h.b16 %v514
        %v601 = vunpack.c.l.b16 %v530
        %v602 = vunpack.c.h.b16 %v530
        %v603 = vunpack.c.l.b16 %v515
        %v604 = vunpack.c.h.b16 %v515
        %v605 = vunpack.c.l.b16 %v531
        %v606 = vunpack.c.h.b16 %v531
        %v607 = vunpack.c.l.b16 %v516
        %v608 = vunpack.c.h.b16 %v516
        %v609 = vunpack.c.l.b16 %v532
        %v610 = vunpack.c.h.b16 %v532
        %v611 = vunpack.c.l.b16 %v517
        %v612 = vunpack.c.h.b16 %v517
        %v613 = vunpack.c.l.b16 %v533
        %v614 = vunpack.c.h.b16 %v533
        %v615 = vunpack.c.l.b16 %v518
        %v616 = vunpack.c.h.b16 %v518
        %v617 = vunpack.c.l.b16 %v534
        %v618 = vunpack.c.h.b16 %v534
        %v619 = vunpack.c.l.b16 %v519
        %v620 = vunpack.c.h.b16 %v519
        %v621 = vunpack.c.l.b16 %v535
        %v622 = vunpack.c.h.b16 %v535
        %v623 = vunpack.c.l.b16 %v520
        %v624 = vunpack.c.h.b16 %v520
        %v625 = vunpack.c.l.b16 %v536
        %v626 = vunpack.c.h.b16 %v536
        %v627 = vunpack.c.l.b16 %v521
        %v628 = vunpack.c.h.b16 %v521
        %v629 = vunpack.c.l.b16 %v537
        %v630 = vunpack.c.h.b16 %v537
        %v631 = vunpack.c.l.b16 %v522
        %v632 = vunpack.c.h.b16 %v522
        %v633 = vunpack.c.l.b16 %v538
        %v634 = vunpack.c.h.b16 %v538
        %v635 = vunpack.c.l.b16 %v523
        %v636 = vunpack.c.h.b16 %v523
        %v637 = vunpack.c.l.b16 %v539
        %v638 = vunpack.c.h.b16 %v539
        %v639 = vpack.c.b16 %v573, %v573
        %v640 = vpack.c.b16 %v574, %v574
        %v641 = vpack.c.b16 %v575, %v575
        %v642 = vpack.c.b16 %v576, %v576
        %v643 = vpack.c.b16 %v577, %v577
        %v644 = vpack.c.b16 %v578, %v578
        %v645 = vpack.c.b16 %v579, %v579
        %v646 = vpack.c.b16 %v580, %v580
        %v647 = vpack.c.b16 %v581, %v581
        %v648 = vpack.c.b16 %v582, %v582
        %v649 = vpack.c.b16 %v583, %v583
        %v650 = vpack.c.b16 %v584, %v584
        %v651 = vpack.c.b16 %v585, %v585
        %v652 = vpack.c.b16 %v586, %v586
        %v653 = vpack.c.b16 %v587, %v587
        %v654 = vpack.c.b16 %v588, %v588
        %v655 = vpack.c.b16 %v589, %v589
        %v656 = vpack.c.b16 %v590, %v590
        %v657 = vpack.c.b16 %v591, %v591
        %v658 = vpack.c.b16 %v592, %v592
        %v659 = vpack.c.b16 %v593, %v593
        %v660 = vpack.c.b16 %v594, %v594
        %v661 = vpack.c.b16 %v595, %v595
        %v662 = vpack.c.b16 %v596, %v596
        %v663 = vpack.c.b16 %v597, %v597
        %v664 = vpack.c.b16 %v598, %v598
        %v665 = vpack.c.b16 %v599, %v599
        %v666 = vpack.c.b16 %v600, %v600
        %v667 = vpack.c.b16 %v601, %v601
        %v668 = vpack.c.b16 %v602, %v602
        %v669 = vpack.c.b16 %v603, %v603
        %v670 = vpack.c.b16 %v604, %v604
        %v671 = vpack.c.b16 %v605, %v605
        %v672 = vpack.c.b16 %v606, %v606
        %v673 = vpack.c.b16 %v607, %v607
        %v674 = vpack.c.b16 %v608, %v608
        %v675 = vpack.c.b16 %v609, %v609
        %v676 = vpack.c.b16 %v610, %v610
        %v677 = vpack.c.b16 %v611, %v611
        %v678 = vpack.c.b16 %v612, %v612
        %v679 = vpack.c.b16 %v613, %v613
        %v680 = vpack.c.b16 %v614, %v614
        %v681 = vpack.c.b16 %v615, %v615
        %v682 = vpack.c.b16 %v616, %v616
        %v683 = vpack.c.b16 %v617, %v617
        %v684 = vpack.c.b16 %v618, %v618
        %v685 = vpack.c.b16 %v619, %v619
        %v686 = vpack.c.b16 %v620, %v620
        %v687 = vpack.c.b16 %v621, %v621
        %v688 = vpack.c.b16 %v622, %v622
        %v689 = vpack.c.b16 %v623, %v623
        %v690 = vpack.c.b16 %v624, %v624
        %v691 = vpack.c.b16 %v625, %v625
        %v692 = vpack.c.b16 %v626, %v626
        %v693 = vpack.c.b16 %v627, %v627
        %v694 = vpack.c.b16 %v628, %v628
        %v695 = vpack.c.b16 %v629, %v629
        %v696 = vpack.c.b16 %v630, %v630
        %v697 = vpack.c.b16 %v631, %v631
        %v698 = vpack.c.b16 %v632, %v632
        %v699 = vpack.c.b16 %v633, %v633
        %v700 = vpack.c.b16 %v634, %v634
        %v701 = vpack.c.b16 %v635, %v635
        %v702 = vpack.c.b16 %v636, %v636
        %v703 = vpack.c.b16 %v637, %v637
        %v704 = vpack.c.b16 %v638, %v638
        %vm771 = vcmask 60416
        %772 = vst.msk [vmem:[#allocation2] sm:$0xf] %vm771, %v639
        %773 = vst.msk [vmem:[#allocation2 + $0x4] sm:$0xf] %vm771, %v640
        %774 = vst.msk [vmem:[#allocation2 + $0x8] sm:$0xf] %vm771, %v639
        %775 = vst.msk [vmem:[#allocation2 + $0xc] sm:$0xf] %vm771, %v640
        %vm776 = vcmask 57344
        %777 = vst.msk [vmem:[#allocation2 + $0x10] sm:$0x1] %vm776, %v639
        %778 = vst.msk [vmem:[#allocation2 + $0x14] sm:$0xf] %vm771, %v641
        %779 = vst.msk [vmem:[#allocation2 + $0x18] sm:$0xf] %vm771, %v642
        %780 = vst.msk [vmem:[#allocation2 + $0x1c] sm:$0xf] %vm771, %v643
        %781 = vst.msk [vmem:[#allocation2 + $0x20] sm:$0xf] %vm771, %v644
        %782 = vst.msk [vmem:[#allocation2 + $0x24] sm:$0x1] %vm776, %v639
        %783 = vst.msk [vmem:[#allocation2 + $0x28] sm:$0xf] %vm771, %v645
        %784 = vst.msk [vmem:[#allocation2 + $0x2c] sm:$0xf] %vm771, %v646
        %785 = vst.msk [vmem:[#allocation2 + $0x30] sm:$0xf] %vm771, %v647
        %786 = vst.msk [vmem:[#allocation2 + $0x34] sm:$0xf] %vm771, %v648
        %787 = vst.msk [vmem:[#allocation2 + $0x38] sm:$0x1] %vm776, %v639
        %788 = vst.msk [vmem:[#allocation2 + $0x3c] sm:$0xf] %vm771, %v649
        %789 = vst.msk [vmem:[#allocation2 + $0x40] sm:$0xf] %vm771, %v650
        %790 = vst.msk [vmem:[#allocation2 + $0x44] sm:$0xf] %vm771, %v651
        %791 = vst.msk [vmem:[#allocation2 + $0x48] sm:$0xf] %vm771, %v652
        %792 = vst.msk [vmem:[#allocation2 + $0x4c] sm:$0x1] %vm776, %v639
        %793 = vst.msk [vmem:[#allocation2 + $0x50] sm:$0xf] %vm771, %v653
        %794 = vst.msk [vmem:[#allocation2 + $0x54] sm:$0xf] %vm771, %v654
        %795 = vst.msk [vmem:[#allocation2 + $0x58] sm:$0xf] %vm771, %v655
        %796 = vst.msk [vmem:[#allocation2 + $0x5c] sm:$0xf] %vm771, %v656
        %797 = vst.msk [vmem:[#allocation2 + $0x60] sm:$0x1] %vm776, %v639
        %798 = vst.msk [vmem:[#allocation2 + $0x64] sm:$0xf] %vm771, %v657
        %799 = vst.msk [vmem:[#allocation2 + $0x68] sm:$0xf] %vm771, %v658
        %800 = vst.msk [vmem:[#allocation2 + $0x6c] sm:$0xf] %vm771, %v659
        %801 = vst.msk [vmem:[#allocation2 + $0x70] sm:$0xf] %vm771, %v660
        %802 = vst.msk [vmem:[#allocation2 + $0x74] sm:$0x1] %vm776, %v639
        %803 = vst.msk [vmem:[#allocation2 + $0x78] sm:$0xf] %vm771, %v661
        %804 = vst.msk [vmem:[#allocation2 + $0x7c] sm:$0xf] %vm771, %v662
        %805 = vst.msk [vmem:[#allocation2 + $0x80] sm:$0xf] %vm771, %v663
        %806 = vst.msk [vmem:[#allocation2 + $0x84] sm:$0xf] %vm771, %v664
        %807 = vst.msk [vmem:[#allocation2 + $0x88] sm:$0x1] %vm776, %v639
        %808 = vst.msk [vmem:[#allocation2 + $0x8c] sm:$0xf] %vm771, %v665
        %809 = vst.msk [vmem:[#allocation2 + $0x90] sm:$0xf] %vm771, %v666
        %810 = vst.msk [vmem:[#allocation2 + $0x94] sm:$0xf] %vm771, %v667
        %811 = vst.msk [vmem:[#allocation2 + $0x98] sm:$0xf] %vm771, %v668
        %812 = vst.msk [vmem:[#allocation2 + $0x9c] sm:$0x1] %vm776, %v639
        %813 = vst.msk [vmem:[#allocation2 + $0xa0] sm:$0xf] %vm771, %v669
        %814 = vst.msk [vmem:[#allocation2 + $0xa4] sm:$0xf] %vm771, %v670
        %815 = vst.msk [vmem:[#allocation2 + $0xa8] sm:$0xf] %vm771, %v671
        %816 = vst.msk [vmem:[#allocation2 + $0xac] sm:$0xf] %vm771, %v672
        %817 = vst.msk [vmem:[#allocation2 + $0xb0] sm:$0x1] %vm776, %v639
        %818 = vst.msk [vmem:[#allocation2 + $0xb4] sm:$0xf] %vm771, %v673
        %819 = vst.msk [vmem:[#allocation2 + $0xb8] sm:$0xf] %vm771, %v674
        %820 = vst.msk [vmem:[#allocation2 + $0xbc] sm:$0xf] %vm771, %v675
        %821 = vst.msk [vmem:[#allocation2 + $0xc0] sm:$0xf] %vm771, %v676
        %822 = vst.msk [vmem:[#allocation2 + $0xc4] sm:$0x1] %vm776, %v639
        %823 = vst.msk [vmem:[#allocation2 + $0xc8] sm:$0xf] %vm771, %v677
        %824 = vst.msk [vmem:[#allocation2 + $0xcc] sm:$0xf] %vm771, %v678
        %825 = vst.msk [vmem:[#allocation2 + $0xd0] sm:$0xf] %vm771, %v679
        %826 = vst.msk [vmem:[#allocation2 + $0xd4] sm:$0xf] %vm771, %v680
        %827 = vst.msk [vmem:[#allocation2 + $0xd8] sm:$0x1] %vm776, %v639
        %828 = vst.msk [vmem:[#allocation2 + $0xdc] sm:$0xf] %vm771, %v681
        %829 = vst.msk [vmem:[#allocation2 + $0xe0] sm:$0xf] %vm771, %v682
        %830 = vst.msk [vmem:[#allocation2 + $0xe4] sm:$0xf] %vm771, %v683
        %831 = vst.msk [vmem:[#allocation2 + $0xe8] sm:$0xf] %vm771, %v684
        %832 = vst.msk [vmem:[#allocation2 + $0xec] sm:$0x1] %vm776, %v639
        %833 = vst.msk [vmem:[#allocation2 + $0xf0] sm:$0xf] %vm771, %v685
        %834 = vst.msk [vmem:[#allocation2 + $0xf4] sm:$0xf] %vm771, %v686
        %835 = vst.msk [vmem:[#allocation2 + $0xf8] sm:$0xf] %vm771, %v687
        %836 = vst.msk [vmem:[#allocation2 + $0xfc] sm:$0xf] %vm771, %v688
        %837 = vst.msk [vmem:[#allocation2 + $0x100] sm:$0x1] %vm776, %v639
        %838 = vst.msk [vmem:[#allocation2 + $0x104] sm:$0xf] %vm771, %v689
        %839 = vst.msk [vmem:[#allocation2 + $0x108] sm:$0xf] %vm771, %v690
        %840 = vst.msk [vmem:[#allocation2 + $0x10c] sm:$0xf] %vm771, %v691
        %841 = vst.msk [vmem:[#allocation2 + $0x110] sm:$0xf] %vm771, %v692
        %842 = vst.msk [vmem:[#allocation2 + $0x114] sm:$0x1] %vm776, %v639
        %843 = vst.msk [vmem:[#allocation2 + $0x118] sm:$0xf] %vm771, %v693
        %844 = vst.msk [vmem:[#allocation2 + $0x11c] sm:$0xf] %vm771, %v694
        %845 = vst.msk [vmem:[#allocation2 + $0x120] sm:$0xf] %vm771, %v695
        %846 = vst.msk [vmem:[#allocation2 + $0x124] sm:$0xf] %vm771, %v696
        %847 = vst.msk [vmem:[#allocation2 + $0x128] sm:$0x1] %vm776, %v639
        %848 = vst.msk [vmem:[#allocation2 + $0x12c] sm:$0xf] %vm771, %v697
        %849 = vst.msk [vmem:[#allocation2 + $0x130] sm:$0xf] %vm771, %v698
        %850 = vst.msk [vmem:[#allocation2 + $0x134] sm:$0xf] %vm771, %v699
        %851 = vst.msk [vmem:[#allocation2 + $0x138] sm:$0xf] %vm771, %v700
        %852 = vst.msk [vmem:[#allocation2 + $0x13c] sm:$0x1] %vm776, %v639
        %853 = vst.msk [vmem:[#allocation2 + $0x140] sm:$0xf] %vm771, %v701
        %854 = vst.msk [vmem:[#allocation2 + $0x144] sm:$0xf] %vm771, %v702
        %855 = vst.msk [vmem:[#allocation2 + $0x148] sm:$0xf] %vm771, %v703
        %856 = vst.msk [vmem:[#allocation2 + $0x14c] sm:$0xf] %vm771, %v704
        %857 = vst.msk [vmem:[#allocation2 + $0x150] sm:$0x1] %vm776, %v639
        %858 = vst.msk [vmem:[#allocation2 + $0x154] sm:$0xf] %vm771, %v639
        %859 = vst.msk [vmem:[#allocation2 + $0x158] sm:$0xf] %vm771, %v640
        %860 = vst.msk [vmem:[#allocation2 + $0x15c] sm:$0xf] %vm771, %v639
        %861 = vst.msk [vmem:[#allocation2 + $0x160] sm:$0xf] %vm771, %v640
        %862 = vst.msk [vmem:[#allocation2 + $0x164] sm:$0x1] %vm776, %v639
      $region36: #{bottleneck_forward.4} parent=31 // pred_fallthru
        _
      %s863 = smul.u32 %s20, 8
      %s864 = smul.u32 %s863, 5
      %s865 = smul.addr %s864, 4
      %s866 = scalar_lea.vmem [#allocation2], %s865
      %v867 = vld [vmem:[%s866] sm:$0xf]
      %v868 = vld [vmem:[%s866 + $0x4] sm:$0xf]
      %v869 = vld [vmem:[%s866 + $0x8] sm:$0xf]
      %v870 = vld [vmem:[%s866 + $0xc] sm:$0xf]
      %v871 = vld [vmem:[%s866 + $0x14] sm:$0xf]
      %v872 = vld [vmem:[%s866 + $0x18] sm:$0xf]
      %v873 = vld [vmem:[%s866 + $0x1c] sm:$0xf]
      %v874 = vld [vmem:[%s866 + $0x20] sm:$0xf]
      %v875 = vld [vmem:[%s866 + $0x28] sm:$0xf]
      %v876 = vld [vmem:[%s866 + $0x2c] sm:$0xf]
      %v877 = vld [vmem:[%s866 + $0x30] sm:$0xf]
      %v878 = vld [vmem:[%s866 + $0x34] sm:$0xf]
      %v879 = vld [vmem:[%s866 + $0x3c] sm:$0xf]
      %v880 = vld [vmem:[%s866 + $0x40] sm:$0xf]
      %v881 = vld [vmem:[%s866 + $0x44] sm:$0xf]
      %v882 = vld [vmem:[%s866 + $0x48] sm:$0xf]
      %v883 = vld [vmem:[%s866 + $0x50] sm:$0xf]
      %v884 = vld [vmem:[%s866 + $0x54] sm:$0xf]
      %v885 = vld [vmem:[%s866 + $0x58] sm:$0xf]
      %v886 = vld [vmem:[%s866 + $0x5c] sm:$0xf]
      %v887 = vld [vmem:[%s866 + $0x64] sm:$0xf]
      %v888 = vld [vmem:[%s866 + $0x68] sm:$0xf]
      %v889 = vld [vmem:[%s866 + $0x6c] sm:$0xf]
      %v890 = vld [vmem:[%s866 + $0x70] sm:$0xf]
      %v891 = vld [vmem:[%s866 + $0x78] sm:$0xf]
      %v892 = vld [vmem:[%s866 + $0x7c] sm:$0xf]
      %v893 = vld [vmem:[%s866 + $0x80] sm:$0xf]
      %v894 = vld [vmem:[%s866 + $0x84] sm:$0xf]
      %v895 = vld [vmem:[%s866 + $0x8c] sm:$0xf]
      %v896 = vld [vmem:[%s866 + $0x90] sm:$0xf]
      %v897 = vld [vmem:[%s866 + $0x94] sm:$0xf]
      %v898 = vld [vmem:[%s866 + $0x98] sm:$0xf]
      %v899 = vld [vmem:[%s866 + $0xa0] sm:$0xf]
      %v900 = vld [vmem:[%s866 + $0xa4] sm:$0xf]
      %v901 = vld [vmem:[%s866 + $0xa8] sm:$0xf]
      %v902 = vld [vmem:[%s866 + $0xac] sm:$0xf]
      %v903 = vld [vmem:[%s866 + $0xb4] sm:$0xf]
      %v904 = vld [vmem:[%s866 + $0xb8] sm:$0xf]
      %v905 = vld [vmem:[%s866 + $0xbc] sm:$0xf]
      %v906 = vld [vmem:[%s866 + $0xc0] sm:$0xf]
      %v907 = vld [vmem:[%s866 + $0x10] sm:$0x1]
      %v908 = vld [vmem:[%s866 + $0x24] sm:$0x1]
      %v909 = vld [vmem:[%s866 + $0x38] sm:$0x1]
      %v910 = vld [vmem:[%s866 + $0x4c] sm:$0x1]
      %v911 = vld [vmem:[%s866 + $0x60] sm:$0x1]
      %v912 = vld [vmem:[%s866 + $0x74] sm:$0x1]
      %v913 = vld [vmem:[%s866 + $0x88] sm:$0x1]
      %v914 = vld [vmem:[%s866 + $0x9c] sm:$0x1]
      %v915 = vld [vmem:[%s866 + $0xb0] sm:$0x1]
      %v916 = vld [vmem:[%s866 + $0xc4] sm:$0x1]
      %v917 = vld [vmem:[%s866] sm:$0xe]
      %v918 = vld [vmem:[%s866 + $0x14] sm:$0xe]
      %v919 = vld [vmem:[%s866 + $0x28] sm:$0xe]
      %v920 = vld [vmem:[%s866 + $0x3c] sm:$0xe]
      %v921 = vld [vmem:[%s866 + $0x50] sm:$0xe]
      %v922 = vld [vmem:[%s866 + $0x64] sm:$0xe]
      %v923 = vld [vmem:[%s866 + $0x78] sm:$0xe]
      %v924 = vld [vmem:[%s866 + $0x8c] sm:$0xe]
      %v925 = vld [vmem:[%s866 + $0xa0] sm:$0xe]
      %v926 = vld [vmem:[%s866 + $0xb4] sm:$0xe]
      %v967 = vunpack.c.l.b16 %v867
      %v968 = vunpack.c.l.b16 %v868
      %v969 = vunpack.c.l.b16 %v869
      %v970 = vunpack.c.l.b16 %v870
      %v971 = vunpack.c.l.b16 %v871
      %v972 = vunpack.c.l.b16 %v872
      %v973 = vunpack.c.l.b16 %v873
      %v974 = vunpack.c.l.b16 %v874
      %v975 = vunpack.c.l.b16 %v875
      %v976 = vunpack.c.l.b16 %v876
      %v977 = vunpack.c.l.b16 %v877
      %v978 = vunpack.c.l.b16 %v878
      %v979 = vunpack.c.l.b16 %v879
      %v980 = vunpack.c.l.b16 %v880
      %v981 = vunpack.c.l.b16 %v881
      %v982 = vunpack.c.l.b16 %v882
      %v983 = vunpack.c.l.b16 %v883
      %v984 = vunpack.c.l.b16 %v884
      %v985 = vunpack.c.l.b16 %v885
      %v986 = vunpack.c.l.b16 %v886
      %v987 = vunpack.c.l.b16 %v887
      %v988 = vunpack.c.l.b16 %v888
      %v989 = vunpack.c.l.b16 %v889
      %v990 = vunpack.c.l.b16 %v890
      %v991 = vunpack.c.l.b16 %v891
      %v992 = vunpack.c.l.b16 %v892
      %v993 = vunpack.c.l.b16 %v893
      %v994 = vunpack.c.l.b16 %v894
      %v995 = vunpack.c.l.b16 %v895
      %v996 = vunpack.c.l.b16 %v896
      %v997 = vunpack.c.l.b16 %v897
      %v998 = vunpack.c.l.b16 %v898
      %v999 = vunpack.c.l.b16 %v899
      %v1000 = vunpack.c.l.b16 %v900
      %v1001 = vunpack.c.l.b16 %v901
      %v1002 = vunpack.c.l.b16 %v902
      %v1003 = vunpack.c.l.b16 %v903
      %v1004 = vunpack.c.l.b16 %v904
      %v1005 = vunpack.c.l.b16 %v905
      %v1006 = vunpack.c.l.b16 %v906
      %v1007 = vpack.c.b16 %v968, %v967
      %v1008 = vpack.c.b16 %v970, %v969
      %v1009 = vpack.c.b16 %v972, %v971
      %v1010 = vpack.c.b16 %v974, %v973
      %v1011 = vpack.c.b16 %v976, %v975
      %v1012 = vpack.c.b16 %v978, %v977
      %v1013 = vpack.c.b16 %v980, %v979
      %v1014 = vpack.c.b16 %v982, %v981
      %v1015 = vpack.c.b16 %v984, %v983
      %v1016 = vpack.c.b16 %v986, %v985
      %v1017 = vpack.c.b16 %v988, %v987
      %v1018 = vpack.c.b16 %v990, %v989
      %v1019 = vpack.c.b16 %v992, %v991
      %v1020 = vpack.c.b16 %v994, %v993
      %v1021 = vpack.c.b16 %v996, %v995
      %v1022 = vpack.c.b16 %v998, %v997
      %v1023 = vpack.c.b16 %v1000, %v999
      %v1024 = vpack.c.b16 %v1002, %v1001
      %v1025 = vpack.c.b16 %v1004, %v1003
      %v1026 = vpack.c.b16 %v1006, %v1005
      %v1037 = vunpack.c.l.b16 %v907
      %v1038 = vunpack.c.l.b16 %v908
      %v1039 = vunpack.c.l.b16 %v909
      %v1040 = vunpack.c.l.b16 %v910
      %v1041 = vunpack.c.l.b16 %v911
      %v1042 = vunpack.c.l.b16 %v912
      %v1043 = vunpack.c.l.b16 %v913
      %v1044 = vunpack.c.l.b16 %v914
      %v1045 = vunpack.c.l.b16 %v915
      %v1046 = vunpack.c.l.b16 %v916
      %v1047 = vpack.c.b16 %v1037, %v1037
      %v1048 = vpack.c.b16 %v1038, %v1038
      %v1049 = vpack.c.b16 %v1039, %v1039
      %v1050 = vpack.c.b16 %v1040, %v1040
      %v1051 = vpack.c.b16 %v1041, %v1041
      %v1052 = vpack.c.b16 %v1042, %v1042
      %v1053 = vpack.c.b16 %v1043, %v1043
      %v1054 = vpack.c.b16 %v1044, %v1044
      %v1055 = vpack.c.b16 %v1045, %v1045
      %v1056 = vpack.c.b16 %v1046, %v1046
      %vm1057 = vsmask.f32 7424
      %v1059 = vshrl.u32 %v1007, 16
      %v1061 = vshll.u32 %v1007, 16
      %v1063 = vrot.slane %v1061, 1
      %v1064 = vor.u32 %v1059, %v1063
      %v1066 = vshll.u32 %v1008, 16
      %v1068 = vrot.slane %v1066, 1
      %v1069 = vsel %vm1057, %v1064, %v1068
      %v1070 = vshrl.u32 %v1008, 16
      %v1072 = vor.u32 %v1070, %v1068
      %v1074 = vshll.u32 %v1047, 16
      %v1076 = vrot.slane %v1074, 1
      %v1077 = vsel %vm1057, %v1072, %v1076
      %v1079 = vshrl.u32 %v1009, 16
      %v1081 = vshll.u32 %v1009, 16
      %v1083 = vrot.slane %v1081, 1
      %v1084 = vor.u32 %v1079, %v1083
      %v1086 = vshll.u32 %v1010, 16
      %v1088 = vrot.slane %v1086, 1
      %v1089 = vsel %vm1057, %v1084, %v1088
      %v1090 = vshrl.u32 %v1010, 16
      %v1092 = vor.u32 %v1090, %v1088
      %v1094 = vshll.u32 %v1048, 16
      %v1096 = vrot.slane %v1094, 1
      %v1097 = vsel %vm1057, %v1092, %v1096
      %v1099 = vshrl.u32 %v1011, 16
      %v1101 = vshll.u32 %v1011, 16
      %v1103 = vrot.slane %v1101, 1
      %v1104 = vor.u32 %v1099, %v1103
      %v1106 = vshll.u32 %v1012, 16
      %v1108 = vrot.slane %v1106, 1
      %v1109 = vsel %vm1057, %v1104, %v1108
      %v1110 = vshrl.u32 %v1012, 16
      %v1112 = vor.u32 %v1110, %v1108
      %v1114 = vshll.u32 %v1049, 16
      %v1116 = vrot.slane %v1114, 1
      %v1117 = vsel %vm1057, %v1112, %v1116
      %v1119 = vshrl.u32 %v1013, 16
      %v1121 = vshll.u32 %v1013, 16
      %v1123 = vrot.slane %v1121, 1
      %v1124 = vor.u32 %v1119, %v1123
      %v1126 = vshll.u32 %v1014, 16
      %v1128 = vrot.slane %v1126, 1
      %v1129 = vsel %vm1057, %v1124, %v1128
      %v1130 = vshrl.u32 %v1014, 16
      %v1132 = vor.u32 %v1130, %v1128
      %v1134 = vshll.u32 %v1050, 16
      %v1136 = vrot.slane %v1134, 1
      %v1137 = vsel %vm1057, %v1132, %v1136
      %v1139 = vshrl.u32 %v1015, 16
      %v1141 = vshll.u32 %v1015, 16
      %v1143 = vrot.slane %v1141, 1
      %v1144 = vor.u32 %v1139, %v1143
      %v1146 = vshll.u32 %v1016, 16
      %v1148 = vrot.slane %v1146, 1
      %v1149 = vsel %vm1057, %v1144, %v1148
      %v1150 = vshrl.u32 %v1016, 16
      %v1152 = vor.u32 %v1150, %v1148
      %v1154 = vshll.u32 %v1051, 16
      %v1156 = vrot.slane %v1154, 1
      %v1157 = vsel %vm1057, %v1152, %v1156
      %v1159 = vshrl.u32 %v1017, 16
      %v1161 = vshll.u32 %v1017, 16
      %v1163 = vrot.slane %v1161, 1
      %v1164 = vor.u32 %v1159, %v1163
      %v1166 = vshll.u32 %v1018, 16
      %v1168 = vrot.slane %v1166, 1
      %v1169 = vsel %vm1057, %v1164, %v1168
      %v1170 = vshrl.u32 %v1018, 16
      %v1172 = vor.u32 %v1170, %v1168
      %v1174 = vshll.u32 %v1052, 16
      %v1176 = vrot.slane %v1174, 1
      %v1177 = vsel %vm1057, %v1172, %v1176
      %v1179 = vshrl.u32 %v1019, 16
      %v1181 = vshll.u32 %v1019, 16
      %v1183 = vrot.slane %v1181, 1
      %v1184 = vor.u32 %v1179, %v1183
      %v1186 = vshll.u32 %v1020, 16
      %v1188 = vrot.slane %v1186, 1
      %v1189 = vsel %vm1057, %v1184, %v1188
      %v1190 = vshrl.u32 %v1020, 16
      %v1192 = vor.u32 %v1190, %v1188
      %v1194 = vshll.u32 %v1053, 16
      %v1196 = vrot.slane %v1194, 1
      %v1197 = vsel %vm1057, %v1192, %v1196
      %v1199 = vshrl.u32 %v1021, 16
      %v1201 = vshll.u32 %v1021, 16
      %v1203 = vrot.slane %v1201, 1
      %v1204 = vor.u32 %v1199, %v1203
      %v1206 = vshll.u32 %v1022, 16
      %v1208 = vrot.slane %v1206, 1
      %v1209 = vsel %vm1057, %v1204, %v1208
      %v1210 = vshrl.u32 %v1022, 16
      %v1212 = vor.u32 %v1210, %v1208
      %v1214 = vshll.u32 %v1054, 16
      %v1216 = vrot.slane %v1214, 1
      %v1217 = vsel %vm1057, %v1212, %v1216
      %v1219 = vshrl.u32 %v1023, 16
      %v1221 = vshll.u32 %v1023, 16
      %v1223 = vrot.slane %v1221, 1
      %v1224 = vor.u32 %v1219, %v1223
      %v1226 = vshll.u32 %v1024, 16
      %v1228 = vrot.slane %v1226, 1
      %v1229 = vsel %vm1057, %v1224, %v1228
      %v1230 = vshrl.u32 %v1024, 16
      %v1232 = vor.u32 %v1230, %v1228
      %v1234 = vshll.u32 %v1055, 16
      %v1236 = vrot.slane %v1234, 1
      %v1237 = vsel %vm1057, %v1232, %v1236
      %v1239 = vshrl.u32 %v1025, 16
      %v1241 = vshll.u32 %v1025, 16
      %v1243 = vrot.slane %v1241, 1
      %v1244 = vor.u32 %v1239, %v1243
      %v1246 = vshll.u32 %v1026, 16
      %v1248 = vrot.slane %v1246, 1
      %v1249 = vsel %vm1057, %v1244, %v1248
      %v1250 = vshrl.u32 %v1026, 16
      %v1252 = vor.u32 %v1250, %v1248
      %v1254 = vshll.u32 %v1056, 16
      %v1256 = vrot.slane %v1254, 1
      %v1257 = vsel %vm1057, %v1252, %v1256
      %1258 = vrot.lane.b32.xlu0 %v1069, 8
      %v1259 = vpop.permute.xlu0 %1258
      %1260 = vrot.lane.b32.xlu0 %v1077, 8
      %v1261 = vpop.permute.xlu0 %1260
      %1262 = vrot.lane.b32.xlu0 %v1089, 8
      %v1263 = vpop.permute.xlu0 %1262
      %1264 = vrot.lane.b32.xlu0 %v1097, 8
      %v1265 = vpop.permute.xlu0 %1264
      %1266 = vrot.lane.b32.xlu0 %v1109, 8
      %v1267 = vpop.permute.xlu0 %1266
      %1268 = vrot.lane.b32.xlu0 %v1117, 8
      %v1269 = vpop.permute.xlu0 %1268
      %1270 = vrot.lane.b32.xlu0 %v1129, 8
      %v1271 = vpop.permute.xlu0 %1270
      %1272 = vrot.lane.b32.xlu0 %v1137, 8
      %v1273 = vpop.permute.xlu0 %1272
      %1274 = vrot.lane.b32.xlu0 %v1149, 8
      %v1275 = vpop.permute.xlu0 %1274
      %1276 = vrot.lane.b32.xlu0 %v1157, 8
      %v1277 = vpop.permute.xlu0 %1276
      %1278 = vrot.lane.b32.xlu0 %v1169, 8
      %v1279 = vpop.permute.xlu0 %1278
      %1280 = vrot.lane.b32.xlu0 %v1177, 8
      %v1281 = vpop.permute.xlu0 %1280
      %1282 = vrot.lane.b32.xlu0 %v1189, 8
      %v1283 = vpop.permute.xlu0 %1282
      %1284 = vrot.lane.b32.xlu0 %v1197, 8
      %v1285 = vpop.permute.xlu0 %1284
      %1286 = vrot.lane.b32.xlu0 %v1209, 8
      %v1287 = vpop.permute.xlu0 %1286
      %1288 = vrot.lane.b32.xlu0 %v1217, 8
      %v1289 = vpop.permute.xlu0 %1288
      %1290 = vrot.lane.b32.xlu0 %v1229, 8
      %v1291 = vpop.permute.xlu0 %1290
      %1292 = vrot.lane.b32.xlu0 %v1237, 8
      %v1293 = vpop.permute.xlu0 %1292
      %1294 = vrot.lane.b32.xlu0 %v1249, 8
      %v1295 = vpop.permute.xlu0 %1294
      %1296 = vrot.lane.b32.xlu0 %v1257, 8
      %v1297 = vpop.permute.xlu0 %1296
      %v1308 = vunpack.c.l.b16 %v917
      %v1309 = vunpack.c.l.b16 %v918
      %v1310 = vunpack.c.l.b16 %v919
      %v1311 = vunpack.c.l.b16 %v920
      %v1312 = vunpack.c.l.b16 %v921
      %v1313 = vunpack.c.l.b16 %v922
      %v1314 = vunpack.c.l.b16 %v923
      %v1315 = vunpack.c.l.b16 %v924
      %v1316 = vunpack.c.l.b16 %v925
      %v1317 = vunpack.c.l.b16 %v926
      %v1318 = vpack.c.b16 %v968, %v1308
      %v1319 = vpack.c.b16 %v972, %v1309
      %v1320 = vpack.c.b16 %v976, %v1310
      %v1321 = vpack.c.b16 %v980, %v1311
      %v1322 = vpack.c.b16 %v984, %v1312
      %v1323 = vpack.c.b16 %v988, %v1313
      %v1324 = vpack.c.b16 %v992, %v1314
      %v1325 = vpack.c.b16 %v996, %v1315
      %v1326 = vpack.c.b16 %v1000, %v1316
      %v1327 = vpack.c.b16 %v1004, %v1317
      %vm1328 = vcmask 1046528
      %v1329 = vrot.slane %v1318, 1
      %v1330 = vrot.slane %v1008, 1
      %v1331 = vsel %vm1328, %v1329, %v1330
      %v1332 = vrot.slane %v1047, 1
      %v1333 = vsel %vm1328, %v1330, %v1332
      %v1334 = vrot.slane %v1319, 1
      %v1335 = vrot.slane %v1010, 1
      %v1336 = vsel %vm1328, %v1334, %v1335
      %v1337 = vrot.slane %v1048, 1
      %v1338 = vsel %vm1328, %v1335, %v1337
      %v1339 = vrot.slane %v1320, 1
      %v1340 = vrot.slane %v1012, 1
      %v1341 = vsel %vm1328, %v1339, %v1340
      %v1342 = vrot.slane %v1049, 1
      %v1343 = vsel %vm1328, %v1340, %v1342
      %v1344 = vrot.slane %v1321, 1
      %v1345 = vrot.slane %v1014, 1
      %v1346 = vsel %vm1328, %v1344, %v1345
      %v1347 = vrot.slane %v1050, 1
      %v1348 = vsel %vm1328, %v1345, %v1347
      %v1349 = vrot.slane %v1322, 1
      %v1350 = vrot.slane %v1016, 1
      %v1351 = vsel %vm1328, %v1349, %v1350
      %v1352 = vrot.slane %v1051, 1
      %v1353 = vsel %vm1328, %v1350, %v1352
      %v1354 = vrot.slane %v1323, 1
      %v1355 = vrot.slane %v1018, 1
      %v1356 = vsel %vm1328, %v1354, %v1355
      %v1357 = vrot.slane %v1052, 1
      %v1358 = vsel %vm1328, %v1355, %v1357
      %v1359 = vrot.slane %v1324, 1
      %v1360 = vrot.slane %v1020, 1
      %v1361 = vsel %vm1328, %v1359, %v1360
      %v1362 = vrot.slane %v1053, 1
      %v1363 = vsel %vm1328, %v1360, %v1362
      %v1364 = vrot.slane %v1325, 1
      %v1365 = vrot.slane %v1022, 1
      %v1366 = vsel %vm1328, %v1364, %v1365
      %v1367 = vrot.slane %v1054, 1
      %v1368 = vsel %vm1328, %v1365, %v1367
      %v1369 = vrot.slane %v1326, 1
      %v1370 = vrot.slane %v1024, 1
      %v1371 = vsel %vm1328, %v1369, %v1370
      %v1372 = vrot.slane %v1055, 1
      %v1373 = vsel %vm1328, %v1370, %v1372
      %v1374 = vrot.slane %v1327, 1
      %v1375 = vrot.slane %v1026, 1
      %v1376 = vsel %vm1328, %v1374, %v1375
      %v1377 = vrot.slane %v1056, 1
      %v1378 = vsel %vm1328, %v1375, %v1377
      %1379 = vrot.lane.b32.xlu0 %v1331, 16
      %v1380 = vpop.permute.xlu0 %1379
      %1381 = vrot.lane.b32.xlu0 %v1333, 16
      %v1382 = vpop.permute.xlu0 %1381
      %1383 = vrot.lane.b32.xlu0 %v1336, 16
      %v1384 = vpop.permute.xlu0 %1383
      %1385 = vrot.lane.b32.xlu0 %v1338, 16
      %v1386 = vpop.permute.xlu0 %1385
      %1387 = vrot.lane.b32.xlu0 %v1341, 16
      %v1388 = vpop.permute.xlu0 %1387
      %1389 = vrot.lane.b32.xlu0 %v1343, 16
      %v1390 = vpop.permute.xlu0 %1389
      %1391 = vrot.lane.b32.xlu0 %v1346, 16
      %v1392 = vpop.permute.xlu0 %1391
      %1393 = vrot.lane.b32.xlu0 %v1348, 16
      %v1394 = vpop.permute.xlu0 %1393
      %1395 = vrot.lane.b32.xlu0 %v1351, 16
      %v1396 = vpop.permute.xlu0 %1395
      %1397 = vrot.lane.b32.xlu0 %v1353, 16
      %v1398 = vpop.permute.xlu0 %1397
      %1399 = vrot.lane.b32.xlu0 %v1356, 16
      %v1400 = vpop.permute.xlu0 %1399
      %1401 = vrot.lane.b32.xlu0 %v1358, 16
      %v1402 = vpop.permute.xlu0 %1401
      %1403 = vrot.lane.b32.xlu0 %v1361, 16
      %v1404 = vpop.permute.xlu0 %1403
      %1405 = vrot.lane.b32.xlu0 %v1363, 16
      %v1406 = vpop.permute.xlu0 %1405
      %1407 = vrot.lane.b32.xlu0 %v1366, 16
      %v1408 = vpop.permute.xlu0 %1407
      %1409 = vrot.lane.b32.xlu0 %v1368, 16
      %v1410 = vpop.permute.xlu0 %1409
      %1411 = vrot.lane.b32.xlu0 %v1371, 16
      %v1412 = vpop.permute.xlu0 %1411
      %1413 = vrot.lane.b32.xlu0 %v1373, 16
      %v1414 = vpop.permute.xlu0 %1413
      %1415 = vrot.lane.b32.xlu0 %v1376, 16
      %v1416 = vpop.permute.xlu0 %1415
      %1417 = vrot.lane.b32.xlu0 %v1378, 16
      %v1418 = vpop.permute.xlu0 %1417
      %vm1419 = vcmask 64512
      %v1421 = vsel %vm1419, %v1007, %v1259
      %v1423 = vsel %vm1419, %v1008, %v1261
      %v1425 = vsel %vm1419, %v1009, %v1263
      %v1427 = vsel %vm1419, %v1010, %v1265
      %v1429 = vsel %vm1419, %v1011, %v1267
      %v1431 = vsel %vm1419, %v1012, %v1269
      %v1433 = vsel %vm1419, %v1013, %v1271
      %v1435 = vsel %vm1419, %v1014, %v1273
      %v1437 = vsel %vm1419, %v1015, %v1275
      %v1439 = vsel %vm1419, %v1016, %v1277
      %v1441 = vsel %vm1419, %v1017, %v1279
      %v1443 = vsel %vm1419, %v1018, %v1281
      %v1445 = vsel %vm1419, %v1019, %v1283
      %v1447 = vsel %vm1419, %v1020, %v1285
      %v1449 = vsel %vm1419, %v1021, %v1287
      %v1451 = vsel %vm1419, %v1022, %v1289
      %v1453 = vsel %vm1419, %v1023, %v1291
      %v1455 = vsel %vm1419, %v1024, %v1293
      %v1457 = vsel %vm1419, %v1025, %v1295
      %v1459 = vsel %vm1419, %v1026, %v1297
      %vm1460 = vcmask 130048
      %v1462 = vsel %vm1460, %v1421, %v1380
      %v1464 = vsel %vm1460, %v1423, %v1382
      %v1466 = vsel %vm1460, %v1425, %v1384
      %v1468 = vsel %vm1460, %v1427, %v1386
      %v1470 = vsel %vm1460, %v1429, %v1388
      %v1472 = vsel %vm1460, %v1431, %v1390
      %v1474 = vsel %vm1460, %v1433, %v1392
      %v1476 = vsel %vm1460, %v1435, %v1394
      %v1478 = vsel %vm1460, %v1437, %v1396
      %v1480 = vsel %vm1460, %v1439, %v1398
      %v1482 = vsel %vm1460, %v1441, %v1400
      %v1484 = vsel %vm1460, %v1443, %v1402
      %v1486 = vsel %vm1460, %v1445, %v1404
      %v1488 = vsel %vm1460, %v1447, %v1406
      %v1490 = vsel %vm1460, %v1449, %v1408
      %v1492 = vsel %vm1460, %v1451, %v1410
      %v1494 = vsel %vm1460, %v1453, %v1412
      %v1496 = vsel %vm1460, %v1455, %v1414
      %v1498 = vsel %vm1460, %v1457, %v1416
      %v1500 = vsel %vm1460, %v1459, %v1418
      %v1501 = vld [vmem:[%s224] sm:$0xf]
      %v1502 = vld [vmem:[%s224 + $0x4] sm:$0xf]
      %v1503 = vld [vmem:[%s224 + $0x8] sm:$0xf]
      %v1507 = vunpack.c.l.b16 %v1501
      %v1508 = vunpack.c.l.b16 %v1502
      %v1509 = vunpack.c.l.b16 %v1503
      %v1510 = vpack.c.b16 %v1508, %v1507
      %v1511 = vpack.c.b16 %v1509, %v1509
      %vm1513 = vcmask 195584
      %v1514 = vsel %vm1513, %v1462, 0
      %v1516 = vsel %vm1513, %v1464, 0
      %v1518 = vsel %vm1513, %v1466, 0
      %v1520 = vsel %vm1513, %v1468, 0
      %v1522 = vsel %vm1513, %v1470, 0
      %v1524 = vsel %vm1513, %v1472, 0
      %v1526 = vsel %vm1513, %v1474, 0
      %v1528 = vsel %vm1513, %v1476, 0
      %v1530 = vsel %vm1513, %v1478, 0
      %v1532 = vsel %vm1513, %v1480, 0
      %v1534 = vsel %vm1513, %v1482, 0
      %v1536 = vsel %vm1513, %v1484, 0
      %v1538 = vsel %vm1513, %v1486, 0
      %v1540 = vsel %vm1513, %v1488, 0
      %v1542 = vsel %vm1513, %v1490, 0
      %v1544 = vsel %vm1513, %v1492, 0
      %vm1546 = vcmask 1043456
      %v1548 = vsel %vm1546, %v1511, 0
      %1550 = vmatprep.subr.bf16.mxu0 0
      %1551 = vmatpush1.bf16.msra.mxu0 0
      %1552 = vmatprep.subr.bf16.mxu0 0
      %1553 = vmatpush1.bf16.msra.mxu0 0
      %1554 = vmatprep.subr.bf16.mxu0 0
      %1555 = vmatpush1.bf16.msra.mxu0 0
      %1556 = vmatprep.subr.bf16.mxu0 0
      %1557 = vmatpush1.bf16.msra.mxu0 0
      %1558 = vmatprep.subr.bf16.mxu0 0
      %1559 = vmatpush1.bf16.msra.mxu0 0
      %1560 = vmatprep.subr.bf16.mxu0 0
      %1561 = vmatpush1.bf16.msra.mxu0 0
      %1562 = vmatprep.subr.bf16.mxu0 0
      %1563 = vmatpush1.bf16.msra.mxu0 %v1548
      %1564 = vmatprep.subr.bf16.mxu0 0
      %1565 = vmatpush1.bf16.msra.mxu0 %v1510
      %1566 = vmatprep.subr.bf16.mxu0 0
      %1567 = vmatpush2.bf16.msra.mxu0 0
      %1568 = vmatprep.subr.bf16.mxu0 0
      %1569 = vmatpush2.bf16.msra.mxu0 0
      %1570 = vmatprep.subr.bf16.mxu0 0
      %1571 = vmatpush2.bf16.msra.mxu0 0
      %1572 = vmatprep.subr.bf16.mxu0 0
      %1573 = vmatpush2.bf16.msra.mxu0 0
      %1574 = vmatprep.subr.bf16.mxu0 0
      %1575 = vmatpush2.bf16.msra.mxu0 0
      %1576 = vmatprep.subr.bf16.mxu0 0
      %1577 = vmatpush2.bf16.msra.mxu0 0
      %1578 = vmatprep.subr.bf16.mxu0 0
      %1579 = vmatpush2.bf16.msra.mxu0 0
      %1580 = vmatprep.subr.bf16.mxu0 0
      %1581 = vmatpush2.bf16.msra.mxu0 0
      %1582 = vmatprep.mubr.bf16.mxu0 0
      %1583 = vmatmul.mubr.bf16.gmra.mxu0 %v1514
      %v1584 = vpop.f32.mrf.mxu0
      %v1585 = vadd.f32 0.0, %v1584
      %v1586 = vpop.f32.mrf.mxu0
      %v1587 = vpop.f32.mrf.mxu0
      %v1588 = vadd.f32 0.0, %v1587
      %v1589 = vpop.f32.mrf.mxu0
      %1590 = vmatprep.mubr.bf16.mxu0 0
      %1591 = vmatmul.mubr.bf16.gmra.mxu0 %v1516
      %v1592 = vpop.f32.mrf.mxu0
      %v1593 = vadd.f32 0.0, %v1592
      %v1594 = vpop.f32.mrf.mxu0
      %v1595 = vpop.f32.mrf.mxu0
      %v1596 = vadd.f32 0.0, %v1595
      %v1597 = vpop.f32.mrf.mxu0
      %1598 = vmatprep.mubr.bf16.mxu0 0
      %1599 = vmatmul.mubr.bf16.gmra.mxu0 %v1518
      %v1600 = vpop.f32.mrf.mxu0
      %v1601 = vadd.f32 0.0, %v1600
      %v1602 = vpop.f32.mrf.mxu0
      %v1603 = vpop.f32.mrf.mxu0
      %v1604 = vadd.f32 0.0, %v1603
      %v1605 = vpop.f32.mrf.mxu0
      %1606 = vmatprep.mubr.bf16.mxu0 0
      %1607 = vmatmul.mubr.bf16.gmra.mxu0 %v1520
      %v1608 = vpop.f32.mrf.mxu0
      %v1609 = vadd.f32 0.0, %v1608
      %v1610 = vpop.f32.mrf.mxu0
      %v1611 = vpop.f32.mrf.mxu0
      %v1612 = vadd.f32 0.0, %v1611
      %v1613 = vpop.f32.mrf.mxu0
      %1614 = vmatprep.mubr.bf16.mxu0 0
      %1615 = vmatmul.mubr.bf16.gmra.mxu0 %v1522
      %v1616 = vpop.f32.mrf.mxu0
      %v1617 = vadd.f32 0.0, %v1616
      %v1618 = vpop.f32.mrf.mxu0
      %v1619 = vpop.f32.mrf.mxu0
      %v1620 = vadd.f32 0.0, %v1619
      %v1621 = vpop.f32.mrf.mxu0
      %1622 = vmatprep.mubr.bf16.mxu0 0
      %1623 = vmatmul.mubr.bf16.gmra.mxu0 %v1524
      %v1624 = vpop.f32.mrf.mxu0
      %v1625 = vadd.f32 0.0, %v1624
      %v1626 = vpop.f32.mrf.mxu0
      %v1627 = vpop.f32.mrf.mxu0
      %v1628 = vadd.f32 0.0, %v1627
      %v1629 = vpop.f32.mrf.mxu0
      %1630 = vmatprep.mubr.bf16.mxu0 0
      %1631 = vmatmul.mubr.bf16.gmra.mxu0 %v1526
      %v1632 = vpop.f32.mrf.mxu0
      %v1633 = vadd.f32 0.0, %v1632
      %v1634 = vpop.f32.mrf.mxu0
      %v1635 = vpop.f32.mrf.mxu0
      %v1636 = vadd.f32 0.0, %v1635
      %v1637 = vpop.f32.mrf.mxu0
      %1638 = vmatprep.mubr.bf16.mxu0 0
      %1639 = vmatmul.mubr.bf16.gmra.mxu0 %v1528
      %v1640 = vpop.f32.mrf.mxu0
      %v1641 = vadd.f32 0.0, %v1640
      %v1642 = vpop.f32.mrf.mxu0
      %v1643 = vpop.f32.mrf.mxu0
      %v1644 = vadd.f32 0.0, %v1643
      %v1645 = vpop.f32.mrf.mxu0
      %1646 = vmatprep.mubr.bf16.mxu0 0
      %1647 = vmatmul.mubr.bf16.gmra.mxu0 %v1530
      %v1648 = vpop.f32.mrf.mxu0
      %v1649 = vadd.f32 0.0, %v1648
      %v1650 = vpop.f32.mrf.mxu0
      %v1651 = vpop.f32.mrf.mxu0
      %v1652 = vadd.f32 0.0, %v1651
      %v1653 = vpop.f32.mrf.mxu0
      %1654 = vmatprep.mubr.bf16.mxu0 0
      %1655 = vmatmul.mubr.bf16.gmra.mxu0 %v1532
      %v1656 = vpop.f32.mrf.mxu0
      %v1657 = vadd.f32 0.0, %v1656
      %v1658 = vpop.f32.mrf.mxu0
      %v1659 = vpop.f32.mrf.mxu0
      %v1660 = vadd.f32 0.0, %v1659
      %v1661 = vpop.f32.mrf.mxu0
      %1662 = vmatprep.mubr.bf16.mxu0 0
      %1663 = vmatmul.mubr.bf16.gmra.mxu0 %v1534
      %v1664 = vpop.f32.mrf.mxu0
      %v1665 = vadd.f32 0.0, %v1664
      %v1666 = vpop.f32.mrf.mxu0
      %v1667 = vpop.f32.mrf.mxu0
      %v1668 = vadd.f32 0.0, %v1667
      %v1669 = vpop.f32.mrf.mxu0
      %1670 = vmatprep.mubr.bf16.mxu0 0
      %1671 = vmatmul.mubr.bf16.gmra.mxu0 %v1536
      %v1672 = vpop.f32.mrf.mxu0
      %v1673 = vadd.f32 0.0, %v1672
      %v1674 = vpop.f32.mrf.mxu0
      %v1675 = vpop.f32.mrf.mxu0
      %v1676 = vadd.f32 0.0, %v1675
      %v1677 = vpop.f32.mrf.mxu0
      %1678 = vmatprep.mubr.bf16.mxu0 0
      %1679 = vmatmul.mubr.bf16.gmra.mxu0 %v1538
      %v1680 = vpop.f32.mrf.mxu0
      %v1681 = vadd.f32 0.0, %v1680
      %v1682 = vpop.f32.mrf.mxu0
      %v1683 = vpop.f32.mrf.mxu0
      %v1684 = vadd.f32 0.0, %v1683
      %v1685 = vpop.f32.mrf.mxu0
      %1686 = vmatprep.mubr.bf16.mxu0 0
      %1687 = vmatmul.mubr.bf16.gmra.mxu0 %v1540
      %v1688 = vpop.f32.mrf.mxu0
      %v1689 = vadd.f32 0.0, %v1688
      %v1690 = vpop.f32.mrf.mxu0
      %v1691 = vpop.f32.mrf.mxu0
      %v1692 = vadd.f32 0.0, %v1691
      %v1693 = vpop.f32.mrf.mxu0
      %1694 = vmatprep.mubr.bf16.mxu0 0
      %1695 = vmatmul.mubr.bf16.gmra.mxu0 %v1542
      %v1696 = vpop.f32.mrf.mxu0
      %v1697 = vadd.f32 0.0, %v1696
      %v1698 = vpop.f32.mrf.mxu0
      %v1699 = vpop.f32.mrf.mxu0
      %v1700 = vadd.f32 0.0, %v1699
      %v1701 = vpop.f32.mrf.mxu0
      %1702 = vmatprep.mubr.bf16.mxu0 0
      %1703 = vmatmul.mubr.bf16.gmra.mxu0 %v1544
      %v1704 = vpop.f32.mrf.mxu0
      %v1705 = vadd.f32 0.0, %v1704
      %v1706 = vpop.f32.mrf.mxu0
      %v1707 = vpop.f32.mrf.mxu0
      %v1708 = vadd.f32 0.0, %v1707
      %v1709 = vpop.f32.mrf.mxu0
      %1710 = vdwg.mxu0
      %1711 = vst.msk [vmem:[#allocation3] sm:$0xff] %vm1419, %v1585
      %1712 = vst.msk [vmem:[#allocation3 + $0x8] sm:$0xff] %vm1419, %v1588
      %1713 = vst.msk [vmem:[#allocation3 + $0x10] sm:$0xff] %vm1419, %v1593
      %1714 = vst.msk [vmem:[#allocation3 + $0x18] sm:$0xff] %vm1419, %v1596
      %1715 = vst.msk [vmem:[#allocation3 + $0x20] sm:$0xff] %vm1419, %v1601
      %1716 = vst.msk [vmem:[#allocation3 + $0x28] sm:$0xff] %vm1419, %v1604
      %1717 = vst.msk [vmem:[#allocation3 + $0x30] sm:$0xff] %vm1419, %v1609
      %1718 = vst.msk [vmem:[#allocation3 + $0x38] sm:$0xff] %vm1419, %v1612
      %1719 = vst.msk [vmem:[#allocation3 + $0x40] sm:$0xff] %vm1419, %v1617
      %1720 = vst.msk [vmem:[#allocation3 + $0x48] sm:$0xff] %vm1419, %v1620
      %1721 = vst.msk [vmem:[#allocation3 + $0x50] sm:$0xff] %vm1419, %v1625
      %1722 = vst.msk [vmem:[#allocation3 + $0x58] sm:$0xff] %vm1419, %v1628
      %1723 = vst.msk [vmem:[#allocation3 + $0x60] sm:$0xff] %vm1419, %v1633
      %1724 = vst.msk [vmem:[#allocation3 + $0x68] sm:$0xff] %vm1419, %v1636
      %1725 = vst.msk [vmem:[#allocation3 + $0x70] sm:$0xff] %vm1419, %v1641
      %1726 = vst.msk [vmem:[#allocation3 + $0x78] sm:$0xff] %vm1419, %v1644
      %1727 = vst.msk [vmem:[#allocation3 + $0x80] sm:$0xff] %vm1419, %v1649
      %1728 = vst.msk [vmem:[#allocation3 + $0x88] sm:$0xff] %vm1419, %v1652
      %1729 = vst.msk [vmem:[#allocation3 + $0x90] sm:$0xff] %vm1419, %v1657
      %1730 = vst.msk [vmem:[#allocation3 + $0x98] sm:$0xff] %vm1419, %v1660
      %1731 = vst.msk [vmem:[#allocation3 + $0xa0] sm:$0xff] %vm1419, %v1665
      %1732 = vst.msk [vmem:[#allocation3 + $0xa8] sm:$0xff] %vm1419, %v1668
      %1733 = vst.msk [vmem:[#allocation3 + $0xb0] sm:$0xff] %vm1419, %v1673
      %1734 = vst.msk [vmem:[#allocation3 + $0xb8] sm:$0xff] %vm1419, %v1676
      %1735 = vst.msk [vmem:[#allocation3 + $0xc0] sm:$0xff] %vm1419, %v1681
      %1736 = vst.msk [vmem:[#allocation3 + $0xc8] sm:$0xff] %vm1419, %v1684
      %1737 = vst.msk [vmem:[#allocation3 + $0xd0] sm:$0xff] %vm1419, %v1689
      %1738 = vst.msk [vmem:[#allocation3 + $0xd8] sm:$0xff] %vm1419, %v1692
      %1739 = vst.msk [vmem:[#allocation3 + $0xe0] sm:$0xff] %vm1419, %v1697
      %1740 = vst.msk [vmem:[#allocation3 + $0xe8] sm:$0xff] %vm1419, %v1700
      %1741 = vst.msk [vmem:[#allocation3 + $0xf0] sm:$0xff] %vm1419, %v1705
      %1742 = vst.msk [vmem:[#allocation3 + $0xf8] sm:$0xff] %vm1419, %v1708
      %v1743 = vld [vmem:[#allocation3] sm:$0xff]
      %v1744 = vld [vmem:[#allocation3 + $0x8] sm:$0xff]
      %v1745 = vld [vmem:[#allocation3 + $0x10] sm:$0xff]
      %v1746 = vld [vmem:[#allocation3 + $0x18] sm:$0xff]
      %v1747 = vld [vmem:[#allocation3 + $0x20] sm:$0xff]
      %v1748 = vld [vmem:[#allocation3 + $0x28] sm:$0xff]
      %v1749 = vld [vmem:[#allocation3 + $0x30] sm:$0xff]
      %v1750 = vld [vmem:[#allocation3 + $0x38] sm:$0xff]
      %v1751 = vld [vmem:[#allocation3 + $0x40] sm:$0xff]
      %v1752 = vld [vmem:[#allocation3 + $0x48] sm:$0xff]
      %v1753 = vld [vmem:[#allocation3 + $0x50] sm:$0xff]
      %v1754 = vld [vmem:[#allocation3 + $0x58] sm:$0xff]
      %v1755 = vld [vmem:[#allocation3 + $0x60] sm:$0xff]
      %v1756 = vld [vmem:[#allocation3 + $0x68] sm:$0xff]
      %v1757 = vld [vmem:[#allocation3 + $0x70] sm:$0xff]
      %v1758 = vld [vmem:[#allocation3 + $0x78] sm:$0xff]
      %v1759 = vld [vmem:[#allocation3 + $0x80] sm:$0xff]
      %v1760 = vld [vmem:[#allocation3 + $0x88] sm:$0xff]
      %v1761 = vld [vmem:[#allocation3 + $0x90] sm:$0xff]
      %v1762 = vld [vmem:[#allocation3 + $0x98] sm:$0xff]
      %v1763 = vld [vmem:[#allocation3 + $0xa0] sm:$0xff]
      %v1764 = vld [vmem:[#allocation3 + $0xa8] sm:$0xff]
      %v1765 = vld [vmem:[#allocation3 + $0xb0] sm:$0xff]
      %v1766 = vld [vmem:[#allocation3 + $0xb8] sm:$0xff]
      %v1767 = vld [vmem:[#allocation3 + $0xc0] sm:$0xff]
      %v1768 = vld [vmem:[#allocation3 + $0xc8] sm:$0xff]
      %v1769 = vld [vmem:[#allocation3 + $0xd0] sm:$0xff]
      %v1770 = vld [vmem:[#allocation3 + $0xd8] sm:$0xff]
      %v1771 = vld [vmem:[#allocation3 + $0xe0] sm:$0xff]
      %v1772 = vld [vmem:[#allocation3 + $0xe8] sm:$0xff]
      %v1773 = vld [vmem:[#allocation3 + $0xf0] sm:$0xff]
      %v1774 = vld [vmem:[#allocation3 + $0xf8] sm:$0xff]
      %s1775 = scalar_lea.vmem %s224, 12
      %v1776 = vld [vmem:[%s1775] sm:$0xf]
      %v1777 = vld [vmem:[%s1775 + $0x4] sm:$0xf]
      %v1778 = vld [vmem:[%s1775 + $0x8] sm:$0xf]
      %v1782 = vunpack.c.l.b16 %v1776
      %v1783 = vunpack.c.l.b16 %v1777
      %v1784 = vunpack.c.l.b16 %v1778
      %v1785 = vpack.c.b16 %v1783, %v1782
      %v1786 = vpack.c.b16 %v1784, %v1784
      %v1788 = vsel %vm1513, %v1494, 0
      %v1790 = vsel %vm1513, %v1496, 0
      %v1793 = vsel %vm1546, %v1786, 0
      %1795 = vmatprep.subr.bf16.mxu0 0
      %1796 = vmatpush1.bf16.msra.mxu0 0
      %1797 = vmatprep.subr.bf16.mxu0 0
      %1798 = vmatpush1.bf16.msra.mxu0 0
      %1799 = vmatprep.subr.bf16.mxu0 0
      %1800 = vmatpush1.bf16.msra.mxu0 0
      %1801 = vmatprep.subr.bf16.mxu0 0
      %1802 = vmatpush1.bf16.msra.mxu0 0
      %1803 = vmatprep.subr.bf16.mxu0 0
      %1804 = vmatpush1.bf16.msra.mxu0 0
      %1805 = vmatprep.subr.bf16.mxu0 0
      %1806 = vmatpush1.bf16.msra.mxu0 0
      %1807 = vmatprep.subr.bf16.mxu0 0
      %1808 = vmatpush1.bf16.msra.mxu0 %v1793
      %1809 = vmatprep.subr.bf16.mxu0 0
      %1810 = vmatpush1.bf16.msra.mxu0 %v1785
      %1811 = vmatprep.subr.bf16.mxu0 0
      %1812 = vmatpush2.bf16.msra.mxu0 0
      %1813 = vmatprep.subr.bf16.mxu0 0
      %1814 = vmatpush2.bf16.msra.mxu0 0
      %1815 = vmatprep.subr.bf16.mxu0 0
      %1816 = vmatpush2.bf16.msra.mxu0 0
      %1817 = vmatprep.subr.bf16.mxu0 0
      %1818 = vmatpush2.bf16.msra.mxu0 0
      %1819 = vmatprep.subr.bf16.mxu0 0
      %1820 = vmatpush2.bf16.msra.mxu0 0
      %1821 = vmatprep.subr.bf16.mxu0 0
      %1822 = vmatpush2.bf16.msra.mxu0 0
      %1823 = vmatprep.subr.bf16.mxu0 0
      %1824 = vmatpush2.bf16.msra.mxu0 0
      %1825 = vmatprep.subr.bf16.mxu0 0
      %1826 = vmatpush2.bf16.msra.mxu0 0
      %1827 = vmatprep.mubr.bf16.mxu0 0
      %1828 = vmatmul.mubr.bf16.gmra.mxu0 %v1518
      %v1829 = vpop.f32.mrf.mxu0
      %v1830 = vadd.f32 0.0, %v1829
      %v1831 = vpop.f32.mrf.mxu0
      %v1832 = vpop.f32.mrf.mxu0
      %v1833 = vadd.f32 0.0, %v1832
      %v1834 = vpop.f32.mrf.mxu0
      %1835 = vmatprep.mubr.bf16.mxu0 0
      %1836 = vmatmul.mubr.bf16.gmra.mxu0 %v1520
      %v1837 = vpop.f32.mrf.mxu0
      %v1838 = vadd.f32 0.0, %v1837
      %v1839 = vpop.f32.mrf.mxu0
      %v1840 = vpop.f32.mrf.mxu0
      %v1841 = vadd.f32 0.0, %v1840
      %v1842 = vpop.f32.mrf.mxu0
      %1843 = vmatprep.mubr.bf16.mxu0 0
      %1844 = vmatmul.mubr.bf16.gmra.mxu0 %v1522
      %v1845 = vpop.f32.mrf.mxu0
      %v1846 = vadd.f32 0.0, %v1845
      %v1847 = vpop.f32.mrf.mxu0
      %v1848 = vpop.f32.mrf.mxu0
      %v1849 = vadd.f32 0.0, %v1848
      %v1850 = vpop.f32.mrf.mxu0
      %1851 = vmatprep.mubr.bf16.mxu0 0
      %1852 = vmatmul.mubr.bf16.gmra.mxu0 %v1524
      %v1853 = vpop.f32.mrf.mxu0
      %v1854 = vadd.f32 0.0, %v1853
      %v1855 = vpop.f32.mrf.mxu0
      %v1856 = vpop.f32.mrf.mxu0
      %v1857 = vadd.f32 0.0, %v1856
      %v1858 = vpop.f32.mrf.mxu0
      %1859 = vmatprep.mubr.bf16.mxu0 0
      %1860 = vmatmul.mubr.bf16.gmra.mxu0 %v1526
      %v1861 = vpop.f32.mrf.mxu0
      %v1862 = vadd.f32 0.0, %v1861
      %v1863 = vpop.f32.mrf.mxu0
      %v1864 = vpop.f32.mrf.mxu0
      %v1865 = vadd.f32 0.0, %v1864
      %v1866 = vpop.f32.mrf.mxu0
      %1867 = vmatprep.mubr.bf16.mxu0 0
      %1868 = vmatmul.mubr.bf16.gmra.mxu0 %v1528
      %v1869 = vpop.f32.mrf.mxu0
      %v1870 = vadd.f32 0.0, %v1869
      %v1871 = vpop.f32.mrf.mxu0
      %v1872 = vpop.f32.mrf.mxu0
      %v1873 = vadd.f32 0.0, %v1872
      %v1874 = vpop.f32.mrf.mxu0
      %1875 = vmatprep.mubr.bf16.mxu0 0
      %1876 = vmatmul.mubr.bf16.gmra.mxu0 %v1530
      %v1877 = vpop.f32.mrf.mxu0
      %v1878 = vadd.f32 0.0, %v1877
      %v1879 = vpop.f32.mrf.mxu0
      %v1880 = vpop.f32.mrf.mxu0
      %v1881 = vadd.f32 0.0, %v1880
      %v1882 = vpop.f32.mrf.mxu0
      %1883 = vmatprep.mubr.bf16.mxu0 0
      %1884 = vmatmul.mubr.bf16.gmra.mxu0 %v1532
      %v1885 = vpop.f32.mrf.mxu0
      %v1886 = vadd.f32 0.0, %v1885
      %v1887 = vpop.f32.mrf.mxu0
      %v1888 = vpop.f32.mrf.mxu0
      %v1889 = vadd.f32 0.0, %v1888
      %v1890 = vpop.f32.mrf.mxu0
      %1891 = vmatprep.mubr.bf16.mxu0 0
      %1892 = vmatmul.mubr.bf16.gmra.mxu0 %v1534
      %v1893 = vpop.f32.mrf.mxu0
      %v1894 = vadd.f32 0.0, %v1893
      %v1895 = vpop.f32.mrf.mxu0
      %v1896 = vpop.f32.mrf.mxu0
      %v1897 = vadd.f32 0.0, %v1896
      %v1898 = vpop.f32.mrf.mxu0
      %1899 = vmatprep.mubr.bf16.mxu0 0
      %1900 = vmatmul.mubr.bf16.gmra.mxu0 %v1536
      %v1901 = vpop.f32.mrf.mxu0
      %v1902 = vadd.f32 0.0, %v1901
      %v1903 = vpop.f32.mrf.mxu0
      %v1904 = vpop.f32.mrf.mxu0
      %v1905 = vadd.f32 0.0, %v1904
      %v1906 = vpop.f32.mrf.mxu0
      %1907 = vmatprep.mubr.bf16.mxu0 0
      %1908 = vmatmul.mubr.bf16.gmra.mxu0 %v1538
      %v1909 = vpop.f32.mrf.mxu0
      %v1910 = vadd.f32 0.0, %v1909
      %v1911 = vpop.f32.mrf.mxu0
      %v1912 = vpop.f32.mrf.mxu0
      %v1913 = vadd.f32 0.0, %v1912
      %v1914 = vpop.f32.mrf.mxu0
      %1915 = vmatprep.mubr.bf16.mxu0 0
      %1916 = vmatmul.mubr.bf16.gmra.mxu0 %v1540
      %v1917 = vpop.f32.mrf.mxu0
      %v1918 = vadd.f32 0.0, %v1917
      %v1919 = vpop.f32.mrf.mxu0
      %v1920 = vpop.f32.mrf.mxu0
      %v1921 = vadd.f32 0.0, %v1920
      %v1922 = vpop.f32.mrf.mxu0
      %1923 = vmatprep.mubr.bf16.mxu0 0
      %1924 = vmatmul.mubr.bf16.gmra.mxu0 %v1542
      %v1925 = vpop.f32.mrf.mxu0
      %v1926 = vadd.f32 0.0, %v1925
      %v1927 = vpop.f32.mrf.mxu0
      %v1928 = vpop.f32.mrf.mxu0
      %v1929 = vadd.f32 0.0, %v1928
      %v1930 = vpop.f32.mrf.mxu0
      %1931 = vmatprep.mubr.bf16.mxu0 0
      %1932 = vmatmul.mubr.bf16.gmra.mxu0 %v1544
      %v1933 = vpop.f32.mrf.mxu0
      %v1934 = vadd.f32 0.0, %v1933
      %v1935 = vpop.f32.mrf.mxu0
      %v1936 = vpop.f32.mrf.mxu0
      %v1937 = vadd.f32 0.0, %v1936
      %v1938 = vpop.f32.mrf.mxu0
      %1939 = vmatprep.mubr.bf16.mxu0 0
      %1940 = vmatmul.mubr.bf16.gmra.mxu0 %v1788
      %v1941 = vpop.f32.mrf.mxu0
      %v1942 = vadd.f32 0.0, %v1941
      %v1943 = vpop.f32.mrf.mxu0
      %v1944 = vpop.f32.mrf.mxu0
      %v1945 = vadd.f32 0.0, %v1944
      %v1946 = vpop.f32.mrf.mxu0
      %1947 = vmatprep.mubr.bf16.mxu0 0
      %1948 = vmatmul.mubr.bf16.gmra.mxu0 %v1790
      %v1949 = vpop.f32.mrf.mxu0
      %v1950 = vadd.f32 0.0, %v1949
      %v1951 = vpop.f32.mrf.mxu0
      %v1952 = vpop.f32.mrf.mxu0
      %v1953 = vadd.f32 0.0, %v1952
      %v1954 = vpop.f32.mrf.mxu0
      %1955 = vdwg.mxu0
      %v1956 = vadd.f32 %v1743, %v1830
      %v1957 = vadd.f32 %v1744, %v1833
      %v1958 = vadd.f32 %v1745, %v1838
      %v1959 = vadd.f32 %v1746, %v1841
      %v1960 = vadd.f32 %v1747, %v1846
      %v1961 = vadd.f32 %v1748, %v1849
      %v1962 = vadd.f32 %v1749, %v1854
      %v1963 = vadd.f32 %v1750, %v1857
      %v1964 = vadd.f32 %v1751, %v1862
      %v1965 = vadd.f32 %v1752, %v1865
      %v1966 = vadd.f32 %v1753, %v1870
      %v1967 = vadd.f32 %v1754, %v1873
      %v1968 = vadd.f32 %v1755, %v1878
      %v1969 = vadd.f32 %v1756, %v1881
      %v1970 = vadd.f32 %v1757, %v1886
      %v1971 = vadd.f32 %v1758, %v1889
      %v1972 = vadd.f32 %v1759, %v1894
      %v1973 = vadd.f32 %v1760, %v1897
      %v1974 = vadd.f32 %v1761, %v1902
      %v1975 = vadd.f32 %v1762, %v1905
      %v1976 = vadd.f32 %v1763, %v1910
      %v1977 = vadd.f32 %v1764, %v1913
      %v1978 = vadd.f32 %v1765, %v1918
      %v1979 = vadd.f32 %v1766, %v1921
      %v1980 = vadd.f32 %v1767, %v1926
      %v1981 = vadd.f32 %v1768, %v1929
      %v1982 = vadd.f32 %v1769, %v1934
      %v1983 = vadd.f32 %v1770, %v1937
      %v1984 = vadd.f32 %v1771, %v1942
      %v1985 = vadd.f32 %v1772, %v1945
      %v1986 = vadd.f32 %v1773, %v1950
      %v1987 = vadd.f32 %v1774, %v1953
      %1988 = vst.msk [vmem:[#allocation3] sm:$0xff] %vm1419, %v1956
      %1989 = vst.msk [vmem:[#allocation3 + $0x8] sm:$0xff] %vm1419, %v1957
      %1990 = vst.msk [vmem:[#allocation3 + $0x10] sm:$0xff] %vm1419, %v1958
      %1991 = vst.msk [vmem:[#allocation3 + $0x18] sm:$0xff] %vm1419, %v1959
      %1992 = vst.msk [vmem:[#allocation3 + $0x20] sm:$0xff] %vm1419, %v1960
      %1993 = vst.msk [vmem:[#allocation3 + $0x28] sm:$0xff] %vm1419, %v1961
      %1994 = vst.msk [vmem:[#allocation3 + $0x30] sm:$0xff] %vm1419, %v1962
      %1995 = vst.msk [vmem:[#allocation3 + $0x38] sm:$0xff] %vm1419, %v1963
      %1996 = vst.msk [vmem:[#allocation3 + $0x40] sm:$0xff] %vm1419, %v1964
      %1997 = vst.msk [vmem:[#allocation3 + $0x48] sm:$0xff] %vm1419, %v1965
      %1998 = vst.msk [vmem:[#allocation3 + $0x50] sm:$0xff] %vm1419, %v1966
      %1999 = vst.msk [vmem:[#allocation3 + $0x58] sm:$0xff] %vm1419, %v1967
      %2000 = vst.msk [vmem:[#allocation3 + $0x60] sm:$0xff] %vm1419, %v1968
      %2001 = vst.msk [vmem:[#allocation3 + $0x68] sm:$0xff] %vm1419, %v1969
      %2002 = vst.msk [vmem:[#allocation3 + $0x70] sm:$0xff] %vm1419, %v1970
      %2003 = vst.msk [vmem:[#allocation3 + $0x78] sm:$0xff] %vm1419, %v1971
      %2004 = vst.msk [vmem:[#allocation3 + $0x80] sm:$0xff] %vm1419, %v1972
      %2005 = vst.msk [vmem:[#allocation3 + $0x88] sm:$0xff] %vm1419, %v1973
      %2006 = vst.msk [vmem:[#allocation3 + $0x90] sm:$0xff] %vm1419, %v1974
      %2007 = vst.msk [vmem:[#allocation3 + $0x98] sm:$0xff] %vm1419, %v1975
      %2008 = vst.msk [vmem:[#allocation3 + $0xa0] sm:$0xff] %vm1419, %v1976
      %2009 = vst.msk [vmem:[#allocation3 + $0xa8] sm:$0xff] %vm1419, %v1977
      %2010 = vst.msk [vmem:[#allocation3 + $0xb0] sm:$0xff] %vm1419, %v1978
      %2011 = vst.msk [vmem:[#allocation3 + $0xb8] sm:$0xff] %vm1419, %v1979
      %2012 = vst.msk [vmem:[#allocation3 + $0xc0] sm:$0xff] %vm1419, %v1980
      %2013 = vst.msk [vmem:[#allocation3 + $0xc8] sm:$0xff] %vm1419, %v1981
      %2014 = vst.msk [vmem:[#allocation3 + $0xd0] sm:$0xff] %vm1419, %v1982
      %2015 = vst.msk [vmem:[#allocation3 + $0xd8] sm:$0xff] %vm1419, %v1983
      %2016 = vst.msk [vmem:[#allocation3 + $0xe0] sm:$0xff] %vm1419, %v1984
      %2017 = vst.msk [vmem:[#allocation3 + $0xe8] sm:$0xff] %vm1419, %v1985
      %2018 = vst.msk [vmem:[#allocation3 + $0xf0] sm:$0xff] %vm1419, %v1986
      %2019 = vst.msk [vmem:[#allocation3 + $0xf8] sm:$0xff] %vm1419, %v1987
      %v2020 = vld [vmem:[#allocation3] sm:$0xff]
      %v2021 = vld [vmem:[#allocation3 + $0x8] sm:$0xff]
      %v2022 = vld [vmem:[#allocation3 + $0x10] sm:$0xff]
      %v2023 = vld [vmem:[#allocation3 + $0x18] sm:$0xff]
      %v2024 = vld [vmem:[#allocation3 + $0x20] sm:$0xff]
      %v2025 = vld [vmem:[#allocation3 + $0x28] sm:$0xff]
      %v2026 = vld [vmem:[#allocation3 + $0x30] sm:$0xff]
      %v2027 = vld [vmem:[#allocation3 + $0x38] sm:$0xff]
      %v2028 = vld [vmem:[#allocation3 + $0x40] sm:$0xff]
      %v2029 = vld [vmem:[#allocation3 + $0x48] sm:$0xff]
      %v2030 = vld [vmem:[#allocation3 + $0x50] sm:$0xff]
      %v2031 = vld [vmem:[#allocation3 + $0x58] sm:$0xff]
      %v2032 = vld [vmem:[#allocation3 + $0x60] sm:$0xff]
      %v2033 = vld [vmem:[#allocation3 + $0x68] sm:$0xff]
      %v2034 = vld [vmem:[#allocation3 + $0x70] sm:$0xff]
      %v2035 = vld [vmem:[#allocation3 + $0x78] sm:$0xff]
      %v2036 = vld [vmem:[#allocation3 + $0x80] sm:$0xff]
      %v2037 = vld [vmem:[#allocation3 + $0x88] sm:$0xff]
      %v2038 = vld [vmem:[#allocation3 + $0x90] sm:$0xff]
      %v2039 = vld [vmem:[#allocation3 + $0x98] sm:$0xff]
      %v2040 = vld [vmem:[#allocation3 + $0xa0] sm:$0xff]
      %v2041 = vld [vmem:[#allocation3 + $0xa8] sm:$0xff]
      %v2042 = vld [vmem:[#allocation3 + $0xb0] sm:$0xff]
      %v2043 = vld [vmem:[#allocation3 + $0xb8] sm:$0xff]
      %v2044 = vld [vmem:[#allocation3 + $0xc0] sm:$0xff]
      %v2045 = vld [vmem:[#allocation3 + $0xc8] sm:$0xff]
      %v2046 = vld [vmem:[#allocation3 + $0xd0] sm:$0xff]
      %v2047 = vld [vmem:[#allocation3 + $0xd8] sm:$0xff]
      %v2048 = vld [vmem:[#allocation3 + $0xe0] sm:$0xff]
      %v2049 = vld [vmem:[#allocation3 + $0xe8] sm:$0xff]
      %v2050 = vld [vmem:[#allocation3 + $0xf0] sm:$0xff]
      %v2051 = vld [vmem:[#allocation3 + $0xf8] sm:$0xff]
      %s2052 = scalar_lea.vmem %s224, 24
      %v2053 = vld [vmem:[%s2052] sm:$0xf]
      %v2054 = vld [vmem:[%s2052 + $0x4] sm:$0xf]
      %v2055 = vld [vmem:[%s2052 + $0x8] sm:$0xf]
      %v2059 = vunpack.c.l.b16 %v2053
      %v2060 = vunpack.c.l.b16 %v2054
      %v2061 = vunpack.c.l.b16 %v2055
      %v2062 = vpack.c.b16 %v2060, %v2059
      %v2063 = vpack.c.b16 %v2061, %v2061
      %v2065 = vsel %vm1513, %v1498, 0
      %v2067 = vsel %vm1513, %v1500, 0
      %v2070 = vsel %vm1546, %v2063, 0
      %2072 = vmatprep.subr.bf16.mxu0 0
      %2073 = vmatpush1.bf16.msra.mxu0 0
      %2074 = vmatprep.subr.bf16.mxu0 0
      %2075 = vmatpush1.bf16.msra.mxu0 0
      %2076 = vmatprep.subr.bf16.mxu0 0
      %2077 = vmatpush1.bf16.msra.mxu0 0
      %2078 = vmatprep.subr.bf16.mxu0 0
      %2079 = vmatpush1.bf16.msra.mxu0 0
      %2080 = vmatprep.subr.bf16.mxu0 0
      %2081 = vmatpush1.bf16.msra.mxu0 0
      %2082 = vmatprep.subr.bf16.mxu0 0
      %2083 = vmatpush1.bf16.msra.mxu0 0
      %2084 = vmatprep.subr.bf16.mxu0 0
      %2085 = vmatpush1.bf16.msra.mxu0 %v2070
      %2086 = vmatprep.subr.bf16.mxu0 0
      %2087 = vmatpush1.bf16.msra.mxu0 %v2062
      %2088 = vmatprep.subr.bf16.mxu0 0
      %2089 = vmatpush2.bf16.msra.mxu0 0
      %2090 = vmatprep.subr.bf16.mxu0 0
      %2091 = vmatpush2.bf16.msra.mxu0 0
      %2092 = vmatprep.subr.bf16.mxu0 0
      %2093 = vmatpush2.bf16.msra.mxu0 0
      %2094 = vmatprep.subr.bf16.mxu0 0
      %2095 = vmatpush2.bf16.msra.mxu0 0
      %2096 = vmatprep.subr.bf16.mxu0 0
      %2097 = vmatpush2.bf16.msra.mxu0 0
      %2098 = vmatprep.subr.bf16.mxu0 0
      %2099 = vmatpush2.bf16.msra.mxu0 0
      %2100 = vmatprep.subr.bf16.mxu0 0
      %2101 = vmatpush2.bf16.msra.mxu0 0
      %2102 = vmatprep.subr.bf16.mxu0 0
      %2103 = vmatpush2.bf16.msra.mxu0 0
      %2104 = vmatprep.mubr.bf16.mxu0 0
      %2105 = vmatmul.mubr.bf16.gmra.mxu0 %v1522
      %v2106 = vpop.f32.mrf.mxu0
      %v2107 = vadd.f32 0.0, %v2106
      %v2108 = vpop.f32.mrf.mxu0
      %v2109 = vpop.f32.mrf.mxu0
      %v2110 = vadd.f32 0.0, %v2109
      %v2111 = vpop.f32.mrf.mxu0
      %2112 = vmatprep.mubr.bf16.mxu0 0
      %2113 = vmatmul.mubr.bf16.gmra.mxu0 %v1524
      %v2114 = vpop.f32.mrf.mxu0
      %v2115 = vadd.f32 0.0, %v2114
      %v2116 = vpop.f32.mrf.mxu0
      %v2117 = vpop.f32.mrf.mxu0
      %v2118 = vadd.f32 0.0, %v2117
      %v2119 = vpop.f32.mrf.mxu0
      %2120 = vmatprep.mubr.bf16.mxu0 0
      %2121 = vmatmul.mubr.bf16.gmra.mxu0 %v1526
      %v2122 = vpop.f32.mrf.mxu0
      %v2123 = vadd.f32 0.0, %v2122
      %v2124 = vpop.f32.mrf.mxu0
      %v2125 = vpop.f32.mrf.mxu0
      %v2126 = vadd.f32 0.0, %v2125
      %v2127 = vpop.f32.mrf.mxu0
      %2128 = vmatprep.mubr.bf16.mxu0 0
      %2129 = vmatmul.mubr.bf16.gmra.mxu0 %v1528
      %v2130 = vpop.f32.mrf.mxu0
      %v2131 = vadd.f32 0.0, %v2130
      %v2132 = vpop.f32.mrf.mxu0
      %v2133 = vpop.f32.mrf.mxu0
      %v2134 = vadd.f32 0.0, %v2133
      %v2135 = vpop.f32.mrf.mxu0
      %2136 = vmatprep.mubr.bf16.mxu0 0
      %2137 = vmatmul.mubr.bf16.gmra.mxu0 %v1530
      %v2138 = vpop.f32.mrf.mxu0
      %v2139 = vadd.f32 0.0, %v2138
      %v2140 = vpop.f32.mrf.mxu0
      %v2141 = vpop.f32.mrf.mxu0
      %v2142 = vadd.f32 0.0, %v2141
      %v2143 = vpop.f32.mrf.mxu0
      %2144 = vmatprep.mubr.bf16.mxu0 0
      %2145 = vmatmul.mubr.bf16.gmra.mxu0 %v1532
      %v2146 = vpop.f32.mrf.mxu0
      %v2147 = vadd.f32 0.0, %v2146
      %v2148 = vpop.f32.mrf.mxu0
      %v2149 = vpop.f32.mrf.mxu0
      %v2150 = vadd.f32 0.0, %v2149
      %v2151 = vpop.f32.mrf.mxu0
      %2152 = vmatprep.mubr.bf16.mxu0 0
      %2153 = vmatmul.mubr.bf16.gmra.mxu0 %v1534
      %v2154 = vpop.f32.mrf.mxu0
      %v2155 = vadd.f32 0.0, %v2154
      %v2156 = vpop.f32.mrf.mxu0
      %v2157 = vpop.f32.mrf.mxu0
      %v2158 = vadd.f32 0.0, %v2157
      %v2159 = vpop.f32.mrf.mxu0
      %2160 = vmatprep.mubr.bf16.mxu0 0
      %2161 = vmatmul.mubr.bf16.gmra.mxu0 %v1536
      %v2162 = vpop.f32.mrf.mxu0
      %v2163 = vadd.f32 0.0, %v2162
      %v2164 = vpop.f32.mrf.mxu0
      %v2165 = vpop.f32.mrf.mxu0
      %v2166 = vadd.f32 0.0, %v2165
      %v2167 = vpop.f32.mrf.mxu0
      %2168 = vmatprep.mubr.bf16.mxu0 0
      %2169 = vmatmul.mubr.bf16.gmra.mxu0 %v1538
      %v2170 = vpop.f32.mrf.mxu0
      %v2171 = vadd.f32 0.0, %v2170
      %v2172 = vpop.f32.mrf.mxu0
      %v2173 = vpop.f32.mrf.mxu0
      %v2174 = vadd.f32 0.0, %v2173
      %v2175 = vpop.f32.mrf.mxu0
      %2176 = vmatprep.mubr.bf16.mxu0 0
      %2177 = vmatmul.mubr.bf16.gmra.mxu0 %v1540
      %v2178 = vpop.f32.mrf.mxu0
      %v2179 = vadd.f32 0.0, %v2178
      %v2180 = vpop.f32.mrf.mxu0
      %v2181 = vpop.f32.mrf.mxu0
      %v2182 = vadd.f32 0.0, %v2181
      %v2183 = vpop.f32.mrf.mxu0
      %2184 = vmatprep.mubr.bf16.mxu0 0
      %2185 = vmatmul.mubr.bf16.gmra.mxu0 %v1542
      %v2186 = vpop.f32.mrf.mxu0
      %v2187 = vadd.f32 0.0, %v2186
      %v2188 = vpop.f32.mrf.mxu0
      %v2189 = vpop.f32.mrf.mxu0
      %v2190 = vadd.f32 0.0, %v2189
      %v2191 = vpop.f32.mrf.mxu0
      %2192 = vmatprep.mubr.bf16.mxu0 0
      %2193 = vmatmul.mubr.bf16.gmra.mxu0 %v1544
      %v2194 = vpop.f32.mrf.mxu0
      %v2195 = vadd.f32 0.0, %v2194
      %v2196 = vpop.f32.mrf.mxu0
      %v2197 = vpop.f32.mrf.mxu0
      %v2198 = vadd.f32 0.0, %v2197
      %v2199 = vpop.f32.mrf.mxu0
      %2200 = vmatprep.mubr.bf16.mxu0 0
      %2201 = vmatmul.mubr.bf16.gmra.mxu0 %v1788
      %v2202 = vpop.f32.mrf.mxu0
      %v2203 = vadd.f32 0.0, %v2202
      %v2204 = vpop.f32.mrf.mxu0
      %v2205 = vpop.f32.mrf.mxu0
      %v2206 = vadd.f32 0.0, %v2205
      %v2207 = vpop.f32.mrf.mxu0
      %2208 = vmatprep.mubr.bf16.mxu0 0
      %2209 = vmatmul.mubr.bf16.gmra.mxu0 %v1790
      %v2210 = vpop.f32.mrf.mxu0
      %v2211 = vadd.f32 0.0, %v2210
      %v2212 = vpop.f32.mrf.mxu0
      %v2213 = vpop.f32.mrf.mxu0
      %v2214 = vadd.f32 0.0, %v2213
      %v2215 = vpop.f32.mrf.mxu0
      %2216 = vmatprep.mubr.bf16.mxu0 0
      %2217 = vmatmul.mubr.bf16.gmra.mxu0 %v2065
      %v2218 = vpop.f32.mrf.mxu0
      %v2219 = vadd.f32 0.0, %v2218
      %v2220 = vpop.f32.mrf.mxu0
      %v2221 = vpop.f32.mrf.mxu0
      %v2222 = vadd.f32 0.0, %v2221
      %v2223 = vpop.f32.mrf.mxu0
      %2224 = vmatprep.mubr.bf16.mxu0 0
      %2225 = vmatmul.mubr.bf16.gmra.mxu0 %v2067
      %v2226 = vpop.f32.mrf.mxu0
      %v2227 = vadd.f32 0.0, %v2226
      %v2228 = vpop.f32.mrf.mxu0
      %v2229 = vpop.f32.mrf.mxu0
      %v2230 = vadd.f32 0.0, %v2229
      %v2231 = vpop.f32.mrf.mxu0
      %2232 = vdwg.mxu0
      %v2233 = vadd.f32 %v2020, %v2107
      %v2234 = vadd.f32 %v2021, %v2110
      %v2235 = vadd.f32 %v2022, %v2115
      %v2236 = vadd.f32 %v2023, %v2118
      %v2237 = vadd.f32 %v2024, %v2123
      %v2238 = vadd.f32 %v2025, %v2126
      %v2239 = vadd.f32 %v2026, %v2131
      %v2240 = vadd.f32 %v2027, %v2134
      %v2241 = vadd.f32 %v2028, %v2139
      %v2242 = vadd.f32 %v2029, %v2142
      %v2243 = vadd.f32 %v2030, %v2147
      %v2244 = vadd.f32 %v2031, %v2150
      %v2245 = vadd.f32 %v2032, %v2155
      %v2246 = vadd.f32 %v2033, %v2158
      %v2247 = vadd.f32 %v2034, %v2163
      %v2248 = vadd.f32 %v2035, %v2166
      %v2249 = vadd.f32 %v2036, %v2171
      %v2250 = vadd.f32 %v2037, %v2174
      %v2251 = vadd.f32 %v2038, %v2179
      %v2252 = vadd.f32 %v2039, %v2182
      %v2253 = vadd.f32 %v2040, %v2187
      %v2254 = vadd.f32 %v2041, %v2190
      %v2255 = vadd.f32 %v2042, %v2195
      %v2256 = vadd.f32 %v2043, %v2198
      %v2257 = vadd.f32 %v2044, %v2203
      %v2258 = vadd.f32 %v2045, %v2206
      %v2259 = vadd.f32 %v2046, %v2211
      %v2260 = vadd.f32 %v2047, %v2214
      %v2261 = vadd.f32 %v2048, %v2219
      %v2262 = vadd.f32 %v2049, %v2222
      %v2263 = vadd.f32 %v2050, %v2227
      %v2264 = vadd.f32 %v2051, %v2230
      %2265 = vst.msk [vmem:[#allocation3] sm:$0xff] %vm1419, %v2233
      %2266 = vst.msk [vmem:[#allocation3 + $0x8] sm:$0xff] %vm1419, %v2234
      %2267 = vst.msk [vmem:[#allocation3 + $0x10] sm:$0xff] %vm1419, %v2235
      %2268 = vst.msk [vmem:[#allocation3 + $0x18] sm:$0xff] %vm1419, %v2236
      %2269 = vst.msk [vmem:[#allocation3 + $0x20] sm:$0xff] %vm1419, %v2237
      %2270 = vst.msk [vmem:[#allocation3 + $0x28] sm:$0xff] %vm1419, %v2238
      %2271 = vst.msk [vmem:[#allocation3 + $0x30] sm:$0xff] %vm1419, %v2239
      %2272 = vst.msk [vmem:[#allocation3 + $0x38] sm:$0xff] %vm1419, %v2240
      %2273 = vst.msk [vmem:[#allocation3 + $0x40] sm:$0xff] %vm1419, %v2241
      %2274 = vst.msk [vmem:[#allocation3 + $0x48] sm:$0xff] %vm1419, %v2242
      %2275 = vst.msk [vmem:[#allocation3 + $0x50] sm:$0xff] %vm1419, %v2243
      %2276 = vst.msk [vmem:[#allocation3 + $0x58] sm:$0xff] %vm1419, %v2244
      %2277 = vst.msk [vmem:[#allocation3 + $0x60] sm:$0xff] %vm1419, %v2245
      %2278 = vst.msk [vmem:[#allocation3 + $0x68] sm:$0xff] %vm1419, %v2246
      %2279 = vst.msk [vmem:[#allocation3 + $0x70] sm:$0xff] %vm1419, %v2247
      %2280 = vst.msk [vmem:[#allocation3 + $0x78] sm:$0xff] %vm1419, %v2248
      %2281 = vst.msk [vmem:[#allocation3 + $0x80] sm:$0xff] %vm1419, %v2249
      %2282 = vst.msk [vmem:[#allocation3 + $0x88] sm:$0xff] %vm1419, %v2250
      %2283 = vst.msk [vmem:[#allocation3 + $0x90] sm:$0xff] %vm1419, %v2251
      %2284 = vst.msk [vmem:[#allocation3 + $0x98] sm:$0xff] %vm1419, %v2252
      %2285 = vst.msk [vmem:[#allocation3 + $0xa0] sm:$0xff] %vm1419, %v2253
      %2286 = vst.msk [vmem:[#allocation3 + $0xa8] sm:$0xff] %vm1419, %v2254
      %2287 = vst.msk [vmem:[#allocation3 + $0xb0] sm:$0xff] %vm1419, %v2255
      %2288 = vst.msk [vmem:[#allocation3 + $0xb8] sm:$0xff] %vm1419, %v2256
      %2289 = vst.msk [vmem:[#allocation3 + $0xc0] sm:$0xff] %vm1419, %v2257
      %2290 = vst.msk [vmem:[#allocation3 + $0xc8] sm:$0xff] %vm1419, %v2258
      %2291 = vst.msk [vmem:[#allocation3 + $0xd0] sm:$0xff] %vm1419, %v2259
      %2292 = vst.msk [vmem:[#allocation3 + $0xd8] sm:$0xff] %vm1419, %v2260
      %2293 = vst.msk [vmem:[#allocation3 + $0xe0] sm:$0xff] %vm1419, %v2261
      %2294 = vst.msk [vmem:[#allocation3 + $0xe8] sm:$0xff] %vm1419, %v2262
      %2295 = vst.msk [vmem:[#allocation3 + $0xf0] sm:$0xff] %vm1419, %v2263
      %2296 = vst.msk [vmem:[#allocation3 + $0xf8] sm:$0xff] %vm1419, %v2264
      %v2297 = vld [vmem:[#allocation3] sm:$0xff]
      %v2298 = vld [vmem:[#allocation3 + $0x8] sm:$0xff]
      %v2299 = vld [vmem:[#allocation3 + $0x20] sm:$0xff]
      %v2300 = vld [vmem:[#allocation3 + $0x28] sm:$0xff]
      %v2301 = vld [vmem:[#allocation3 + $0x40] sm:$0xff]
      %v2302 = vld [vmem:[#allocation3 + $0x48] sm:$0xff]
      %v2303 = vld [vmem:[#allocation3 + $0x60] sm:$0xff]
      %v2304 = vld [vmem:[#allocation3 + $0x68] sm:$0xff]
      %v2305 = vld [vmem:[#allocation3 + $0x80] sm:$0xff]
      %v2306 = vld [vmem:[#allocation3 + $0x88] sm:$0xff]
      %v2307 = vld [vmem:[#allocation3 + $0xa0] sm:$0xff]
      %v2308 = vld [vmem:[#allocation3 + $0xa8] sm:$0xff]
      %v2309 = vld [vmem:[#allocation3 + $0xc0] sm:$0xff]
      %v2310 = vld [vmem:[#allocation3 + $0xc8] sm:$0xff]
      %v2311 = vld [vmem:[#allocation3 + $0xe0] sm:$0xff]
      %v2312 = vld [vmem:[#allocation3 + $0xe8] sm:$0xff]
      %v2313 = vld [vmem:[%s227] sm:$0x1]
      %v2315 = vlaneseq
      %v2316 = vshrl.u32 %v2315, 7
      %v2317 = vsub.s32 0, %v2316
      %v2318 = vrot.slane %v2313, %v2317
      %v2320 = vadd.f32 %v2297, %v2318
      %v2321 = vadd.f32 %v2298, %v2318
      %v2322 = vadd.f32 %v2299, %v2318
      %v2323 = vadd.f32 %v2300, %v2318
      %v2324 = vadd.f32 %v2301, %v2318
      %v2325 = vadd.f32 %v2302, %v2318
      %v2326 = vadd.f32 %v2303, %v2318
      %v2327 = vadd.f32 %v2304, %v2318
      %v2328 = vadd.f32 %v2305, %v2318
      %v2329 = vadd.f32 %v2306, %v2318
      %v2330 = vadd.f32 %v2307, %v2318
      %v2331 = vadd.f32 %v2308, %v2318
      %v2332 = vadd.f32 %v2309, %v2318
      %v2333 = vadd.f32 %v2310, %v2318
      %v2334 = vadd.f32 %v2311, %v2318
      %v2335 = vadd.f32 %v2312, %v2318
      %v2336 = vmax.f32 %v2320, 0.0
      %v2337 = vmax.f32 %v2321, 0.0
      %v2338 = vmax.f32 %v2322, 0.0
      %v2339 = vmax.f32 %v2323, 0.0
      %v2340 = vmax.f32 %v2324, 0.0
      %v2341 = vmax.f32 %v2325, 0.0
      %v2342 = vmax.f32 %v2326, 0.0
      %v2343 = vmax.f32 %v2327, 0.0
      %v2344 = vmax.f32 %v2328, 0.0
      %v2345 = vmax.f32 %v2329, 0.0
      %v2346 = vmax.f32 %v2330, 0.0
      %v2347 = vmax.f32 %v2331, 0.0
      %v2348 = vmax.f32 %v2332, 0.0
      %v2349 = vmax.f32 %v2333, 0.0
      %v2350 = vmax.f32 %v2334, 0.0
      %v2351 = vmax.f32 %v2335, 0.0
      %v2352 = vpack.c.bf16 %v2337, %v2336
      %v2353 = vpack.c.bf16 %v2339, %v2338
      %v2354 = vpack.c.bf16 %v2341, %v2340
      %v2355 = vpack.c.bf16 %v2343, %v2342
      %v2356 = vpack.c.bf16 %v2345, %v2344
      %v2357 = vpack.c.bf16 %v2347, %v2346
      %v2358 = vpack.c.bf16 %v2349, %v2348
      %v2359 = vpack.c.bf16 %v2351, %v2350
      %v2368 = vunpack.c.l.b16 %v2352
      %v2369 = vunpack.c.h.b16 %v2352
      %v2370 = vunpack.c.l.b16 %v2353
      %v2371 = vunpack.c.h.b16 %v2353
      %v2372 = vunpack.c.l.b16 %v2354
      %v2373 = vunpack.c.h.b16 %v2354
      %v2374 = vunpack.c.l.b16 %v2355
      %v2375 = vunpack.c.h.b16 %v2355
      %v2376 = vunpack.c.l.b16 %v2356
      %v2377 = vunpack.c.h.b16 %v2356
      %v2378 = vunpack.c.l.b16 %v2357
      %v2379 = vunpack.c.h.b16 %v2357
      %v2380 = vunpack.c.l.b16 %v2358
      %v2381 = vunpack.c.h.b16 %v2358
      %v2382 = vunpack.c.l.b16 %v2359
      %v2383 = vunpack.c.h.b16 %v2359
      %v2384 = vpack.c.b16 %v2368, %v2368
      %v2385 = vpack.c.b16 %v2369, %v2369
      %v2386 = vpack.c.b16 %v2370, %v2370
      %v2387 = vpack.c.b16 %v2371, %v2371
      %v2388 = vpack.c.b16 %v2372, %v2372
      %v2389 = vpack.c.b16 %v2373, %v2373
      %v2390 = vpack.c.b16 %v2374, %v2374
      %v2391 = vpack.c.b16 %v2375, %v2375
      %v2392 = vpack.c.b16 %v2376, %v2376
      %v2393 = vpack.c.b16 %v2377, %v2377
      %v2394 = vpack.c.b16 %v2378, %v2378
      %v2395 = vpack.c.b16 %v2379, %v2379
      %v2396 = vpack.c.b16 %v2380, %v2380
      %v2397 = vpack.c.b16 %v2381, %v2381
      %v2398 = vpack.c.b16 %v2382, %v2382
      %v2399 = vpack.c.b16 %v2383, %v2383
      %vm2416 = vcmask 60416
      %2417 = vst.msk [vmem:[%s240] sm:$0xf] %vm2416, %v2384
      %2418 = vst.msk [vmem:[%s240 + $0x4] sm:$0xf] %vm2416, %v2385
      %2419 = vst.msk [vmem:[%s240 + $0x8] sm:$0xf] %vm2416, %v2386
      %2420 = vst.msk [vmem:[%s240 + $0xc] sm:$0xf] %vm2416, %v2387
      %2421 = vst.msk [vmem:[%s240 + $0x10] sm:$0xf] %vm2416, %v2388
      %2422 = vst.msk [vmem:[%s240 + $0x14] sm:$0xf] %vm2416, %v2389
      %2423 = vst.msk [vmem:[%s240 + $0x18] sm:$0xf] %vm2416, %v2390
      %2424 = vst.msk [vmem:[%s240 + $0x1c] sm:$0xf] %vm2416, %v2391
      %2425 = vst.msk [vmem:[%s240 + $0x20] sm:$0xf] %vm2416, %v2392
      %2426 = vst.msk [vmem:[%s240 + $0x24] sm:$0xf] %vm2416, %v2393
      %2427 = vst.msk [vmem:[%s240 + $0x28] sm:$0xf] %vm2416, %v2394
      %2428 = vst.msk [vmem:[%s240 + $0x2c] sm:$0xf] %vm2416, %v2395
      %2429 = vst.msk [vmem:[%s240 + $0x30] sm:$0xf] %vm2416, %v2396
      %2430 = vst.msk [vmem:[%s240 + $0x34] sm:$0xf] %vm2416, %v2397
      %2431 = vst.msk [vmem:[%s240 + $0x38] sm:$0xf] %vm2416, %v2398
      %2432 = vst.msk [vmem:[%s240 + $0x3c] sm:$0xf] %vm2416, %v2399
      %s2433 = smul.u32 8, %s20
      %p2434 = scmp.lt.s32.totalorder %s19, 1
      %s2435 = scalar_select %p2434, %s19, 1
      %p2436 = scmp.lt.s32.totalorder %s2433, 15
      %s2437 = scalar_select %p2436, %s2433, 15
      %p2438 = scmp.lt.s32.totalorder %s21, 0
      %s2439 = scalar_select %p2438, %s21, 0
      %s2440 = smul.addr %s2437, 2
      %s2441 = sadd.s32 %s2439, %s2440
      %s2442 = smul.addr %s2435, 32
      %s2443 = sadd.s32 %s2441, %s2442
      %s2444 = smul.addr %s2443, 4
      %s2445 = scalar_lea.vmem %s3, %s2444
      // Predicated region
      $region37: #{bottleneck_forward.4} parent=31 // pred_check
        %p2446 = pneg %p133
      $region38: #{bottleneck_forward.4} parent=31 // pred_check_branch
        %2448 = sbr.rel (%p2446) target = $region40
      $region39: #{bottleneck_forward.4} parent=31 // pred_region
        %s2449 = smul.u32 8, %s20
      $region40: #{bottleneck_forward.4} parent=31 // pred_fallthru
        _
    $region32: #{bottleneck_forward.4} parent=5 // pred_fallthru
      _
    %p2450 = scmp.le.s32.totalorder 2, %s9
    // Predicated region
    $region41: #{bottleneck_forward.4} parent=5 // pred_check
      %p2451 = pneg %p2450
    $region42: #{bottleneck_forward.4} parent=5 // pred_check_branch
      %2453 = sbr.rel (%p2451) target = $region44
    $region43: #{bottleneck_forward.4} parent=5 // pred_region
      %s2454 = ssub.s32 %s9, 2
      // Predicated region
      $region45: #{bottleneck_forward.4} parent=43 // pred_check
        %p2455 = pneg %p139
      $region46: #{bottleneck_forward.4} parent=43 // pred_check_branch
        %2457 = sbr.rel (%p2455) target = $region48
      $region47: #{bottleneck_forward.4} parent=43 // pred_region
        %s2458 = smul.u32 8, %s23
        %p2459 = scmp.lt.s32.totalorder %s22, 1
        %s2460 = scalar_select %p2459, %s22, 1
        %p2461 = scmp.lt.s32.totalorder %s2458, 15
        %s2462 = scalar_select %p2461, %s2458, 15
        %p2463 = scmp.lt.s32.totalorder %s24, 0
        %s2464 = scalar_select %p2463, %s24, 0
        %s2465 = smul.addr %s2462, 2
        %s2466 = sadd.s32 %s2464, %s2465
        %s2467 = smul.addr %s2460, 32
        %s2468 = sadd.s32 %s2466, %s2467
        %s2469 = smul.addr %s2468, 4
        %s2470 = scalar_lea.vmem %s3, %s2469
      $region48: #{bottleneck_forward.4} parent=43 // pred_fallthru
        _
    $region44: #{bottleneck_forward.4} parent=5 // pred_fallthru
      _
  $region6: #{bottleneck_forward.4} parent=0 // loop_footer
    %s13 = sadd.s32 1, %s9
  $region7: #{bottleneck_forward.4} parent=0 // loop_footer_branch
    %8 = sbr.rel target = $region3
  $region8: #{bottleneck_forward.4} parent=0 // loop_exit
    _

</llo_original>
